<compile_context>
chip_gen: v7x
topology: tpu7x:2x2x1
jax: 0.10.0
libtpu: 0.0.40
codegen_flags: <defaults>
</compile_context>

<pallas_src>
import jax
import jax.numpy as jnp
from jax.experimental import pallas as pl
from jax.experimental.pallas import tpu as pltpu

_BN_EPS = 1e-5  # nn.BatchNorm2d default


def _pick_row_tile(h, w, target_rows=2048):
    """Row-tile height th: th | h and (th == h or (th*w) % 128 == 0).

    (th*w) % 128 == 0 keeps the flattened-spatial output block lane-aligned so
    the NCHW-flat stores are unmasked; th == h (single tile) is always a valid
    fallback.  Aim for ~2048 matmul rows per tile to amortize per-step overhead.
    """
    valid = [d for d in range(1, h + 1)
             if h % d == 0 and (d == h or (d * w) % 128 == 0)]
    big_enough = [d for d in valid if d * w >= min(target_rows, h * w)]
    return min(big_enough) if big_enough else h


# ----------------------------- fused forward -----------------------------

def bisenet_output_forward(x_nchw, params):
    """(x_out, x_feat) with PyTorch BiSeNetOutput semantics (eval-mode BN).

    x_out is f32 NCHW; x_feat is returned bf16 NCHW (stored bf16 to halve
    writeback bytes -- downstream / the 1x1 conv consume it in bf16 anyway).
    """
    n, cin, h, w = x_nchw.shape
    cmid = params["conv_w"].shape[0]
    ncls = params["conv_out_w"].shape[0]

    # ---- fold BN (running stats) into the 3x3 conv weights / shift ----
    bn = params["bn"]
    s = bn["gamma"] * jax.lax.rsqrt(bn["var"] + _BN_EPS)                 # (cmid,)
    # (cmid, 9*cin): contraction laid out (dr, dc, cin) to match the patch order.
    w1t = (jnp.transpose(params["conv_w"], (0, 2, 3, 1)) * s[:, None, None, None])
    w1t = w1t.reshape(cmid, 9 * cin).astype(jnp.bfloat16)
    t1 = (bn["beta"] - bn["mean"] * s).reshape(cmid, 1).astype(jnp.float32)
    w2t = params["conv_out_w"][:, :, 0, 0].astype(jnp.bfloat16)          # (ncls, cmid)

    # ---- activations: NCHW -> NHWC bf16 with a 1-pixel zero halo ----
    xp = jnp.pad(jnp.transpose(x_nchw, (0, 2, 3, 1)).astype(jnp.bfloat16),
                 ((0, 0), (1, 1), (1, 1), (0, 0)))                        # (n, h+2, w+2, cin)

    th = _pick_row_tile(h, w)
    num_t = h // th
    m = th * w                                                            # matmul rows / tile

    def kernel(x_ref, w1_ref, t1_ref, w2_ref, feat_ref, out_ref, patch_ref):
        # x_ref    : (h+2, w+2, cin)  padded NHWC image, resident across row-tiles
        # w1_ref   : (cmid, 9*cin)    BN-folded 3x3 weights (bf16)
        # t1_ref   : (cmid, 1)        BN-folded shift (f32)
        # w2_ref   : (ncls, cmid)     1x1 classifier weights (bf16)
        # feat_ref : (cmid, m)        bf16 NCHW-flat feature tile
        # out_ref  : (ncls, m)        f32  NCHW-flat logit tile
        # patch_ref: (m, 9*cin)       merged-K im2col scratch (bf16)
        i = pl.program_id(1)
        r0 = i * th
        if th % 8 == 0:
            r0 = pl.multiple_of(r0, 8)

        # Build the merged-K patch once per tile: K = 3*3*cin.
        for dr in range(3):
            for dc in range(3):
                k = dr * 3 + dc
                tap = x_ref[pl.ds(r0 + dr, th), dc:dc + w, :]
                patch_ref[:, k * cin:(k + 1) * cin] = tap.reshape(m, cin)

        # 3x3 conv (+ folded BN scale) as ONE MXU matmul, channel-major result.
        acc = jax.lax.dot_general(
            w1_ref[...], patch_ref[...], (((1,), (1,)), ((), ())),
            preferred_element_type=jnp.float32)                           # (cmid, m)
        feat = jnp.maximum(acc + t1_ref[...], 0.0).astype(jnp.bfloat16)
        feat_ref[...] = feat

        # Fused 1x1 classifier conv on the in-register feature map.
        out_ref[...] = jax.lax.dot_general(
            w2_ref[...], feat, (((1,), (0,)), ((), ())),
            preferred_element_type=jnp.float32)                           # (ncls, m)

    grid = (n, num_t)

    # VMEM budget (double-buffered blocks) and advisory cost.
    block_bytes = (2 * (h + 2) * (w + 2) * cin * 2      # resident input (x2 buffers)
                   + m * 9 * cin * 2                    # patch scratch
                   + cmid * m * 4                       # f32 accumulator
                   + 2 * cmid * m * 2                   # feat out blocks (bf16)
                   + 2 * ncls * m * 4                   # logit out blocks (f32)
                   + 2 * (9 * cin * cmid * 2 + cmid * 4 + ncls * cmid * 2))
    try:
        vmem_cap = int(pltpu.get_tpu_info().vmem_capacity_bytes)
    except Exception:
        vmem_cap = 64 * 2 ** 20                         # conservative (v7x per-core)
    vmem_limit = int(min(int(0.75 * vmem_cap), max(32 * 2 ** 20, 2 * block_bytes)))
    flops = 2 * n * h * w * (9 * cin * cmid + cmid * ncls)
    bytes_accessed = (xp.size * 2 + w1t.size * 2 + t1.size * 4 + w2t.size * 2
                      + n * h * w * (cmid * 2 + ncls * 4))

    feat_flat, out_flat = pl.pallas_call(
        kernel,
        grid=grid,
        in_specs=[
            # Full padded image of one batch element; index map is constant in
            # the row-tile axis, so it is DMA'd once per batch and stays
            # resident in VMEM (no HBM halo repack, no duplicated input pass).
            pl.BlockSpec((None, h + 2, w + 2, cin), lambda b, i: (b, 0, 0, 0)),
            pl.BlockSpec((cmid, 9 * cin), lambda b, i: (0, 0)),
            pl.BlockSpec((cmid, 1), lambda b, i: (0, 0)),
            pl.BlockSpec((ncls, cmid), lambda b, i: (0, 0)),
        ],
        out_specs=[
            pl.BlockSpec((None, cmid, m), lambda b, i: (b, 0, i)),
            pl.BlockSpec((None, ncls, m), lambda b, i: (b, 0, i)),
        ],
        out_shape=[
            jax.ShapeDtypeStruct((n, cmid, h * w), jnp.bfloat16),
            jax.ShapeDtypeStruct((n, ncls, h * w), jnp.float32),
        ],
        scratch_shapes=[pltpu.VMEM((m, 9 * cin), jnp.bfloat16)],
        compiler_params=pltpu.CompilerParams(
            dimension_semantics=("parallel", "arbitrary"),
            vmem_limit_bytes=vmem_limit),
        cost_estimate=pl.CostEstimate(flops=int(flops), transcendentals=0,
                                      bytes_accessed=int(bytes_accessed)),
    )(xp, w1t, t1, w2t)

    # Row-major (free) reshapes only: the spatial extent is exact and the
    # channel dims are the true ones -> no post-kernel slice/transpose pass.
    x_feat = feat_flat.reshape(n, cmid, h, w)
    x_out = out_flat.reshape(n, ncls, h, w)
    return x_out, x_feat


# ----------------------------- params & reference -----------------------------

def init_bisenet_output_params(key, in_chan, mid_chan, n_classes):
    k1, k2, k3, k4, k5, k6 = jax.random.split(key, 6)
    # kaiming_normal_(a=1) -> std = 1/sqrt(fan_in); conv biases absent (bias=False).
    w_conv = jax.random.normal(k1, (mid_chan, in_chan, 3, 3), jnp.float32) \
        / jnp.sqrt(in_chan * 9.0)
    w_out = jax.random.normal(k2, (n_classes, mid_chan, 1, 1), jnp.float32) \
        / jnp.sqrt(float(mid_chan))
    bn = dict(
        gamma=1.0 + 0.1 * jax.random.normal(k3, (mid_chan,), jnp.float32),
        beta=0.1 * jax.random.normal(k4, (mid_chan,), jnp.float32),
        mean=0.1 * jax.random.normal(k5, (mid_chan,), jnp.float32),
        var=1.0 + 0.1 * jax.random.uniform(k6, (mid_chan,), jnp.float32),
    )
    return dict(conv_w=w_conv, bn=bn, conv_out_w=w_out)


def reference_forward(x_nchw, params):
    """Pure-JAX f32 reference of BiSeNetOutput.forward (eval-mode BN)."""
    x = jnp.transpose(x_nchw, (0, 2, 3, 1)).astype(jnp.float32)
    w1 = jnp.transpose(params["conv_w"], (2, 3, 1, 0))
    y = jax.lax.conv_general_dilated(x, w1, (1, 1), ((1, 1), (1, 1)),
                                     dimension_numbers=("NHWC", "HWIO", "NHWC"))
    bn = params["bn"]
    s = bn["gamma"] / jnp.sqrt(bn["var"] + _BN_EPS)
    feat = jnp.maximum((y - bn["mean"]) * s + bn["beta"], 0.0)
    w2 = jnp.transpose(params["conv_out_w"], (2, 3, 1, 0))
    out = jax.lax.conv_general_dilated(feat, w2, (1, 1), ((0, 0), (0, 0)),
                                       dimension_numbers=("NHWC", "HWIO", "NHWC"))
    return (jnp.transpose(out, (0, 3, 1, 2)), jnp.transpose(feat, (0, 3, 1, 2)))


# ----------------------------- main -----------------------------

if __name__ == "__main__":
    key = jax.random.PRNGKey(0)
    kx, kp = jax.random.split(key)
    n, in_chan, mid_chan, n_classes, h, w = 2, 32, 64, 19, 16, 16

    x = jax.random.normal(kx, (n, in_chan, h, w), jnp.float32)
    params = init_bisenet_output_params(kp, in_chan, mid_chan, n_classes)

    fwd = jax.jit(bisenet_output_forward)
    x_out, x_feat = jax.block_until_ready(fwd(x, params))

    assert x_out.shape == (n, n_classes, h, w), x_out.shape
    assert x_feat.shape == (n, mid_chan, h, w), x_feat.shape
    assert bool(jnp.all(jnp.isfinite(x_out))) and bool(jnp.all(jnp.isfinite(x_feat)))

    ref_out, ref_feat = reference_forward(x, params)
    err_out = float(jnp.max(jnp.abs(x_out - ref_out)))
    err_feat = float(jnp.max(jnp.abs(x_feat - ref_feat)))
    assert err_out < 0.2 and err_feat < 0.2, (err_out, err_feat)

    print("KERNEL_OK")
</pallas_src>

<mosaic_0001>
module attributes {stable_mosaic.version = 11 : i64} {
  func.func @kernel(%arg0: i32, %arg1: i32, %arg2: memref<1x18x18x32xbf16, #tpu.memory_space<vmem>>, %arg3: memref<64x288xbf16, #tpu.memory_space<vmem>>, %arg4: memref<64x1xf32, #tpu.memory_space<vmem>>, %arg5: memref<19x64xbf16, #tpu.memory_space<vmem>>, %arg6: memref<1x64x256xbf16, #tpu.memory_space<vmem>>, %arg7: memref<1x19x256xf32, #tpu.memory_space<vmem>>, %arg8: memref<256x288xbf16, #tpu.memory_space<vmem>>) attributes {dimension_semantics = [#tpu.dimension_semantics<parallel>, #tpu.dimension_semantics<arbitrary>], iteration_bounds = array<i64: 2, 1>, scalar_prefetch = 0 : i64, scratch_operands = 1 : i64, tpu.core_type = #tpu.core_type<tc>, window_params = [{transform_indices = @transform_0, window_bounds = array<i64: 1, 18, 18, 32>}, {pipeline_mode = #tpu.pipeline_mode<synchronous>, transform_indices = @transform_1, window_bounds = array<i64: 64, 288>}, {pipeline_mode = #tpu.pipeline_mode<synchronous>, transform_indices = @transform_2, window_bounds = array<i64: 64, 1>}, {pipeline_mode = #tpu.pipeline_mode<synchronous>, transform_indices = @transform_3, window_bounds = array<i64: 19, 64>}, {transform_indices = @transform_4, window_bounds = array<i64: 1, 64, 256>}, {transform_indices = @transform_5, window_bounds = array<i64: 1, 19, 256>}]} {
    %c16_i32 = arith.constant 16 : i32
    %0 = arith.muli %arg1, %c16_i32 : i32
    %1 = tpu.assume_multiple %0, 8 : i32
    %c0_i32 = arith.constant 0 : i32
    %2 = arith.addi %1, %c0_i32 : i32
    %c0 = arith.constant 0 : index
    %3 = arith.index_cast %2 : i32 to index
    %c0_0 = arith.constant 0 : index
    %c0_1 = arith.constant 0 : index
    %4 = vector.load %arg2[%c0, %3, %c0_0, %c0_1] : memref<1x18x18x32xbf16, #tpu.memory_space<vmem>>, vector<1x16x16x32xbf16>
    %5 = vector.shape_cast %4 : vector<1x16x16x32xbf16> to vector<16x16x32xbf16>
    %6 = vector.shape_cast %5 : vector<16x16x32xbf16> to vector<256x32xbf16>
    %c0_2 = arith.constant 0 : index
    %c0_3 = arith.constant 0 : index
    %7 = vector.load %arg8[%c0_2, %c0_3] : memref<256x288xbf16, #tpu.memory_space<vmem>>, vector<256x32xbf16>
    tpu.vector_store %arg8[%c0_2, %c0_3], %6 {strides = array<i32>} : memref<256x288xbf16, #tpu.memory_space<vmem>>, vector<256x32xbf16>,
    %c0_i32_4 = arith.constant 0 : i32
    %8 = arith.addi %1, %c0_i32_4 : i32
    %c0_5 = arith.constant 0 : index
    %9 = arith.index_cast %8 : i32 to index
    %c1 = arith.constant 1 : index
    %c0_6 = arith.constant 0 : index
    %10 = vector.load %arg2[%c0_5, %9, %c1, %c0_6] : memref<1x18x18x32xbf16, #tpu.memory_space<vmem>>, vector<1x16x16x32xbf16>
    %11 = vector.shape_cast %10 : vector<1x16x16x32xbf16> to vector<16x16x32xbf16>
    %12 = vector.shape_cast %11 : vector<16x16x32xbf16> to vector<256x32xbf16>
    %c0_7 = arith.constant 0 : index
    %c32 = arith.constant 32 : index
    %13 = vector.load %arg8[%c0_7, %c32] : memref<256x288xbf16, #tpu.memory_space<vmem>>, vector<256x32xbf16>
    tpu.vector_store %arg8[%c0_7, %c32], %12 {strides = array<i32>} : memref<256x288xbf16, #tpu.memory_space<vmem>>, vector<256x32xbf16>,
    %c0_i32_8 = arith.constant 0 : i32
    %14 = arith.addi %1, %c0_i32_8 : i32
    %c0_9 = arith.constant 0 : index
    %15 = arith.index_cast %14 : i32 to index
    %c2 = arith.constant 2 : index
    %c0_10 = arith.constant 0 : index
    %16 = vector.load %arg2[%c0_9, %15, %c2, %c0_10] : memref<1x18x18x32xbf16, #tpu.memory_space<vmem>>, vector<1x16x16x32xbf16>
    %17 = vector.shape_cast %16 : vector<1x16x16x32xbf16> to vector<16x16x32xbf16>
    %18 = vector.shape_cast %17 : vector<16x16x32xbf16> to vector<256x32xbf16>
    %c0_11 = arith.constant 0 : index
    %c64 = arith.constant 64 : index
    %19 = vector.load %arg8[%c0_11, %c64] : memref<256x288xbf16, #tpu.memory_space<vmem>>, vector<256x32xbf16>
    tpu.vector_store %arg8[%c0_11, %c64], %18 {strides = array<i32>} : memref<256x288xbf16, #tpu.memory_space<vmem>>, vector<256x32xbf16>,
    %c1_i32 = arith.constant 1 : i32
    %20 = arith.addi %1, %c1_i32 : i32
    %c0_12 = arith.constant 0 : index
    %21 = arith.index_cast %20 : i32 to index
    %c0_13 = arith.constant 0 : index
    %c0_14 = arith.constant 0 : index
    %22 = vector.load %arg2[%c0_12, %21, %c0_13, %c0_14] : memref<1x18x18x32xbf16, #tpu.memory_space<vmem>>, vector<1x16x16x32xbf16>
    %23 = vector.shape_cast %22 : vector<1x16x16x32xbf16> to vector<16x16x32xbf16>
    %24 = vector.shape_cast %23 : vector<16x16x32xbf16> to vector<256x32xbf16>
    %c0_15 = arith.constant 0 : index
    %c96 = arith.constant 96 : index
    %25 = vector.load %arg8[%c0_15, %c96] : memref<256x288xbf16, #tpu.memory_space<vmem>>, vector<256x32xbf16>
    tpu.vector_store %arg8[%c0_15, %c96], %24 {strides = array<i32>} : memref<256x288xbf16, #tpu.memory_space<vmem>>, vector<256x32xbf16>,
    %c1_i32_16 = arith.constant 1 : i32
    %26 = arith.addi %1, %c1_i32_16 : i32
    %c0_17 = arith.constant 0 : index
    %27 = arith.index_cast %26 : i32 to index
    %c1_18 = arith.constant 1 : index
    %c0_19 = arith.constant 0 : index
    %28 = vector.load %arg2[%c0_17, %27, %c1_18, %c0_19] : memref<1x18x18x32xbf16, #tpu.memory_space<vmem>>, vector<1x16x16x32xbf16>
    %29 = vector.shape_cast %28 : vector<1x16x16x32xbf16> to vector<16x16x32xbf16>
    %30 = vector.shape_cast %29 : vector<16x16x32xbf16> to vector<256x32xbf16>
    %c0_20 = arith.constant 0 : index
    %c128 = arith.constant 128 : index
    %31 = vector.load %arg8[%c0_20, %c128] : memref<256x288xbf16, #tpu.memory_space<vmem>>, vector<256x32xbf16>
    tpu.vector_store %arg8[%c0_20, %c128], %30 {strides = array<i32>} : memref<256x288xbf16, #tpu.memory_space<vmem>>, vector<256x32xbf16>,
    %c1_i32_21 = arith.constant 1 : i32
    %32 = arith.addi %1, %c1_i32_21 : i32
    %c0_22 = arith.constant 0 : index
    %33 = arith.index_cast %32 : i32 to index
    %c2_23 = arith.constant 2 : index
    %c0_24 = arith.constant 0 : index
    %34 = vector.load %arg2[%c0_22, %33, %c2_23, %c0_24] : memref<1x18x18x32xbf16, #tpu.memory_space<vmem>>, vector<1x16x16x32xbf16>
    %35 = vector.shape_cast %34 : vector<1x16x16x32xbf16> to vector<16x16x32xbf16>
    %36 = vector.shape_cast %35 : vector<16x16x32xbf16> to vector<256x32xbf16>
    %c0_25 = arith.constant 0 : index
    %c160 = arith.constant 160 : index
    %37 = vector.load %arg8[%c0_25, %c160] : memref<256x288xbf16, #tpu.memory_space<vmem>>, vector<256x32xbf16>
    tpu.vector_store %arg8[%c0_25, %c160], %36 {strides = array<i32>} : memref<256x288xbf16, #tpu.memory_space<vmem>>, vector<256x32xbf16>,
    %c2_i32 = arith.constant 2 : i32
    %38 = arith.addi %1, %c2_i32 : i32
    %c0_26 = arith.constant 0 : index
    %39 = arith.index_cast %38 : i32 to index
    %c0_27 = arith.constant 0 : index
    %c0_28 = arith.constant 0 : index
    %40 = vector.load %arg2[%c0_26, %39, %c0_27, %c0_28] : memref<1x18x18x32xbf16, #tpu.memory_space<vmem>>, vector<1x16x16x32xbf16>
    %41 = vector.shape_cast %40 : vector<1x16x16x32xbf16> to vector<16x16x32xbf16>
    %42 = vector.shape_cast %41 : vector<16x16x32xbf16> to vector<256x32xbf16>
    %c0_29 = arith.constant 0 : index
    %c192 = arith.constant 192 : index
    %43 = vector.load %arg8[%c0_29, %c192] : memref<256x288xbf16, #tpu.memory_space<vmem>>, vector<256x32xbf16>
    tpu.vector_store %arg8[%c0_29, %c192], %42 {strides = array<i32>} : memref<256x288xbf16, #tpu.memory_space<vmem>>, vector<256x32xbf16>,
    %c2_i32_30 = arith.constant 2 : i32
    %44 = arith.addi %1, %c2_i32_30 : i32
    %c0_31 = arith.constant 0 : index
    %45 = arith.index_cast %44 : i32 to index
    %c1_32 = arith.constant 1 : index
    %c0_33 = arith.constant 0 : index
    %46 = vector.load %arg2[%c0_31, %45, %c1_32, %c0_33] : memref<1x18x18x32xbf16, #tpu.memory_space<vmem>>, vector<1x16x16x32xbf16>
    %47 = vector.shape_cast %46 : vector<1x16x16x32xbf16> to vector<16x16x32xbf16>
    %48 = vector.shape_cast %47 : vector<16x16x32xbf16> to vector<256x32xbf16>
    %c0_34 = arith.constant 0 : index
    %c224 = arith.constant 224 : index
    %49 = vector.load %arg8[%c0_34, %c224] : memref<256x288xbf16, #tpu.memory_space<vmem>>, vector<256x32xbf16>
    tpu.vector_store %arg8[%c0_34, %c224], %48 {strides = array<i32>} : memref<256x288xbf16, #tpu.memory_space<vmem>>, vector<256x32xbf16>,
    %c2_i32_35 = arith.constant 2 : i32
    %50 = arith.addi %1, %c2_i32_35 : i32
    %c0_36 = arith.constant 0 : index
    %51 = arith.index_cast %50 : i32 to index
    %c2_37 = arith.constant 2 : index
    %c0_38 = arith.constant 0 : index
    %52 = vector.load %arg2[%c0_36, %51, %c2_37, %c0_38] : memref<1x18x18x32xbf16, #tpu.memory_space<vmem>>, vector<1x16x16x32xbf16>
    %53 = vector.shape_cast %52 : vector<1x16x16x32xbf16> to vector<16x16x32xbf16>
    %54 = vector.shape_cast %53 : vector<16x16x32xbf16> to vector<256x32xbf16>
    %c0_39 = arith.constant 0 : index
    %c256 = arith.constant 256 : index
    %55 = vector.load %arg8[%c0_39, %c256] : memref<256x288xbf16, #tpu.memory_space<vmem>>, vector<256x32xbf16>
    tpu.vector_store %arg8[%c0_39, %c256], %54 {strides = array<i32>} : memref<256x288xbf16, #tpu.memory_space<vmem>>, vector<256x32xbf16>,
    %c0_40 = arith.constant 0 : index
    %c0_41 = arith.constant 0 : index
    %56 = vector.load %arg3[%c0_40, %c0_41] : memref<64x288xbf16, #tpu.memory_space<vmem>>, vector<64x288xbf16>
    %c0_42 = arith.constant 0 : index
    %c0_43 = arith.constant 0 : index
    %57 = vector.load %arg8[%c0_42, %c0_43] : memref<256x288xbf16, #tpu.memory_space<vmem>>, vector<256x288xbf16>
    %cst = arith.constant dense<0.000000e+00> : vector<64x256xf32>
    %58 = tpu.matmul %56, %57, %cst {dimension_numbers = #tpu.dot_dimension_numbers<[1], [1], [0], [0], [0, 0, 1, 0], [], []>} : vector<64x288xbf16>, vector<256x288xbf16>, vector<64x256xf32> -> vector<64x256xf32>
    %c0_44 = arith.constant 0 : index
    %c0_45 = arith.constant 0 : index
    %59 = vector.load %arg4[%c0_44, %c0_45] : memref<64x1xf32, #tpu.memory_space<vmem>>, vector<64x1xf32>
    %60 = vector.broadcast %59 : vector<64x1xf32> to vector<64x256xf32>
    %61 = arith.addf %58, %60 : vector<64x256xf32>
    %cst_46 = arith.constant 0.000000e+00 : f32
    %62 = vector.broadcast %cst_46 : f32 to vector<64x256xf32>
    %63 = arith.maximumf %61, %62 : vector<64x256xf32>
    %64 = arith.truncf %63 : vector<64x256xf32> to vector<64x256xbf16>
    %c0_47 = arith.constant 0 : index
    %c0_48 = arith.constant 0 : index
    %c0_49 = arith.constant 0 : index
    %65 = vector.load %arg6[%c0_47, %c0_48, %c0_49] : memref<1x64x256xbf16, #tpu.memory_space<vmem>>, vector<1x64x256xbf16>
    %66 = vector.shape_cast %65 : vector<1x64x256xbf16> to vector<64x256xbf16>
    %67 = vector.shape_cast %64 : vector<64x256xbf16> to vector<1x64x256xbf16>
    tpu.vector_store %arg6[%c0_47, %c0_48, %c0_49], %67 {strides = array<i32>} : memref<1x64x256xbf16, #tpu.memory_space<vmem>>, vector<1x64x256xbf16>,
    %c0_50 = arith.constant 0 : index
    %c0_51 = arith.constant 0 : index
    %68 = vector.load %arg5[%c0_50, %c0_51] : memref<19x64xbf16, #tpu.memory_space<vmem>>, vector<19x64xbf16>
    %cst_52 = arith.constant dense<0.000000e+00> : vector<19x256xf32>
    %69 = tpu.matmul %68, %64, %cst_52 {dimension_numbers = #tpu.dot_dimension_numbers<[1], [0], [0], [1], [0, 0, 1, 1], [], []>} : vector<19x64xbf16>, vector<64x256xbf16>, vector<19x256xf32> -> vector<19x256xf32>
    %c0_53 = arith.constant 0 : index
    %c0_54 = arith.constant 0 : index
    %c0_55 = arith.constant 0 : index
    %70 = vector.load %arg7[%c0_53, %c0_54, %c0_55] : memref<1x19x256xf32, #tpu.memory_space<vmem>>, vector<1x19x256xf32>
    %71 = vector.shape_cast %70 : vector<1x19x256xf32> to vector<19x256xf32>
    %72 = vector.shape_cast %69 : vector<19x256xf32> to vector<1x19x256xf32>
    tpu.vector_store %arg7[%c0_53, %c0_54, %c0_55], %72 {strides = array<i32>} : memref<1x19x256xf32, #tpu.memory_space<vmem>>, vector<1x19x256xf32>,
    return
  }
  func.func @transform_0(%arg0: i32, %arg1: i32) -> (i32, i32, i32, i32) {
    %c0_i32 = arith.constant 0 : i32
    %c0_i32_0 = arith.constant 0 : i32
    %c0_i32_1 = arith.constant 0 : i32
    %c0_i32_2 = arith.constant 0 : i32
    return %arg0, %c0_i32, %c0_i32_0, %c0_i32_1 : i32, i32, i32, i32
  }
  func.func @transform_1(%arg0: i32, %arg1: i32) -> (i32, i32) {
    %c0_i32 = arith.constant 0 : i32
    %c0_i32_0 = arith.constant 0 : i32
    %c0_i32_1 = arith.constant 0 : i32
    return %c0_i32, %c0_i32_0 : i32, i32
  }
  func.func @transform_2(%arg0: i32, %arg1: i32) -> (i32, i32) {
    %c0_i32 = arith.constant 0 : i32
    %c0_i32_0 = arith.constant 0 : i32
    %c0_i32_1 = arith.constant 0 : i32
    return %c0_i32, %c0_i32_0 : i32, i32
  }
  func.func @transform_3(%arg0: i32, %arg1: i32) -> (i32, i32) {
    %c0_i32 = arith.constant 0 : i32
    %c0_i32_0 = arith.constant 0 : i32
    %c0_i32_1 = arith.constant 0 : i32
    return %c0_i32, %c0_i32_0 : i32, i32
  }
  func.func @transform_4(%arg0: i32, %arg1: i32) -> (i32, i32, i32) {
    %c0_i32 = arith.constant 0 : i32
    %c0_i32_0 = arith.constant 0 : i32
    return %arg0, %c0_i32, %arg1 : i32, i32, i32
  }
  func.func @transform_5(%arg0: i32, %arg1: i32) -> (i32, i32, i32) {
    %c0_i32 = arith.constant 0 : i32
    %c0_i32_0 = arith.constant 0 : i32
    return %arg0, %c0_i32, %arg1 : i32, i32, i32
  }
}

</mosaic_0001>

<llo_original>
// kernel: bisenet_output_forward.1
$region0: #{bisenet_output_forward.1}
  #allocation0 [shape = 'u32[]', space=smem, size = 0x4, offset = 0x4, fixed_abs, tag = 'smem constant byte address 0x4 - core index']
  #allocation1 [shape = 'u32[144,128]{1,0:T(1,128)}', space=vmem, size = 0x12000, scoped, tag = 'internal scratch']
  #allocation2 [shape = 'bf16[256,288]{1,0:T(16,128)(2,1)}', space=vmem, size = 0x30000, scoped, tag = 'scratch operand']
  %s0 = inlined_call_operand.vmem [shape: bf16[2,18,18,32], index: 0, kind: input, shape index: {}]
  %s1 = inlined_call_operand.vmem [shape: bf16[64,288], index: 1, kind: input, shape index: {}]
  %s2 = inlined_call_operand.vmem [shape: f32[64,1], index: 2, kind: input, shape index: {}]
  %s3 = inlined_call_operand.vmem [shape: bf16[19,64], index: 3, kind: input, shape index: {}]
  %s4 = inlined_call_operand.vmem [shape: bf16[2,64,256], index: 4, kind: output, shape index: {0}]
  %s5 = inlined_call_operand.vmem [shape: f32[2,19,256], index: 5, kind: output, shape index: {1}]
  %6 = xla_tuple %s4, %s5
  %s7 = sld [smem:[#allocation0]]
  $region57: #{bisenet_output_forward.1} parent=0
    _
  %s9 = ssub.s32 1, %s7
  %s10 = scalar_select 0, %s9, %s7
  loop: start=0, step=1, limit=4
  $region2: #{bisenet_output_forward.1} parent=0 // loop_pre_header
    _
  $region3: #{bisenet_output_forward.1} parent=0 // loop_header
    %s12 = sphi 0, %s16
    %p13 = scmp.ge.s32.totalorder %s12, 4
    %s19 = sphi 0, %s31
    %s20 = sphi 0, %s27
    %s21 = sphi 0, %s19
    %s22 = sphi 0, %s20
    %s23 = sphi 0, %s21
    %s24 = sphi 0, %s22
    %s34 = sphi 0, %s36
    %s37 = sphi 0, %s34
    %s38 = sphi 0, %s37
    %s54 = sphi 0, %s38
    %s58 = sphi 0, %s58
    %s60 = sphi 0, %s58
    %s61 = sphi 0, %s60
    %s75 = sphi 0, %s61
    %s79 = sphi 0, %s79
    %s81 = sphi 0, %s79
    %s82 = sphi 0, %s81
    %s96 = sphi 0, %s82
    %s100 = sphi 0, %s100
    %s102 = sphi 0, %s100
    %s103 = sphi 0, %s102
    %s117 = sphi 0, %s103
    %s125 = sphi 0, %s127
    %s128 = sphi 0, %s125
    %s129 = sphi 0, %s128
    %s145 = sphi 0, %s129
    %s153 = sphi 0, %s155
    %s156 = sphi 0, %s153
    %s157 = sphi 0, %s156
    %s173 = sphi 0, %s157
  $region4: #{bisenet_output_forward.1} parent=0 // loop_header_branch
    %15 = sbr.rel (%p13) target = $region8
  $region5: #{bisenet_output_forward.1} parent=0 // loop_body
    %s17 = ssub.s32 %s12, 1
    %s18 = ssub.s32 %s12, 2
    %s25 = sadd.s32 1, %s20
    %p26 = scmp.ge.s32.totalorder %s25, 1
    %s27 = scalar_select %p26, 0, %s25
    %s28 = sadd.s32 1, %s19
    %s29 = scalar_select %p26, %s28, %s19
    %p30 = scmp.ge.s32.totalorder %s29, 2
    %s31 = scalar_select %p30, 0, %s29
    %s32 = ssub.s32 %s19, %s31
    %p33 = scmp.eq.s32.totalorder %s32, 0
    %s35 = sadd.s32 %s34, 1
    %s36 = scalar_select %p33, %s34, %s35
    %p39 = pneg %p33
    %p40 = scmp.eq.s32.totalorder %s12, 1
    %p41 = por %p39, %p40
    %p42 = scmp.ne.s32.totalorder %s34, %s37
    %p43 = scmp.eq.s32.totalorder %s12, 0
    %p44 = por %p42, %p43
    %p45 = scmp.ne.s32.totalorder %s34, %s37
    %p46 = scmp.eq.s32.totalorder %s17, 1
    %p47 = por %p45, %p46
    %p48 = scmp.ne.s32.totalorder %s37, %s38
    %p49 = scmp.eq.s32.totalorder %s17, 0
    %p50 = por %p48, %p49
    %p51 = scmp.ne.s32.totalorder %s37, %s38
    %p52 = scmp.eq.s32.totalorder %s18, 1
    %p53 = por %p51, %p52
    %p55 = scmp.ne.s32.totalorder %s38, %s54
    %p56 = scmp.eq.s32.totalorder %s18, 0
    %p57 = por %p55, %p56
    %s59 = sadd.s32 %s58, 1
    %p62 = scmp.eq.s32.totalorder %s12, 1
    %p63 = scmp.ne.s32.totalorder %s58, %s60
    %p64 = scmp.eq.s32.totalorder %s12, 0
    %p65 = por %p63, %p64
    %p66 = scmp.ne.s32.totalorder %s58, %s60
    %p67 = scmp.eq.s32.totalorder %s17, 1
    %p68 = por %p66, %p67
    %p69 = scmp.ne.s32.totalorder %s60, %s61
    %p70 = scmp.eq.s32.totalorder %s17, 0
    %p71 = por %p69, %p70
    %p72 = scmp.ne.s32.totalorder %s60, %s61
    %p73 = scmp.eq.s32.totalorder %s18, 1
    %p74 = por %p72, %p73
    %p76 = scmp.ne.s32.totalorder %s61, %s75
    %p77 = scmp.eq.s32.totalorder %s18, 0
    %p78 = por %p76, %p77
    %s80 = sadd.s32 %s79, 1
    %p83 = scmp.eq.s32.totalorder %s12, 1
    %p84 = scmp.ne.s32.totalorder %s79, %s81
    %p85 = scmp.eq.s32.totalorder %s12, 0
    %p86 = por %p84, %p85
    %p87 = scmp.ne.s32.totalorder %s79, %s81
    %p88 = scmp.eq.s32.totalorder %s17, 1
    %p89 = por %p87, %p88
    %p90 = scmp.ne.s32.totalorder %s81, %s82
    %p91 = scmp.eq.s32.totalorder %s17, 0
    %p92 = por %p90, %p91
    %p93 = scmp.ne.s32.totalorder %s81, %s82
    %p94 = scmp.eq.s32.totalorder %s18, 1
    %p95 = por %p93, %p94
    %p97 = scmp.ne.s32.totalorder %s82, %s96
    %p98 = scmp.eq.s32.totalorder %s18, 0
    %p99 = por %p97, %p98
    %s101 = sadd.s32 %s100, 1
    %p104 = scmp.eq.s32.totalorder %s12, 1
    %p105 = scmp.ne.s32.totalorder %s100, %s102
    %p106 = scmp.eq.s32.totalorder %s12, 0
    %p107 = por %p105, %p106
    %p108 = scmp.ne.s32.totalorder %s100, %s102
    %p109 = scmp.eq.s32.totalorder %s17, 1
    %p110 = por %p108, %p109
    %p111 = scmp.ne.s32.totalorder %s102, %s103
    %p112 = scmp.eq.s32.totalorder %s17, 0
    %p113 = por %p111, %p112
    %p114 = scmp.ne.s32.totalorder %s102, %s103
    %p115 = scmp.eq.s32.totalorder %s18, 1
    %p116 = por %p114, %p115
    %p118 = scmp.ne.s32.totalorder %s103, %s117
    %p119 = scmp.eq.s32.totalorder %s18, 0
    %p120 = por %p118, %p119
    %s121 = ssub.s32 %s19, %s31
    %s122 = ssub.s32 %s20, %s27
    %s123 = sor.u32 %s121, %s122
    %p124 = scmp.eq.s32.totalorder %s123, 0
    %s126 = sadd.s32 %s125, 1
    %s127 = scalar_select %p124, %s125, %s126
    %p130 = pneg %p124
    %p131 = scmp.eq.s32.totalorder %s12, 1
    %p132 = por %p130, %p131
    %p133 = scmp.ne.s32.totalorder %s125, %s128
    %p134 = scmp.eq.s32.totalorder %s12, 0
    %p135 = por %p133, %p134
    %p136 = scmp.ne.s32.totalorder %s125, %s128
    %p137 = scmp.eq.s32.totalorder %s17, 1
    %p138 = por %p136, %p137
    %p139 = scmp.ne.s32.totalorder %s128, %s129
    %p140 = scmp.eq.s32.totalorder %s17, 0
    %p141 = por %p139, %p140
    %p142 = scmp.ne.s32.totalorder %s128, %s129
    %p143 = scmp.eq.s32.totalorder %s18, 1
    %p144 = por %p142, %p143
    %p146 = scmp.ne.s32.totalorder %s129, %s145
    %p147 = scmp.eq.s32.totalorder %s18, 0
    %p148 = por %p146, %p147
    %s149 = ssub.s32 %s19, %s31
    %s150 = ssub.s32 %s20, %s27
    %s151 = sor.u32 %s149, %s150
    %p152 = scmp.eq.s32.totalorder %s151, 0
    %s154 = sadd.s32 %s153, 1
    %s155 = scalar_select %p152, %s153, %s154
    %p158 = pneg %p152
    %p159 = scmp.eq.s32.totalorder %s12, 1
    %p160 = por %p158, %p159
    %p161 = scmp.ne.s32.totalorder %s153, %s156
    %p162 = scmp.eq.s32.totalorder %s12, 0
    %p163 = por %p161, %p162
    %p164 = scmp.ne.s32.totalorder %s153, %s156
    %p165 = scmp.eq.s32.totalorder %s17, 1
    %p166 = por %p164, %p165
    %p167 = scmp.ne.s32.totalorder %s156, %s157
    %p168 = scmp.eq.s32.totalorder %s17, 0
    %p169 = por %p167, %p168
    %p170 = scmp.ne.s32.totalorder %s156, %s157
    %p171 = scmp.eq.s32.totalorder %s18, 1
    %p172 = por %p170, %p171
    %p174 = scmp.ne.s32.totalorder %s157, %s173
    %p175 = scmp.eq.s32.totalorder %s18, 0
    %p176 = por %p174, %p175
    %p177 = scmp.le.s32.totalorder 1, %s12
    %p178 = scmp.lt.s32.totalorder %s12, 3
    %p179 = pnand %p177, %p178
    %p180 = pneg %p179
    // Predicated region
    $region9: #{bisenet_output_forward.1} parent=5 // pred_check
      _
    $region10: #{bisenet_output_forward.1} parent=5 // pred_check_branch
      %182 = sbr.rel (%p179) target = $region12
    $region11: #{bisenet_output_forward.1} parent=5 // pred_region
      %s183 = ssub.s32 %s12, 1
      // Predicated region
      $region13: #{bisenet_output_forward.1} parent=11 // pred_check
        %p184 = pneg %p71
      $region14: #{bisenet_output_forward.1} parent=11 // pred_check_branch
        %186 = sbr.rel (%p184) target = $region16
      $region15: #{bisenet_output_forward.1} parent=11 // pred_region
        _
      $region16: #{bisenet_output_forward.1} parent=11 // pred_fallthru
        _
      // Predicated region
      $region17: #{bisenet_output_forward.1} parent=11 // pred_check
        %p187 = pneg %p92
      $region18: #{bisenet_output_forward.1} parent=11 // pred_check_branch
        %189 = sbr.rel (%p187) target = $region20
      $region19: #{bisenet_output_forward.1} parent=11 // pred_region
        _
      $region20: #{bisenet_output_forward.1} parent=11 // pred_fallthru
        _
      // Predicated region
      $region21: #{bisenet_output_forward.1} parent=11 // pred_check
        %p190 = pneg %p113
      $region22: #{bisenet_output_forward.1} parent=11 // pred_check_branch
        %192 = sbr.rel (%p190) target = $region24
      $region23: #{bisenet_output_forward.1} parent=11 // pred_region
        _
      $region24: #{bisenet_output_forward.1} parent=11 // pred_fallthru
        _
    $region12: #{bisenet_output_forward.1} parent=5 // pred_fallthru
      _
    %p193 = scmp.lt.s32.totalorder %s12, 2
    // Predicated region
    $region25: #{bisenet_output_forward.1} parent=5 // pred_check
      %p194 = pneg %p193
    $region26: #{bisenet_output_forward.1} parent=5 // pred_check_branch
      %196 = sbr.rel (%p194) target = $region28
    $region27: #{bisenet_output_forward.1} parent=5 // pred_region
      // Predicated region
      $region29: #{bisenet_output_forward.1} parent=27 // pred_check
        %p197 = pneg %p44
      $region30: #{bisenet_output_forward.1} parent=27 // pred_check_branch
        %199 = sbr.rel (%p197) target = $region32
      $region31: #{bisenet_output_forward.1} parent=27 // pred_region
        %p200 = scmp.lt.s32.totalorder %s19, 1
        %s201 = scalar_select %p200, %s19, 1
        %s202 = smul.addr %s201, 54
        %s203 = smul.addr %s202, 4
        %s204 = scalar_lea.vmem %s0, %s203
      $region32: #{bisenet_output_forward.1} parent=27 // pred_fallthru
        _
    $region28: #{bisenet_output_forward.1} parent=5 // pred_fallthru
      _
    %p205 = scmp.le.s32.totalorder 1, %s12
    %p206 = scmp.lt.s32.totalorder %s12, 3
    %p207 = pnand %p205, %p206
    %p208 = pneg %p207
    // Predicated region
    $region33: #{bisenet_output_forward.1} parent=5 // pred_check
      _
    $region34: #{bisenet_output_forward.1} parent=5 // pred_check_branch
      %210 = sbr.rel (%p207) target = $region36
    $region35: #{bisenet_output_forward.1} parent=5 // pred_region
      %s211 = ssub.s32 %s12, 1
      %p212 = scmp.lt.s32.totalorder %s21, 1
      %s213 = scalar_select %p212, %s21, 1
      %s214 = smul.addr %s213, 54
      %s215 = smul.addr %s214, 4
      %s216 = scalar_lea.vmem %s0, %s215
      %p217 = pneg %p50
      %p218 = pneg %p47
      %p219 = pneg %p71
      %p220 = pneg %p68
      %p221 = pneg %p92
      %p222 = pneg %p89
      %p223 = pneg %p113
      %p224 = pneg %p110
      %p225 = pneg %p141
      %p226 = pneg %p138
      %s227 = smul.u32 2, %s22
      %p228 = scmp.lt.s32.totalorder %s21, 1
      %s229 = scalar_select %p228, %s21, 1
      %p230 = scmp.lt.s32.totalorder %s227, 1
      %s231 = scalar_select %p230, %s227, 1
      %s232 = smul.addr %s229, 16
      %s233 = sadd.s32 %s231, %s232
      %s234 = smul.addr %s233, 4
      %s235 = scalar_lea.vmem %s4, %s234
      %p236 = pneg %p169
      %p237 = pneg %p166
      %s238 = smul.u32 2, %s22
      %p239 = scmp.lt.s32.totalorder %s21, 1
      %s240 = scalar_select %p239, %s21, 1
      %p241 = scmp.lt.s32.totalorder %s238, 1
      %s242 = scalar_select %p241, %s238, 1
      %s243 = smul.addr %s240, 6
      %s244 = sadd.s32 %s242, %s243
      %s245 = smul.addr %s244, 8
      %s246 = scalar_lea.vmem %s5, %s245
      %p247 = scmp.lt.s32.totalorder %s21, 1
      %s248 = scalar_select %p247, %s21, 1
      %s249 = smul.addr %s248, 54
      %s250 = smul.addr %s249, 4
      %s251 = scalar_lea.vmem %s0, %s250
      %s252 = smul.u32 2, %s22
      %p253 = scmp.lt.s32.totalorder %s21, 1
      %s254 = scalar_select %p253, %s21, 1
      %p255 = scmp.lt.s32.totalorder %s252, 1
      %s256 = scalar_select %p255, %s252, 1
      %s257 = smul.addr %s254, 16
      %s258 = sadd.s32 %s256, %s257
      %s259 = smul.addr %s258, 4
      %s260 = scalar_lea.vmem %s4, %s259
      %s261 = smul.u32 2, %s22
      %s262 = smul.u32 2, %s22
      %p263 = scmp.lt.s32.totalorder %s21, 1
      %s264 = scalar_select %p263, %s21, 1
      %p265 = scmp.lt.s32.totalorder %s262, 1
      %s266 = scalar_select %p265, %s262, 1
      %s267 = smul.addr %s264, 6
      %s268 = sadd.s32 %s266, %s267
      %s269 = smul.addr %s268, 8
      %s270 = scalar_lea.vmem %s5, %s269
      %s271 = smul.u32 2, %s22
      %s273 = smul.u32 %s22, 16
      %s274 = smul.u32 %s273, 3
      %s275 = smul.addr %s274, 4
      %s276 = scalar_lea.vmem %s251, %s275
      %v277 = vld [vmem:[%s276] sm:$0xf]
      %v278 = vld [vmem:[%s276 + $0x4] sm:$0xf]
      %v279 = vld [vmem:[%s276 + $0xc] sm:$0xf]
      %v280 = vld [vmem:[%s276 + $0x10] sm:$0xf]
      %v281 = vld [vmem:[%s276 + $0x18] sm:$0xf]
      %v282 = vld [vmem:[%s276 + $0x1c] sm:$0xf]
      %v283 = vld [vmem:[%s276 + $0x24] sm:$0xf]
      %v284 = vld [vmem:[%s276 + $0x28] sm:$0xf]
      %v285 = vld [vmem:[%s276 + $0x30] sm:$0xf]
      %v286 = vld [vmem:[%s276 + $0x34] sm:$0xf]
      %v287 = vld [vmem:[%s276 + $0x3c] sm:$0xf]
      %v288 = vld [vmem:[%s276 + $0x40] sm:$0xf]
      %v289 = vld [vmem:[%s276 + $0x48] sm:$0xf]
      %v290 = vld [vmem:[%s276 + $0x4c] sm:$0xf]
      %v291 = vld [vmem:[%s276 + $0x54] sm:$0xf]
      %v292 = vld [vmem:[%s276 + $0x58] sm:$0xf]
      %v293 = vld [vmem:[%s276 + $0x60] sm:$0xf]
      %v294 = vld [vmem:[%s276 + $0x64] sm:$0xf]
      %v295 = vld [vmem:[%s276 + $0x6c] sm:$0xf]
      %v296 = vld [vmem:[%s276 + $0x70] sm:$0xf]
      %v297 = vld [vmem:[%s276 + $0x78] sm:$0xf]
      %v298 = vld [vmem:[%s276 + $0x7c] sm:$0xf]
      %v299 = vld [vmem:[%s276 + $0x84] sm:$0xf]
      %v300 = vld [vmem:[%s276 + $0x88] sm:$0xf]
      %v301 = vld [vmem:[%s276 + $0x90] sm:$0xf]
      %v302 = vld [vmem:[%s276 + $0x94] sm:$0xf]
      %v303 = vld [vmem:[%s276 + $0x9c] sm:$0xf]
      %v304 = vld [vmem:[%s276 + $0xa0] sm:$0xf]
      %v305 = vld [vmem:[%s276 + $0xa8] sm:$0xf]
      %v306 = vld [vmem:[%s276 + $0xac] sm:$0xf]
      %v307 = vld [vmem:[%s276 + $0xb4] sm:$0xf]
      %v308 = vld [vmem:[%s276 + $0xb8] sm:$0xf]
      %v341 = vunpack.c.l.b16 %v277
      %v342 = vunpack.c.l.b16 %v278
      %v343 = vunpack.c.l.b16 %v279
      %v344 = vunpack.c.l.b16 %v280
      %v345 = vunpack.c.l.b16 %v281
      %v346 = vunpack.c.l.b16 %v282
      %v347 = vunpack.c.l.b16 %v283
      %v348 = vunpack.c.l.b16 %v284
      %v349 = vunpack.c.l.b16 %v285
      %v350 = vunpack.c.l.b16 %v286
      %v351 = vunpack.c.l.b16 %v287
      %v352 = vunpack.c.l.b16 %v288
      %v353 = vunpack.c.l.b16 %v289
      %v354 = vunpack.c.l.b16 %v290
      %v355 = vunpack.c.l.b16 %v291
      %v356 = vunpack.c.l.b16 %v292
      %v357 = vunpack.c.l.b16 %v293
      %v358 = vunpack.c.l.b16 %v294
      %v359 = vunpack.c.l.b16 %v295
      %v360 = vunpack.c.l.b16 %v296
      %v361 = vunpack.c.l.b16 %v297
      %v362 = vunpack.c.l.b16 %v298
      %v363 = vunpack.c.l.b16 %v299
      %v364 = vunpack.c.l.b16 %v300
      %v365 = vunpack.c.l.b16 %v301
      %v366 = vunpack.c.l.b16 %v302
      %v367 = vunpack.c.l.b16 %v303
      %v368 = vunpack.c.l.b16 %v304
      %v369 = vunpack.c.l.b16 %v305
      %v370 = vunpack.c.l.b16 %v306
      %v371 = vunpack.c.l.b16 %v307
      %v372 = vunpack.c.l.b16 %v308
      %v373 = vpack.c.b16 %v342, %v341
      %v374 = vpack.c.b16 %v344, %v343
      %v375 = vpack.c.b16 %v346, %v345
      %v376 = vpack.c.b16 %v348, %v347
      %v377 = vpack.c.b16 %v350, %v349
      %v378 = vpack.c.b16 %v352, %v351
      %v379 = vpack.c.b16 %v354, %v353
      %v380 = vpack.c.b16 %v356, %v355
      %v381 = vpack.c.b16 %v358, %v357
      %v382 = vpack.c.b16 %v360, %v359
      %v383 = vpack.c.b16 %v362, %v361
      %v384 = vpack.c.b16 %v364, %v363
      %v385 = vpack.c.b16 %v366, %v365
      %v386 = vpack.c.b16 %v368, %v367
      %v387 = vpack.c.b16 %v370, %v369
      %v388 = vpack.c.b16 %v372, %v371
      %vm405 = vcmask 261120
      %406 = vst.msk [vmem:[#allocation2] sm:$0xff] %vm405, %v373
      %407 = vst.msk [vmem:[#allocation2 + $0x18] sm:$0xff] %vm405, %v374
      %408 = vst.msk [vmem:[#allocation2 + $0x30] sm:$0xff] %vm405, %v375
      %409 = vst.msk [vmem:[#allocation2 + $0x48] sm:$0xff] %vm405, %v376
      %410 = vst.msk [vmem:[#allocation2 + $0x60] sm:$0xff] %vm405, %v377
      %411 = vst.msk [vmem:[#allocation2 + $0x78] sm:$0xff] %vm405, %v378
      %412 = vst.msk [vmem:[#allocation2 + $0x90] sm:$0xff] %vm405, %v379
      %413 = vst.msk [vmem:[#allocation2 + $0xa8] sm:$0xff] %vm405, %v380
      %414 = vst.msk [vmem:[#allocation2 + $0xc0] sm:$0xff] %vm405, %v381
      %415 = vst.msk [vmem:[#allocation2 + $0xd8] sm:$0xff] %vm405, %v382
      %416 = vst.msk [vmem:[#allocation2 + $0xf0] sm:$0xff] %vm405, %v383
      %417 = vst.msk [vmem:[#allocation2 + $0x108] sm:$0xff] %vm405, %v384
      %418 = vst.msk [vmem:[#allocation2 + $0x120] sm:$0xff] %vm405, %v385
      %419 = vst.msk [vmem:[#allocation2 + $0x138] sm:$0xff] %vm405, %v386
      %420 = vst.msk [vmem:[#allocation2 + $0x150] sm:$0xff] %vm405, %v387
      %421 = vst.msk [vmem:[#allocation2 + $0x168] sm:$0xff] %vm405, %v388
      %v422 = vld [vmem:[%s276] sm:$0xf]
      %v423 = vld [vmem:[%s276 + $0x4] sm:$0xf]
      %v424 = vld [vmem:[%s276 + $0x8] sm:$0x1]
      %v425 = vld [vmem:[%s276 + $0xc] sm:$0xf]
      %v426 = vld [vmem:[%s276 + $0x10] sm:$0xf]
      %v427 = vld [vmem:[%s276 + $0x14] sm:$0x1]
      %v428 = vld [vmem:[%s276 + $0x18] sm:$0xf]
      %v429 = vld [vmem:[%s276 + $0x1c] sm:$0xf]
      %v430 = vld [vmem:[%s276 + $0x20] sm:$0x1]
      %v431 = vld [vmem:[%s276 + $0x24] sm:$0xf]
      %v432 = vld [vmem:[%s276 + $0x28] sm:$0xf]
      %v433 = vld [vmem:[%s276 + $0x2c] sm:$0x1]
      %v434 = vld [vmem:[%s276 + $0x30] sm:$0xf]
      %v435 = vld [vmem:[%s276 + $0x34] sm:$0xf]
      %v436 = vld [vmem:[%s276 + $0x38] sm:$0x1]
      %v437 = vld [vmem:[%s276 + $0x3c] sm:$0xf]
      %v438 = vld [vmem:[%s276 + $0x40] sm:$0xf]
      %v439 = vld [vmem:[%s276 + $0x44] sm:$0x1]
      %v440 = vld [vmem:[%s276 + $0x48] sm:$0xf]
      %v441 = vld [vmem:[%s276 + $0x4c] sm:$0xf]
      %v442 = vld [vmem:[%s276 + $0x50] sm:$0x1]
      %v443 = vld [vmem:[%s276 + $0x54] sm:$0xf]
      %v444 = vld [vmem:[%s276 + $0x58] sm:$0xf]
      %v445 = vld [vmem:[%s276 + $0x5c] sm:$0x1]
      %v446 = vld [vmem:[%s276 + $0x60] sm:$0xf]
      %v447 = vld [vmem:[%s276 + $0x64] sm:$0xf]
      %v448 = vld [vmem:[%s276 + $0x68] sm:$0x1]
      %v449 = vld [vmem:[%s276 + $0x6c] sm:$0xf]
      %v450 = vld [vmem:[%s276 + $0x70] sm:$0xf]
      %v451 = vld [vmem:[%s276 + $0x74] sm:$0x1]
      %v452 = vld [vmem:[%s276 + $0x78] sm:$0xf]
      %v453 = vld [vmem:[%s276 + $0x7c] sm:$0xf]
      %v454 = vld [vmem:[%s276 + $0x80] sm:$0x1]
      %v455 = vld [vmem:[%s276 + $0x84] sm:$0xf]
      %v456 = vld [vmem:[%s276 + $0x88] sm:$0xf]
      %v457 = vld [vmem:[%s276 + $0x8c] sm:$0x1]
      %v458 = vld [vmem:[%s276 + $0x90] sm:$0xf]
      %v459 = vld [vmem:[%s276 + $0x94] sm:$0xf]
      %v460 = vld [vmem:[%s276 + $0x98] sm:$0x1]
      %v461 = vld [vmem:[%s276 + $0x9c] sm:$0xf]
      %v462 = vld [vmem:[%s276 + $0xa0] sm:$0xf]
      %v463 = vld [vmem:[%s276 + $0xa4] sm:$0x1]
      %v464 = vld [vmem:[%s276 + $0xa8] sm:$0xf]
      %v465 = vld [vmem:[%s276 + $0xac] sm:$0xf]
      %v466 = vld [vmem:[%s276 + $0xb0] sm:$0x1]
      %v467 = vld [vmem:[%s276 + $0xb4] sm:$0xf]
      %v468 = vld [vmem:[%s276 + $0xb8] sm:$0xf]
      %v469 = vld [vmem:[%s276 + $0xbc] sm:$0x1]
      %vm470 = vsmask.f32 3328
      %vm471 = vsmask.f32 7440
      %vm472 = vmor %vm470, %vm471
      %v474 = vshrl.u32 %v422, 16
      %v476 = vrot.slane %v474, 4
      %v477 = vshll.u32 %v422, 16
      %v479 = vrot.slane %v477, 5
      %v480 = vor.u32 %v476, %v479
      %v481 = vrot.slane %v480, 4
      %v483 = vshll.u32 %v423, 16
      %v485 = vrot.slane %v483, 5
      %v486 = vsel %vm472, %v481, %v485
      %v487 = vshrl.u32 %v423, 16
      %v489 = vrot.slane %v487, 4
      %v490 = vor.u32 %v489, %v485
      %v491 = vrot.slane %v490, 4
      %v493 = vshll.u32 %v424, 16
      %v495 = vrot.slane %v493, 5
      %v496 = vsel %vm472, %v491, %v495
      %v498 = vshrl.u32 %v425, 16
      %v500 = vrot.slane %v498, 4
      %v501 = vshll.u32 %v425, 16
      %v503 = vrot.slane %v501, 5
      %v504 = vor.u32 %v500, %v503
      %v505 = vrot.slane %v504, 4
      %v507 = vshll.u32 %v426, 16
      %v509 = vrot.slane %v507, 5
      %v510 = vsel %vm472, %v505, %v509
      %v511 = vshrl.u32 %v426, 16
      %v513 = vrot.slane %v511, 4
      %v514 = vor.u32 %v513, %v509
      %v515 = vrot.slane %v514, 4
      %v517 = vshll.u32 %v427, 16
      %v519 = vrot.slane %v517, 5
      %v520 = vsel %vm472, %v515, %v519
      %v522 = vshrl.u32 %v428, 16
      %v524 = vrot.slane %v522, 4
      %v525 = vshll.u32 %v428, 16
      %v527 = vrot.slane %v525, 5
      %v528 = vor.u32 %v524, %v527
      %v529 = vrot.slane %v528, 4
      %v531 = vshll.u32 %v429, 16
      %v533 = vrot.slane %v531, 5
      %v534 = vsel %vm472, %v529, %v533
      %v535 = vshrl.u32 %v429, 16
      %v537 = vrot.slane %v535, 4
      %v538 = vor.u32 %v537, %v533
      %v539 = vrot.slane %v538, 4
      %v541 = vshll.u32 %v430, 16
      %v543 = vrot.slane %v541, 5
      %v544 = vsel %vm472, %v539, %v543
      %v546 = vshrl.u32 %v431, 16
      %v548 = vrot.slane %v546, 4
      %v549 = vshll.u32 %v431, 16
      %v551 = vrot.slane %v549, 5
      %v552 = vor.u32 %v548, %v551
      %v553 = vrot.slane %v552, 4
      %v555 = vshll.u32 %v432, 16
      %v557 = vrot.slane %v555, 5
      %v558 = vsel %vm472, %v553, %v557
      %v559 = vshrl.u32 %v432, 16
      %v561 = vrot.slane %v559, 4
      %v562 = vor.u32 %v561, %v557
      %v563 = vrot.slane %v562, 4
      %v565 = vshll.u32 %v433, 16
      %v567 = vrot.slane %v565, 5
      %v568 = vsel %vm472, %v563, %v567
      %v570 = vshrl.u32 %v434, 16
      %v572 = vrot.slane %v570, 4
      %v573 = vshll.u32 %v434, 16
      %v575 = vrot.slane %v573, 5
      %v576 = vor.u32 %v572, %v575
      %v577 = vrot.slane %v576, 4
      %v579 = vshll.u32 %v435, 16
      %v581 = vrot.slane %v579, 5
      %v582 = vsel %vm472, %v577, %v581
      %v583 = vshrl.u32 %v435, 16
      %v585 = vrot.slane %v583, 4
      %v586 = vor.u32 %v585, %v581
      %v587 = vrot.slane %v586, 4
      %v589 = vshll.u32 %v436, 16
      %v591 = vrot.slane %v589, 5
      %v592 = vsel %vm472, %v587, %v591
      %v594 = vshrl.u32 %v437, 16
      %v596 = vrot.slane %v594, 4
      %v597 = vshll.u32 %v437, 16
      %v599 = vrot.slane %v597, 5
      %v600 = vor.u32 %v596, %v599
      %v601 = vrot.slane %v600, 4
      %v603 = vshll.u32 %v438, 16
      %v605 = vrot.slane %v603, 5
      %v606 = vsel %vm472, %v601, %v605
      %v607 = vshrl.u32 %v438, 16
      %v609 = vrot.slane %v607, 4
      %v610 = vor.u32 %v609, %v605
      %v611 = vrot.slane %v610, 4
      %v613 = vshll.u32 %v439, 16
      %v615 = vrot.slane %v613, 5
      %v616 = vsel %vm472, %v611, %v615
      %v618 = vshrl.u32 %v440, 16
      %v620 = vrot.slane %v618, 4
      %v621 = vshll.u32 %v440, 16
      %v623 = vrot.slane %v621, 5
      %v624 = vor.u32 %v620, %v623
      %v625 = vrot.slane %v624, 4
      %v627 = vshll.u32 %v441, 16
      %v629 = vrot.slane %v627, 5
      %v630 = vsel %vm472, %v625, %v629
      %v631 = vshrl.u32 %v441, 16
      %v633 = vrot.slane %v631, 4
      %v634 = vor.u32 %v633, %v629
      %v635 = vrot.slane %v634, 4
      %v637 = vshll.u32 %v442, 16
      %v639 = vrot.slane %v637, 5
      %v640 = vsel %vm472, %v635, %v639
      %v642 = vshrl.u32 %v443, 16
      %v644 = vrot.slane %v642, 4
      %v645 = vshll.u32 %v443, 16
      %v647 = vrot.slane %v645, 5
      %v648 = vor.u32 %v644, %v647
      %v649 = vrot.slane %v648, 4
      %v651 = vshll.u32 %v444, 16
      %v653 = vrot.slane %v651, 5
      %v654 = vsel %vm472, %v649, %v653
      %v655 = vshrl.u32 %v444, 16
      %v657 = vrot.slane %v655, 4
      %v658 = vor.u32 %v657, %v653
      %v659 = vrot.slane %v658, 4
      %v661 = vshll.u32 %v445, 16
      %v663 = vrot.slane %v661, 5
      %v664 = vsel %vm472, %v659, %v663
      %v666 = vshrl.u32 %v446, 16
      %v668 = vrot.slane %v666, 4
      %v669 = vshll.u32 %v446, 16
      %v671 = vrot.slane %v669, 5
      %v672 = vor.u32 %v668, %v671
      %v673 = vrot.slane %v672, 4
      %v675 = vshll.u32 %v447, 16
      %v677 = vrot.slane %v675, 5
      %v678 = vsel %vm472, %v673, %v677
      %v679 = vshrl.u32 %v447, 16
      %v681 = vrot.slane %v679, 4
      %v682 = vor.u32 %v681, %v677
      %v683 = vrot.slane %v682, 4
      %v685 = vshll.u32 %v448, 16
      %v687 = vrot.slane %v685, 5
      %v688 = vsel %vm472, %v683, %v687
      %v690 = vshrl.u32 %v449, 16
      %v692 = vrot.slane %v690, 4
      %v693 = vshll.u32 %v449, 16
      %v695 = vrot.slane %v693, 5
      %v696 = vor.u32 %v692, %v695
      %v697 = vrot.slane %v696, 4
      %v699 = vshll.u32 %v450, 16
      %v701 = vrot.slane %v699, 5
      %v702 = vsel %vm472, %v697, %v701
      %v703 = vshrl.u32 %v450, 16
      %v705 = vrot.slane %v703, 4
      %v706 = vor.u32 %v705, %v701
      %v707 = vrot.slane %v706, 4
      %v709 = vshll.u32 %v451, 16
      %v711 = vrot.slane %v709, 5
      %v712 = vsel %vm472, %v707, %v711
      %v714 = vshrl.u32 %v452, 16
      %v716 = vrot.slane %v714, 4
      %v717 = vshll.u32 %v452, 16
      %v719 = vrot.slane %v717, 5
      %v720 = vor.u32 %v716, %v719
      %v721 = vrot.slane %v720, 4
      %v723 = vshll.u32 %v453, 16
      %v725 = vrot.slane %v723, 5
      %v726 = vsel %vm472, %v721, %v725
      %v727 = vshrl.u32 %v453, 16
      %v729 = vrot.slane %v727, 4
      %v730 = vor.u32 %v729, %v725
      %v731 = vrot.slane %v730, 4
      %v733 = vshll.u32 %v454, 16
      %v735 = vrot.slane %v733, 5
      %v736 = vsel %vm472, %v731, %v735
      %v738 = vshrl.u32 %v455, 16
      %v740 = vrot.slane %v738, 4
      %v741 = vshll.u32 %v455, 16
      %v743 = vrot.slane %v741, 5
      %v744 = vor.u32 %v740, %v743
      %v745 = vrot.slane %v744, 4
      %v747 = vshll.u32 %v456, 16
      %v749 = vrot.slane %v747, 5
      %v750 = vsel %vm472, %v745, %v749
      %v751 = vshrl.u32 %v456, 16
      %v753 = vrot.slane %v751, 4
      %v754 = vor.u32 %v753, %v749
      %v755 = vrot.slane %v754, 4
      %v757 = vshll.u32 %v457, 16
      %v759 = vrot.slane %v757, 5
      %v760 = vsel %vm472, %v755, %v759
      %v762 = vshrl.u32 %v458, 16
      %v764 = vrot.slane %v762, 4
      %v765 = vshll.u32 %v458, 16
      %v767 = vrot.slane %v765, 5
      %v768 = vor.u32 %v764, %v767
      %v769 = vrot.slane %v768, 4
      %v771 = vshll.u32 %v459, 16
      %v773 = vrot.slane %v771, 5
      %v774 = vsel %vm472, %v769, %v773
      %v775 = vshrl.u32 %v459, 16
      %v777 = vrot.slane %v775, 4
      %v778 = vor.u32 %v777, %v773
      %v779 = vrot.slane %v778, 4
      %v781 = vshll.u32 %v460, 16
      %v783 = vrot.slane %v781, 5
      %v784 = vsel %vm472, %v779, %v783
      %v786 = vshrl.u32 %v461, 16
      %v788 = vrot.slane %v786, 4
      %v789 = vshll.u32 %v461, 16
      %v791 = vrot.slane %v789, 5
      %v792 = vor.u32 %v788, %v791
      %v793 = vrot.slane %v792, 4
      %v795 = vshll.u32 %v462, 16
      %v797 = vrot.slane %v795, 5
      %v798 = vsel %vm472, %v793, %v797
      %v799 = vshrl.u32 %v462, 16
      %v801 = vrot.slane %v799, 4
      %v802 = vor.u32 %v801, %v797
      %v803 = vrot.slane %v802, 4
      %v805 = vshll.u32 %v463, 16
      %v807 = vrot.slane %v805, 5
      %v808 = vsel %vm472, %v803, %v807
      %v810 = vshrl.u32 %v464, 16
      %v812 = vrot.slane %v810, 4
      %v813 = vshll.u32 %v464, 16
      %v815 = vrot.slane %v813, 5
      %v816 = vor.u32 %v812, %v815
      %v817 = vrot.slane %v816, 4
      %v819 = vshll.u32 %v465, 16
      %v821 = vrot.slane %v819, 5
      %v822 = vsel %vm472, %v817, %v821
      %v823 = vshrl.u32 %v465, 16
      %v825 = vrot.slane %v823, 4
      %v826 = vor.u32 %v825, %v821
      %v827 = vrot.slane %v826, 4
      %v829 = vshll.u32 %v466, 16
      %v831 = vrot.slane %v829, 5
      %v832 = vsel %vm472, %v827, %v831
      %v834 = vshrl.u32 %v467, 16
      %v836 = vrot.slane %v834, 4
      %v837 = vshll.u32 %v467, 16
      %v839 = vrot.slane %v837, 5
      %v840 = vor.u32 %v836, %v839
      %v841 = vrot.slane %v840, 4
      %v843 = vshll.u32 %v468, 16
      %v845 = vrot.slane %v843, 5
      %v846 = vsel %vm472, %v841, %v845
      %v847 = vshrl.u32 %v468, 16
      %v849 = vrot.slane %v847, 4
      %v850 = vor.u32 %v849, %v845
      %v851 = vrot.slane %v850, 4
      %v853 = vshll.u32 %v469, 16
      %v855 = vrot.slane %v853, 5
      %v856 = vsel %vm472, %v851, %v855
      %v857 = vunpack.c.l.b16 %v486
      %v858 = vunpack.c.l.b16 %v496
      %v859 = vunpack.c.l.b16 %v510
      %v860 = vunpack.c.l.b16 %v520
      %v861 = vunpack.c.l.b16 %v534
      %v862 = vunpack.c.l.b16 %v544
      %v863 = vunpack.c.l.b16 %v558
      %v864 = vunpack.c.l.b16 %v568
      %v865 = vunpack.c.l.b16 %v582
      %v866 = vunpack.c.l.b16 %v592
      %v867 = vunpack.c.l.b16 %v606
      %v868 = vunpack.c.l.b16 %v616
      %v869 = vunpack.c.l.b16 %v630
      %v870 = vunpack.c.l.b16 %v640
      %v871 = vunpack.c.l.b16 %v654
      %v872 = vunpack.c.l.b16 %v664
      %v873 = vunpack.c.l.b16 %v678
      %v874 = vunpack.c.l.b16 %v688
      %v875 = vunpack.c.l.b16 %v702
      %v876 = vunpack.c.l.b16 %v712
      %v877 = vunpack.c.l.b16 %v726
      %v878 = vunpack.c.l.b16 %v736
      %v879 = vunpack.c.l.b16 %v750
      %v880 = vunpack.c.l.b16 %v760
      %v881 = vunpack.c.l.b16 %v774
      %v882 = vunpack.c.l.b16 %v784
      %v883 = vunpack.c.l.b16 %v798
      %v884 = vunpack.c.l.b16 %v808
      %v885 = vunpack.c.l.b16 %v822
      %v886 = vunpack.c.l.b16 %v832
      %v887 = vunpack.c.l.b16 %v846
      %v888 = vunpack.c.l.b16 %v856
      %v889 = vpack.c.b16 %v858, %v857
      %v890 = vpack.c.b16 %v860, %v859
      %v891 = vpack.c.b16 %v862, %v861
      %v892 = vpack.c.b16 %v864, %v863
      %v893 = vpack.c.b16 %v866, %v865
      %v894 = vpack.c.b16 %v868, %v867
      %v895 = vpack.c.b16 %v870, %v869
      %v896 = vpack.c.b16 %v872, %v871
      %v897 = vpack.c.b16 %v874, %v873
      %v898 = vpack.c.b16 %v876, %v875
      %v899 = vpack.c.b16 %v878, %v877
      %v900 = vpack.c.b16 %v880, %v879
      %v901 = vpack.c.b16 %v882, %v881
      %v902 = vpack.c.b16 %v884, %v883
      %v903 = vpack.c.b16 %v886, %v885
      %v904 = vpack.c.b16 %v888, %v887
      %905 = vrot.lane.b32.xlu0 %v889, 32
      %v906 = vpop.permute.xlu0 %905
      %907 = vrot.lane.b32.xlu0 %v890, 32
      %v908 = vpop.permute.xlu0 %907
      %909 = vrot.lane.b32.xlu0 %v891, 32
      %v910 = vpop.permute.xlu0 %909
      %911 = vrot.lane.b32.xlu0 %v892, 32
      %v912 = vpop.permute.xlu0 %911
      %913 = vrot.lane.b32.xlu0 %v893, 32
      %v914 = vpop.permute.xlu0 %913
      %915 = vrot.lane.b32.xlu0 %v894, 32
      %v916 = vpop.permute.xlu0 %915
      %917 = vrot.lane.b32.xlu0 %v895, 32
      %v918 = vpop.permute.xlu0 %917
      %919 = vrot.lane.b32.xlu0 %v896, 32
      %v920 = vpop.permute.xlu0 %919
      %921 = vrot.lane.b32.xlu0 %v897, 32
      %v922 = vpop.permute.xlu0 %921
      %923 = vrot.lane.b32.xlu0 %v898, 32
      %v924 = vpop.permute.xlu0 %923
      %925 = vrot.lane.b32.xlu0 %v899, 32
      %v926 = vpop.permute.xlu0 %925
      %927 = vrot.lane.b32.xlu0 %v900, 32
      %v928 = vpop.permute.xlu0 %927
      %929 = vrot.lane.b32.xlu0 %v901, 32
      %v930 = vpop.permute.xlu0 %929
      %931 = vrot.lane.b32.xlu0 %v902, 32
      %v932 = vpop.permute.xlu0 %931
      %933 = vrot.lane.b32.xlu0 %v903, 32
      %v934 = vpop.permute.xlu0 %933
      %935 = vrot.lane.b32.xlu0 %v904, 32
      %v936 = vpop.permute.xlu0 %935
      %vm953 = vcmask 523520
      %954 = vst.msk [vmem:[#allocation2] sm:$0xff] %vm953, %v906
      %955 = vst.msk [vmem:[#allocation2 + $0x18] sm:$0xff] %vm953, %v908
      %956 = vst.msk [vmem:[#allocation2 + $0x30] sm:$0xff] %vm953, %v910
      %957 = vst.msk [vmem:[#allocation2 + $0x48] sm:$0xff] %vm953, %v912
      %958 = vst.msk [vmem:[#allocation2 + $0x60] sm:$0xff] %vm953, %v914
      %959 = vst.msk [vmem:[#allocation2 + $0x78] sm:$0xff] %vm953, %v916
      %960 = vst.msk [vmem:[#allocation2 + $0x90] sm:$0xff] %vm953, %v918
      %961 = vst.msk [vmem:[#allocation2 + $0xa8] sm:$0xff] %vm953, %v920
      %962 = vst.msk [vmem:[#allocation2 + $0xc0] sm:$0xff] %vm953, %v922
      %963 = vst.msk [vmem:[#allocation2 + $0xd8] sm:$0xff] %vm953, %v924
      %964 = vst.msk [vmem:[#allocation2 + $0xf0] sm:$0xff] %vm953, %v926
      %965 = vst.msk [vmem:[#allocation2 + $0x108] sm:$0xff] %vm953, %v928
      %966 = vst.msk [vmem:[#allocation2 + $0x120] sm:$0xff] %vm953, %v930
      %967 = vst.msk [vmem:[#allocation2 + $0x138] sm:$0xff] %vm953, %v932
      %968 = vst.msk [vmem:[#allocation2 + $0x150] sm:$0xff] %vm953, %v934
      %969 = vst.msk [vmem:[#allocation2 + $0x168] sm:$0xff] %vm953, %v936
      %v970 = vld [vmem:[%s276] sm:$0xe]
      %v971 = vld [vmem:[%s276 + $0x4] sm:$0xf]
      %v972 = vld [vmem:[%s276 + $0x8] sm:$0x1]
      %v973 = vld [vmem:[%s276 + $0xc] sm:$0xe]
      %v974 = vld [vmem:[%s276 + $0x10] sm:$0xf]
      %v975 = vld [vmem:[%s276 + $0x14] sm:$0x1]
      %v976 = vld [vmem:[%s276 + $0x18] sm:$0xe]
      %v977 = vld [vmem:[%s276 + $0x1c] sm:$0xf]
      %v978 = vld [vmem:[%s276 + $0x20] sm:$0x1]
      %v979 = vld [vmem:[%s276 + $0x24] sm:$0xe]
      %v980 = vld [vmem:[%s276 + $0x28] sm:$0xf]
      %v981 = vld [vmem:[%s276 + $0x2c] sm:$0x1]
      %v982 = vld [vmem:[%s276 + $0x30] sm:$0xe]
      %v983 = vld [vmem:[%s276 + $0x34] sm:$0xf]
      %v984 = vld [vmem:[%s276 + $0x38] sm:$0x1]
      %v985 = vld [vmem:[%s276 + $0x3c] sm:$0xe]
      %v986 = vld [vmem:[%s276 + $0x40] sm:$0xf]
      %v987 = vld [vmem:[%s276 + $0x44] sm:$0x1]
      %v988 = vld [vmem:[%s276 + $0x48] sm:$0xe]
      %v989 = vld [vmem:[%s276 + $0x4c] sm:$0xf]
      %v990 = vld [vmem:[%s276 + $0x50] sm:$0x1]
      %v991 = vld [vmem:[%s276 + $0x54] sm:$0xe]
      %v992 = vld [vmem:[%s276 + $0x58] sm:$0xf]
      %v993 = vld [vmem:[%s276 + $0x5c] sm:$0x1]
      %v994 = vld [vmem:[%s276 + $0x60] sm:$0xe]
      %v995 = vld [vmem:[%s276 + $0x64] sm:$0xf]
      %v996 = vld [vmem:[%s276 + $0x68] sm:$0x1]
      %v997 = vld [vmem:[%s276 + $0x6c] sm:$0xe]
      %v998 = vld [vmem:[%s276 + $0x70] sm:$0xf]
      %v999 = vld [vmem:[%s276 + $0x74] sm:$0x1]
      %v1000 = vld [vmem:[%s276 + $0x78] sm:$0xe]
      %v1001 = vld [vmem:[%s276 + $0x7c] sm:$0xf]
      %v1002 = vld [vmem:[%s276 + $0x80] sm:$0x1]
      %v1003 = vld [vmem:[%s276 + $0x84] sm:$0xe]
      %v1004 = vld [vmem:[%s276 + $0x88] sm:$0xf]
      %v1005 = vld [vmem:[%s276 + $0x8c] sm:$0x1]
      %v1006 = vld [vmem:[%s276 + $0x90] sm:$0xe]
      %v1007 = vld [vmem:[%s276 + $0x94] sm:$0xf]
      %v1008 = vld [vmem:[%s276 + $0x98] sm:$0x1]
      %v1009 = vld [vmem:[%s276 + $0x9c] sm:$0xe]
      %v1010 = vld [vmem:[%s276 + $0xa0] sm:$0xf]
      %v1011 = vld [vmem:[%s276 + $0xa4] sm:$0x1]
      %v1012 = vld [vmem:[%s276 + $0xa8] sm:$0xe]
      %v1013 = vld [vmem:[%s276 + $0xac] sm:$0xf]
      %v1014 = vld [vmem:[%s276 + $0xb0] sm:$0x1]
      %v1015 = vld [vmem:[%s276 + $0xb4] sm:$0xe]
      %v1016 = vld [vmem:[%s276 + $0xb8] sm:$0xf]
      %v1017 = vld [vmem:[%s276 + $0xbc] sm:$0x1]
      %vm1066 = vcmask 1042432
      %vm1067 = vcmask 1046532
      %vm1068 = vmor %vm1066, %vm1067
      %v1069 = vrot.slane %v970, 5
      %v1070 = vrot.slane %v1069, 4
      %v1071 = vrot.slane %v971, 5
      %v1072 = vsel %vm1068, %v1070, %v1071
      %v1073 = vrot.slane %v1071, 4
      %v1074 = vrot.slane %v972, 5
      %v1075 = vsel %vm1068, %v1073, %v1074
      %v1076 = vrot.slane %v973, 5
      %v1077 = vrot.slane %v1076, 4
      %v1078 = vrot.slane %v974, 5
      %v1079 = vsel %vm1068, %v1077, %v1078
      %v1080 = vrot.slane %v1078, 4
      %v1081 = vrot.slane %v975, 5
      %v1082 = vsel %vm1068, %v1080, %v1081
      %v1083 = vrot.slane %v976, 5
      %v1084 = vrot.slane %v1083, 4
      %v1085 = vrot.slane %v977, 5
      %v1086 = vsel %vm1068, %v1084, %v1085
      %v1087 = vrot.slane %v1085, 4
      %v1088 = vrot.slane %v978, 5
      %v1089 = vsel %vm1068, %v1087, %v1088
      %v1090 = vrot.slane %v979, 5
      %v1091 = vrot.slane %v1090, 4
      %v1092 = vrot.slane %v980, 5
      %v1093 = vsel %vm1068, %v1091, %v1092
      %v1094 = vrot.slane %v1092, 4
      %v1095 = vrot.slane %v981, 5
      %v1096 = vsel %vm1068, %v1094, %v1095
      %v1097 = vrot.slane %v982, 5
      %v1098 = vrot.slane %v1097, 4
      %v1099 = vrot.slane %v983, 5
      %v1100 = vsel %vm1068, %v1098, %v1099
      %v1101 = vrot.slane %v1099, 4
      %v1102 = vrot.slane %v984, 5
      %v1103 = vsel %vm1068, %v1101, %v1102
      %v1104 = vrot.slane %v985, 5
      %v1105 = vrot.slane %v1104, 4
      %v1106 = vrot.slane %v986, 5
      %v1107 = vsel %vm1068, %v1105, %v1106
      %v1108 = vrot.slane %v1106, 4
      %v1109 = vrot.slane %v987, 5
      %v1110 = vsel %vm1068, %v1108, %v1109
      %v1111 = vrot.slane %v988, 5
      %v1112 = vrot.slane %v1111, 4
      %v1113 = vrot.slane %v989, 5
      %v1114 = vsel %vm1068, %v1112, %v1113
      %v1115 = vrot.slane %v1113, 4
      %v1116 = vrot.slane %v990, 5
      %v1117 = vsel %vm1068, %v1115, %v1116
      %v1118 = vrot.slane %v991, 5
      %v1119 = vrot.slane %v1118, 4
      %v1120 = vrot.slane %v992, 5
      %v1121 = vsel %vm1068, %v1119, %v1120
      %v1122 = vrot.slane %v1120, 4
      %v1123 = vrot.slane %v993, 5
      %v1124 = vsel %vm1068, %v1122, %v1123
      %v1125 = vrot.slane %v994, 5
      %v1126 = vrot.slane %v1125, 4
      %v1127 = vrot.slane %v995, 5
      %v1128 = vsel %vm1068, %v1126, %v1127
      %v1129 = vrot.slane %v1127, 4
      %v1130 = vrot.slane %v996, 5
      %v1131 = vsel %vm1068, %v1129, %v1130
      %v1132 = vrot.slane %v997, 5
      %v1133 = vrot.slane %v1132, 4
      %v1134 = vrot.slane %v998, 5
      %v1135 = vsel %vm1068, %v1133, %v1134
      %v1136 = vrot.slane %v1134, 4
      %v1137 = vrot.slane %v999, 5
      %v1138 = vsel %vm1068, %v1136, %v1137
      %v1139 = vrot.slane %v1000, 5
      %v1140 = vrot.slane %v1139, 4
      %v1141 = vrot.slane %v1001, 5
      %v1142 = vsel %vm1068, %v1140, %v1141
      %v1143 = vrot.slane %v1141, 4
      %v1144 = vrot.slane %v1002, 5
      %v1145 = vsel %vm1068, %v1143, %v1144
      %v1146 = vrot.slane %v1003, 5
      %v1147 = vrot.slane %v1146, 4
      %v1148 = vrot.slane %v1004, 5
      %v1149 = vsel %vm1068, %v1147, %v1148
      %v1150 = vrot.slane %v1148, 4
      %v1151 = vrot.slane %v1005, 5
      %v1152 = vsel %vm1068, %v1150, %v1151
      %v1153 = vrot.slane %v1006, 5
      %v1154 = vrot.slane %v1153, 4
      %v1155 = vrot.slane %v1007, 5
      %v1156 = vsel %vm1068, %v1154, %v1155
      %v1157 = vrot.slane %v1155, 4
      %v1158 = vrot.slane %v1008, 5
      %v1159 = vsel %vm1068, %v1157, %v1158
      %v1160 = vrot.slane %v1009, 5
      %v1161 = vrot.slane %v1160, 4
      %v1162 = vrot.slane %v1010, 5
      %v1163 = vsel %vm1068, %v1161, %v1162
      %v1164 = vrot.slane %v1162, 4
      %v1165 = vrot.slane %v1011, 5
      %v1166 = vsel %vm1068, %v1164, %v1165
      %v1167 = vrot.slane %v1012, 5
      %v1168 = vrot.slane %v1167, 4
      %v1169 = vrot.slane %v1013, 5
      %v1170 = vsel %vm1068, %v1168, %v1169
      %v1171 = vrot.slane %v1169, 4
      %v1172 = vrot.slane %v1014, 5
      %v1173 = vsel %vm1068, %v1171, %v1172
      %v1174 = vrot.slane %v1015, 5
      %v1175 = vrot.slane %v1174, 4
      %v1176 = vrot.slane %v1016, 5
      %v1177 = vsel %vm1068, %v1175, %v1176
      %v1178 = vrot.slane %v1176, 4
      %v1179 = vrot.slane %v1017, 5
      %v1180 = vsel %vm1068, %v1178, %v1179
      %v1181 = vunpack.c.l.b16 %v1072
      %v1182 = vunpack.c.l.b16 %v1075
      %v1183 = vunpack.c.l.b16 %v1079
      %v1184 = vunpack.c.l.b16 %v1082
      %v1185 = vunpack.c.l.b16 %v1086
      %v1186 = vunpack.c.l.b16 %v1089
      %v1187 = vunpack.c.l.b16 %v1093
      %v1188 = vunpack.c.l.b16 %v1096
      %v1189 = vunpack.c.l.b16 %v1100
      %v1190 = vunpack.c.l.b16 %v1103
      %v1191 = vunpack.c.l.b16 %v1107
      %v1192 = vunpack.c.l.b16 %v1110
      %v1193 = vunpack.c.l.b16 %v1114
      %v1194 = vunpack.c.l.b16 %v1117
      %v1195 = vunpack.c.l.b16 %v1121
      %v1196 = vunpack.c.l.b16 %v1124
      %v1197 = vunpack.c.l.b16 %v1128
      %v1198 = vunpack.c.l.b16 %v1131
      %v1199 = vunpack.c.l.b16 %v1135
      %v1200 = vunpack.c.l.b16 %v1138
      %v1201 = vunpack.c.l.b16 %v1142
      %v1202 = vunpack.c.l.b16 %v1145
      %v1203 = vunpack.c.l.b16 %v1149
      %v1204 = vunpack.c.l.b16 %v1152
      %v1205 = vunpack.c.l.b16 %v1156
      %v1206 = vunpack.c.l.b16 %v1159
      %v1207 = vunpack.c.l.b16 %v1163
      %v1208 = vunpack.c.l.b16 %v1166
      %v1209 = vunpack.c.l.b16 %v1170
      %v1210 = vunpack.c.l.b16 %v1173
      %v1211 = vunpack.c.l.b16 %v1177
      %v1212 = vunpack.c.l.b16 %v1180
      %v1213 = vpack.c.b16 %v1182, %v1181
      %v1214 = vpack.c.b16 %v1184, %v1183
      %v1215 = vpack.c.b16 %v1186, %v1185
      %v1216 = vpack.c.b16 %v1188, %v1187
      %v1217 = vpack.c.b16 %v1190, %v1189
      %v1218 = vpack.c.b16 %v1192, %v1191
      %v1219 = vpack.c.b16 %v1194, %v1193
      %v1220 = vpack.c.b16 %v1196, %v1195
      %v1221 = vpack.c.b16 %v1198, %v1197
      %v1222 = vpack.c.b16 %v1200, %v1199
      %v1223 = vpack.c.b16 %v1202, %v1201
      %v1224 = vpack.c.b16 %v1204, %v1203
      %v1225 = vpack.c.b16 %v1206, %v1205
      %v1226 = vpack.c.b16 %v1208, %v1207
      %v1227 = vpack.c.b16 %v1210, %v1209
      %v1228 = vpack.c.b16 %v1212, %v1211
      %1229 = vrot.lane.b32.xlu0 %v1213, 64
      %v1230 = vpop.permute.xlu0 %1229
      %1231 = vrot.lane.b32.xlu0 %v1214, 64
      %v1232 = vpop.permute.xlu0 %1231
      %1233 = vrot.lane.b32.xlu0 %v1215, 64
      %v1234 = vpop.permute.xlu0 %1233
      %1235 = vrot.lane.b32.xlu0 %v1216, 64
      %v1236 = vpop.permute.xlu0 %1235
      %1237 = vrot.lane.b32.xlu0 %v1217, 64
      %v1238 = vpop.permute.xlu0 %1237
      %1239 = vrot.lane.b32.xlu0 %v1218, 64
      %v1240 = vpop.permute.xlu0 %1239
      %1241 = vrot.lane.b32.xlu0 %v1219, 64
      %v1242 = vpop.permute.xlu0 %1241
      %1243 = vrot.lane.b32.xlu0 %v1220, 64
      %v1244 = vpop.permute.xlu0 %1243
      %1245 = vrot.lane.b32.xlu0 %v1221, 64
      %v1246 = vpop.permute.xlu0 %1245
      %1247 = vrot.lane.b32.xlu0 %v1222, 64
      %v1248 = vpop.permute.xlu0 %1247
      %1249 = vrot.lane.b32.xlu0 %v1223, 64
      %v1250 = vpop.permute.xlu0 %1249
      %1251 = vrot.lane.b32.xlu0 %v1224, 64
      %v1252 = vpop.permute.xlu0 %1251
      %1253 = vrot.lane.b32.xlu0 %v1225, 64
      %v1254 = vpop.permute.xlu0 %1253
      %1255 = vrot.lane.b32.xlu0 %v1226, 64
      %v1256 = vpop.permute.xlu0 %1255
      %1257 = vrot.lane.b32.xlu0 %v1227, 64
      %v1258 = vpop.permute.xlu0 %1257
      %1259 = vrot.lane.b32.xlu0 %v1228, 64
      %v1260 = vpop.permute.xlu0 %1259
      %vm1277 = vcmask 785920
      %1278 = vst.msk [vmem:[#allocation2] sm:$0xff] %vm1277, %v1230
      %1279 = vst.msk [vmem:[#allocation2 + $0x18] sm:$0xff] %vm1277, %v1232
      %1280 = vst.msk [vmem:[#allocation2 + $0x30] sm:$0xff] %vm1277, %v1234
      %1281 = vst.msk [vmem:[#allocation2 + $0x48] sm:$0xff] %vm1277, %v1236
      %1282 = vst.msk [vmem:[#allocation2 + $0x60] sm:$0xff] %vm1277, %v1238
      %1283 = vst.msk [vmem:[#allocation2 + $0x78] sm:$0xff] %vm1277, %v1240
      %1284 = vst.msk [vmem:[#allocation2 + $0x90] sm:$0xff] %vm1277, %v1242
      %1285 = vst.msk [vmem:[#allocation2 + $0xa8] sm:$0xff] %vm1277, %v1244
      %1286 = vst.msk [vmem:[#allocation2 + $0xc0] sm:$0xff] %vm1277, %v1246
      %1287 = vst.msk [vmem:[#allocation2 + $0xd8] sm:$0xff] %vm1277, %v1248
      %1288 = vst.msk [vmem:[#allocation2 + $0xf0] sm:$0xff] %vm1277, %v1250
      %1289 = vst.msk [vmem:[#allocation2 + $0x108] sm:$0xff] %vm1277, %v1252
      %1290 = vst.msk [vmem:[#allocation2 + $0x120] sm:$0xff] %vm1277, %v1254
      %1291 = vst.msk [vmem:[#allocation2 + $0x138] sm:$0xff] %vm1277, %v1256
      %1292 = vst.msk [vmem:[#allocation2 + $0x150] sm:$0xff] %vm1277, %v1258
      %1293 = vst.msk [vmem:[#allocation2 + $0x168] sm:$0xff] %vm1277, %v1260
      %s1294 = sadd.s32 %s273, 1
      %s1295 = smul.u32 %s1294, 3
      %s1296 = smul.addr %s1295, 4
      %s1297 = scalar_lea.vmem %s251, %s1296
      %v1298 = vld [vmem:[%s1297] sm:$0xf]
      %v1299 = vld [vmem:[%s1297 + $0x4] sm:$0xf]
      %v1300 = vld [vmem:[%s1297 + $0xc] sm:$0xf]
      %v1301 = vld [vmem:[%s1297 + $0x10] sm:$0xf]
      %v1302 = vld [vmem:[%s1297 + $0x18] sm:$0xf]
      %v1303 = vld [vmem:[%s1297 + $0x1c] sm:$0xf]
      %v1304 = vld [vmem:[%s1297 + $0x24] sm:$0xf]
      %v1305 = vld [vmem:[%s1297 + $0x28] sm:$0xf]
      %v1306 = vld [vmem:[%s1297 + $0x30] sm:$0xf]
      %v1307 = vld [vmem:[%s1297 + $0x34] sm:$0xf]
      %v1308 = vld [vmem:[%s1297 + $0x3c] sm:$0xf]
      %v1309 = vld [vmem:[%s1297 + $0x40] sm:$0xf]
      %v1310 = vld [vmem:[%s1297 + $0x48] sm:$0xf]
      %v1311 = vld [vmem:[%s1297 + $0x4c] sm:$0xf]
      %v1312 = vld [vmem:[%s1297 + $0x54] sm:$0xf]
      %v1313 = vld [vmem:[%s1297 + $0x58] sm:$0xf]
      %v1314 = vld [vmem:[%s1297 + $0x60] sm:$0xf]
      %v1315 = vld [vmem:[%s1297 + $0x64] sm:$0xf]
      %v1316 = vld [vmem:[%s1297 + $0x6c] sm:$0xf]
      %v1317 = vld [vmem:[%s1297 + $0x70] sm:$0xf]
      %v1318 = vld [vmem:[%s1297 + $0x78] sm:$0xf]
      %v1319 = vld [vmem:[%s1297 + $0x7c] sm:$0xf]
      %v1320 = vld [vmem:[%s1297 + $0x84] sm:$0xf]
      %v1321 = vld [vmem:[%s1297 + $0x88] sm:$0xf]
      %v1322 = vld [vmem:[%s1297 + $0x90] sm:$0xf]
      %v1323 = vld [vmem:[%s1297 + $0x94] sm:$0xf]
      %v1324 = vld [vmem:[%s1297 + $0x9c] sm:$0xf]
      %v1325 = vld [vmem:[%s1297 + $0xa0] sm:$0xf]
      %v1326 = vld [vmem:[%s1297 + $0xa8] sm:$0xf]
      %v1327 = vld [vmem:[%s1297 + $0xac] sm:$0xf]
      %v1328 = vld [vmem:[%s1297 + $0xb4] sm:$0xf]
      %v1329 = vld [vmem:[%s1297 + $0xb8] sm:$0xf]
      %v1362 = vunpack.c.l.b16 %v1298
      %v1363 = vunpack.c.l.b16 %v1299
      %v1364 = vunpack.c.l.b16 %v1300
      %v1365 = vunpack.c.l.b16 %v1301
      %v1366 = vunpack.c.l.b16 %v1302
      %v1367 = vunpack.c.l.b16 %v1303
      %v1368 = vunpack.c.l.b16 %v1304
      %v1369 = vunpack.c.l.b16 %v1305
      %v1370 = vunpack.c.l.b16 %v1306
      %v1371 = vunpack.c.l.b16 %v1307
      %v1372 = vunpack.c.l.b16 %v1308
      %v1373 = vunpack.c.l.b16 %v1309
      %v1374 = vunpack.c.l.b16 %v1310
      %v1375 = vunpack.c.l.b16 %v1311
      %v1376 = vunpack.c.l.b16 %v1312
      %v1377 = vunpack.c.l.b16 %v1313
      %v1378 = vunpack.c.l.b16 %v1314
      %v1379 = vunpack.c.l.b16 %v1315
      %v1380 = vunpack.c.l.b16 %v1316
      %v1381 = vunpack.c.l.b16 %v1317
      %v1382 = vunpack.c.l.b16 %v1318
      %v1383 = vunpack.c.l.b16 %v1319
      %v1384 = vunpack.c.l.b16 %v1320
      %v1385 = vunpack.c.l.b16 %v1321
      %v1386 = vunpack.c.l.b16 %v1322
      %v1387 = vunpack.c.l.b16 %v1323
      %v1388 = vunpack.c.l.b16 %v1324
      %v1389 = vunpack.c.l.b16 %v1325
      %v1390 = vunpack.c.l.b16 %v1326
      %v1391 = vunpack.c.l.b16 %v1327
      %v1392 = vunpack.c.l.b16 %v1328
      %v1393 = vunpack.c.l.b16 %v1329
      %v1394 = vpack.c.b16 %v1363, %v1362
      %v1395 = vpack.c.b16 %v1365, %v1364
      %v1396 = vpack.c.b16 %v1367, %v1366
      %v1397 = vpack.c.b16 %v1369, %v1368
      %v1398 = vpack.c.b16 %v1371, %v1370
      %v1399 = vpack.c.b16 %v1373, %v1372
      %v1400 = vpack.c.b16 %v1375, %v1374
      %v1401 = vpack.c.b16 %v1377, %v1376
      %v1402 = vpack.c.b16 %v1379, %v1378
      %v1403 = vpack.c.b16 %v1381, %v1380
      %v1404 = vpack.c.b16 %v1383, %v1382
      %v1405 = vpack.c.b16 %v1385, %v1384
      %v1406 = vpack.c.b16 %v1387, %v1386
      %v1407 = vpack.c.b16 %v1389, %v1388
      %v1408 = vpack.c.b16 %v1391, %v1390
      %v1409 = vpack.c.b16 %v1393, %v1392
      %1410 = vrot.lane.b32.xlu0 %v1394, 96
      %v1411 = vpop.permute.xlu0 %1410
      %1412 = vrot.lane.b32.xlu0 %v1395, 96
      %v1413 = vpop.permute.xlu0 %1412
      %1414 = vrot.lane.b32.xlu0 %v1396, 96
      %v1415 = vpop.permute.xlu0 %1414
      %1416 = vrot.lane.b32.xlu0 %v1397, 96
      %v1417 = vpop.permute.xlu0 %1416
      %1418 = vrot.lane.b32.xlu0 %v1398, 96
      %v1419 = vpop.permute.xlu0 %1418
      %1420 = vrot.lane.b32.xlu0 %v1399, 96
      %v1421 = vpop.permute.xlu0 %1420
      %1422 = vrot.lane.b32.xlu0 %v1400, 96
      %v1423 = vpop.permute.xlu0 %1422
      %1424 = vrot.lane.b32.xlu0 %v1401, 96
      %v1425 = vpop.permute.xlu0 %1424
      %1426 = vrot.lane.b32.xlu0 %v1402, 96
      %v1427 = vpop.permute.xlu0 %1426
      %1428 = vrot.lane.b32.xlu0 %v1403, 96
      %v1429 = vpop.permute.xlu0 %1428
      %1430 = vrot.lane.b32.xlu0 %v1404, 96
      %v1431 = vpop.permute.xlu0 %1430
      %1432 = vrot.lane.b32.xlu0 %v1405, 96
      %v1433 = vpop.permute.xlu0 %1432
      %1434 = vrot.lane.b32.xlu0 %v1406, 96
      %v1435 = vpop.permute.xlu0 %1434
      %1436 = vrot.lane.b32.xlu0 %v1407, 96
      %v1437 = vpop.permute.xlu0 %1436
      %1438 = vrot.lane.b32.xlu0 %v1408, 96
      %v1439 = vpop.permute.xlu0 %1438
      %1440 = vrot.lane.b32.xlu0 %v1409, 96
      %v1441 = vpop.permute.xlu0 %1440
      %vm1458 = vcmask 1048320
      %1459 = vst.msk [vmem:[#allocation2] sm:$0xff] %vm1458, %v1411
      %1460 = vst.msk [vmem:[#allocation2 + $0x18] sm:$0xff] %vm1458, %v1413
      %1461 = vst.msk [vmem:[#allocation2 + $0x30] sm:$0xff] %vm1458, %v1415
      %1462 = vst.msk [vmem:[#allocation2 + $0x48] sm:$0xff] %vm1458, %v1417
      %1463 = vst.msk [vmem:[#allocation2 + $0x60] sm:$0xff] %vm1458, %v1419
      %1464 = vst.msk [vmem:[#allocation2 + $0x78] sm:$0xff] %vm1458, %v1421
      %1465 = vst.msk [vmem:[#allocation2 + $0x90] sm:$0xff] %vm1458, %v1423
      %1466 = vst.msk [vmem:[#allocation2 + $0xa8] sm:$0xff] %vm1458, %v1425
      %1467 = vst.msk [vmem:[#allocation2 + $0xc0] sm:$0xff] %vm1458, %v1427
      %1468 = vst.msk [vmem:[#allocation2 + $0xd8] sm:$0xff] %vm1458, %v1429
      %1469 = vst.msk [vmem:[#allocation2 + $0xf0] sm:$0xff] %vm1458, %v1431
      %1470 = vst.msk [vmem:[#allocation2 + $0x108] sm:$0xff] %vm1458, %v1433
      %1471 = vst.msk [vmem:[#allocation2 + $0x120] sm:$0xff] %vm1458, %v1435
      %1472 = vst.msk [vmem:[#allocation2 + $0x138] sm:$0xff] %vm1458, %v1437
      %1473 = vst.msk [vmem:[#allocation2 + $0x150] sm:$0xff] %vm1458, %v1439
      %1474 = vst.msk [vmem:[#allocation2 + $0x168] sm:$0xff] %vm1458, %v1441
      %v1475 = vld [vmem:[%s1297] sm:$0xf]
      %v1476 = vld [vmem:[%s1297 + $0x4] sm:$0xf]
      %v1477 = vld [vmem:[%s1297 + $0x8] sm:$0x1]
      %v1478 = vld [vmem:[%s1297 + $0xc] sm:$0xf]
      %v1479 = vld [vmem:[%s1297 + $0x10] sm:$0xf]
      %v1480 = vld [vmem:[%s1297 + $0x14] sm:$0x1]
      %v1481 = vld [vmem:[%s1297 + $0x18] sm:$0xf]
      %v1482 = vld [vmem:[%s1297 + $0x1c] sm:$0xf]
      %v1483 = vld [vmem:[%s1297 + $0x20] sm:$0x1]
      %v1484 = vld [vmem:[%s1297 + $0x24] sm:$0xf]
      %v1485 = vld [vmem:[%s1297 + $0x28] sm:$0xf]
      %v1486 = vld [vmem:[%s1297 + $0x2c] sm:$0x1]
      %v1487 = vld [vmem:[%s1297 + $0x30] sm:$0xf]
      %v1488 = vld [vmem:[%s1297 + $0x34] sm:$0xf]
      %v1489 = vld [vmem:[%s1297 + $0x38] sm:$0x1]
      %v1490 = vld [vmem:[%s1297 + $0x3c] sm:$0xf]
      %v1491 = vld [vmem:[%s1297 + $0x40] sm:$0xf]
      %v1492 = vld [vmem:[%s1297 + $0x44] sm:$0x1]
      %v1493 = vld [vmem:[%s1297 + $0x48] sm:$0xf]
      %v1494 = vld [vmem:[%s1297 + $0x4c] sm:$0xf]
      %v1495 = vld [vmem:[%s1297 + $0x50] sm:$0x1]
      %v1496 = vld [vmem:[%s1297 + $0x54] sm:$0xf]
      %v1497 = vld [vmem:[%s1297 + $0x58] sm:$0xf]
      %v1498 = vld [vmem:[%s1297 + $0x5c] sm:$0x1]
      %v1499 = vld [vmem:[%s1297 + $0x60] sm:$0xf]
      %v1500 = vld [vmem:[%s1297 + $0x64] sm:$0xf]
      %v1501 = vld [vmem:[%s1297 + $0x68] sm:$0x1]
      %v1502 = vld [vmem:[%s1297 + $0x6c] sm:$0xf]
      %v1503 = vld [vmem:[%s1297 + $0x70] sm:$0xf]
      %v1504 = vld [vmem:[%s1297 + $0x74] sm:$0x1]
      %v1505 = vld [vmem:[%s1297 + $0x78] sm:$0xf]
      %v1506 = vld [vmem:[%s1297 + $0x7c] sm:$0xf]
      %v1507 = vld [vmem:[%s1297 + $0x80] sm:$0x1]
      %v1508 = vld [vmem:[%s1297 + $0x84] sm:$0xf]
      %v1509 = vld [vmem:[%s1297 + $0x88] sm:$0xf]
      %v1510 = vld [vmem:[%s1297 + $0x8c] sm:$0x1]
      %v1511 = vld [vmem:[%s1297 + $0x90] sm:$0xf]
      %v1512 = vld [vmem:[%s1297 + $0x94] sm:$0xf]
      %v1513 = vld [vmem:[%s1297 + $0x98] sm:$0x1]
      %v1514 = vld [vmem:[%s1297 + $0x9c] sm:$0xf]
      %v1515 = vld [vmem:[%s1297 + $0xa0] sm:$0xf]
      %v1516 = vld [vmem:[%s1297 + $0xa4] sm:$0x1]
      %v1517 = vld [vmem:[%s1297 + $0xa8] sm:$0xf]
      %v1518 = vld [vmem:[%s1297 + $0xac] sm:$0xf]
      %v1519 = vld [vmem:[%s1297 + $0xb0] sm:$0x1]
      %v1520 = vld [vmem:[%s1297 + $0xb4] sm:$0xf]
      %v1521 = vld [vmem:[%s1297 + $0xb8] sm:$0xf]
      %v1522 = vld [vmem:[%s1297 + $0xbc] sm:$0x1]
      %v1524 = vshrl.u32 %v1475, 16
      %v1526 = vrot.slane %v1524, 4
      %v1527 = vshll.u32 %v1475, 16
      %v1529 = vrot.slane %v1527, 5
      %v1530 = vor.u32 %v1526, %v1529
      %v1531 = vrot.slane %v1530, 4
      %v1533 = vshll.u32 %v1476, 16
      %v1535 = vrot.slane %v1533, 5
      %v1536 = vsel %vm472, %v1531, %v1535
      %v1537 = vshrl.u32 %v1476, 16
      %v1539 = vrot.slane %v1537, 4
      %v1540 = vor.u32 %v1539, %v1535
      %v1541 = vrot.slane %v1540, 4
      %v1543 = vshll.u32 %v1477, 16
      %v1545 = vrot.slane %v1543, 5
      %v1546 = vsel %vm472, %v1541, %v1545
      %v1548 = vshrl.u32 %v1478, 16
      %v1550 = vrot.slane %v1548, 4
      %v1551 = vshll.u32 %v1478, 16
      %v1553 = vrot.slane %v1551, 5
      %v1554 = vor.u32 %v1550, %v1553
      %v1555 = vrot.slane %v1554, 4
      %v1557 = vshll.u32 %v1479, 16
      %v1559 = vrot.slane %v1557, 5
      %v1560 = vsel %vm472, %v1555, %v1559
      %v1561 = vshrl.u32 %v1479, 16
      %v1563 = vrot.slane %v1561, 4
      %v1564 = vor.u32 %v1563, %v1559
      %v1565 = vrot.slane %v1564, 4
      %v1567 = vshll.u32 %v1480, 16
      %v1569 = vrot.slane %v1567, 5
      %v1570 = vsel %vm472, %v1565, %v1569
      %v1572 = vshrl.u32 %v1481, 16
      %v1574 = vrot.slane %v1572, 4
      %v1575 = vshll.u32 %v1481, 16
      %v1577 = vrot.slane %v1575, 5
      %v1578 = vor.u32 %v1574, %v1577
      %v1579 = vrot.slane %v1578, 4
      %v1581 = vshll.u32 %v1482, 16
      %v1583 = vrot.slane %v1581, 5
      %v1584 = vsel %vm472, %v1579, %v1583
      %v1585 = vshrl.u32 %v1482, 16
      %v1587 = vrot.slane %v1585, 4
      %v1588 = vor.u32 %v1587, %v1583
      %v1589 = vrot.slane %v1588, 4
      %v1591 = vshll.u32 %v1483, 16
      %v1593 = vrot.slane %v1591, 5
      %v1594 = vsel %vm472, %v1589, %v1593
      %v1596 = vshrl.u32 %v1484, 16
      %v1598 = vrot.slane %v1596, 4
      %v1599 = vshll.u32 %v1484, 16
      %v1601 = vrot.slane %v1599, 5
      %v1602 = vor.u32 %v1598, %v1601
      %v1603 = vrot.slane %v1602, 4
      %v1605 = vshll.u32 %v1485, 16
      %v1607 = vrot.slane %v1605, 5
      %v1608 = vsel %vm472, %v1603, %v1607
      %v1609 = vshrl.u32 %v1485, 16
      %v1611 = vrot.slane %v1609, 4
      %v1612 = vor.u32 %v1611, %v1607
      %v1613 = vrot.slane %v1612, 4
      %v1615 = vshll.u32 %v1486, 16
      %v1617 = vrot.slane %v1615, 5
      %v1618 = vsel %vm472, %v1613, %v1617
      %v1620 = vshrl.u32 %v1487, 16
      %v1622 = vrot.slane %v1620, 4
      %v1623 = vshll.u32 %v1487, 16
      %v1625 = vrot.slane %v1623, 5
      %v1626 = vor.u32 %v1622, %v1625
      %v1627 = vrot.slane %v1626, 4
      %v1629 = vshll.u32 %v1488, 16
      %v1631 = vrot.slane %v1629, 5
      %v1632 = vsel %vm472, %v1627, %v1631
      %v1633 = vshrl.u32 %v1488, 16
      %v1635 = vrot.slane %v1633, 4
      %v1636 = vor.u32 %v1635, %v1631
      %v1637 = vrot.slane %v1636, 4
      %v1639 = vshll.u32 %v1489, 16
      %v1641 = vrot.slane %v1639, 5
      %v1642 = vsel %vm472, %v1637, %v1641
      %v1644 = vshrl.u32 %v1490, 16
      %v1646 = vrot.slane %v1644, 4
      %v1647 = vshll.u32 %v1490, 16
      %v1649 = vrot.slane %v1647, 5
      %v1650 = vor.u32 %v1646, %v1649
      %v1651 = vrot.slane %v1650, 4
      %v1653 = vshll.u32 %v1491, 16
      %v1655 = vrot.slane %v1653, 5
      %v1656 = vsel %vm472, %v1651, %v1655
      %v1657 = vshrl.u32 %v1491, 16
      %v1659 = vrot.slane %v1657, 4
      %v1660 = vor.u32 %v1659, %v1655
      %v1661 = vrot.slane %v1660, 4
      %v1663 = vshll.u32 %v1492, 16
      %v1665 = vrot.slane %v1663, 5
      %v1666 = vsel %vm472, %v1661, %v1665
      %v1668 = vshrl.u32 %v1493, 16
      %v1670 = vrot.slane %v1668, 4
      %v1671 = vshll.u32 %v1493, 16
      %v1673 = vrot.slane %v1671, 5
      %v1674 = vor.u32 %v1670, %v1673
      %v1675 = vrot.slane %v1674, 4
      %v1677 = vshll.u32 %v1494, 16
      %v1679 = vrot.slane %v1677, 5
      %v1680 = vsel %vm472, %v1675, %v1679
      %v1681 = vshrl.u32 %v1494, 16
      %v1683 = vrot.slane %v1681, 4
      %v1684 = vor.u32 %v1683, %v1679
      %v1685 = vrot.slane %v1684, 4
      %v1687 = vshll.u32 %v1495, 16
      %v1689 = vrot.slane %v1687, 5
      %v1690 = vsel %vm472, %v1685, %v1689
      %v1692 = vshrl.u32 %v1496, 16
      %v1694 = vrot.slane %v1692, 4
      %v1695 = vshll.u32 %v1496, 16
      %v1697 = vrot.slane %v1695, 5
      %v1698 = vor.u32 %v1694, %v1697
      %v1699 = vrot.slane %v1698, 4
      %v1701 = vshll.u32 %v1497, 16
      %v1703 = vrot.slane %v1701, 5
      %v1704 = vsel %vm472, %v1699, %v1703
      %v1705 = vshrl.u32 %v1497, 16
      %v1707 = vrot.slane %v1705, 4
      %v1708 = vor.u32 %v1707, %v1703
      %v1709 = vrot.slane %v1708, 4
      %v1711 = vshll.u32 %v1498, 16
      %v1713 = vrot.slane %v1711, 5
      %v1714 = vsel %vm472, %v1709, %v1713
      %v1716 = vshrl.u32 %v1499, 16
      %v1718 = vrot.slane %v1716, 4
      %v1719 = vshll.u32 %v1499, 16
      %v1721 = vrot.slane %v1719, 5
      %v1722 = vor.u32 %v1718, %v1721
      %v1723 = vrot.slane %v1722, 4
      %v1725 = vshll.u32 %v1500, 16
      %v1727 = vrot.slane %v1725, 5
      %v1728 = vsel %vm472, %v1723, %v1727
      %v1729 = vshrl.u32 %v1500, 16
      %v1731 = vrot.slane %v1729, 4
      %v1732 = vor.u32 %v1731, %v1727
      %v1733 = vrot.slane %v1732, 4
      %v1735 = vshll.u32 %v1501, 16
      %v1737 = vrot.slane %v1735, 5
      %v1738 = vsel %vm472, %v1733, %v1737
      %v1740 = vshrl.u32 %v1502, 16
      %v1742 = vrot.slane %v1740, 4
      %v1743 = vshll.u32 %v1502, 16
      %v1745 = vrot.slane %v1743, 5
      %v1746 = vor.u32 %v1742, %v1745
      %v1747 = vrot.slane %v1746, 4
      %v1749 = vshll.u32 %v1503, 16
      %v1751 = vrot.slane %v1749, 5
      %v1752 = vsel %vm472, %v1747, %v1751
      %v1753 = vshrl.u32 %v1503, 16
      %v1755 = vrot.slane %v1753, 4
      %v1756 = vor.u32 %v1755, %v1751
      %v1757 = vrot.slane %v1756, 4
      %v1759 = vshll.u32 %v1504, 16
      %v1761 = vrot.slane %v1759, 5
      %v1762 = vsel %vm472, %v1757, %v1761
      %v1764 = vshrl.u32 %v1505, 16
      %v1766 = vrot.slane %v1764, 4
      %v1767 = vshll.u32 %v1505, 16
      %v1769 = vrot.slane %v1767, 5
      %v1770 = vor.u32 %v1766, %v1769
      %v1771 = vrot.slane %v1770, 4
      %v1773 = vshll.u32 %v1506, 16
      %v1775 = vrot.slane %v1773, 5
      %v1776 = vsel %vm472, %v1771, %v1775
      %v1777 = vshrl.u32 %v1506, 16
      %v1779 = vrot.slane %v1777, 4
      %v1780 = vor.u32 %v1779, %v1775
      %v1781 = vrot.slane %v1780, 4
      %v1783 = vshll.u32 %v1507, 16
      %v1785 = vrot.slane %v1783, 5
      %v1786 = vsel %vm472, %v1781, %v1785
      %v1788 = vshrl.u32 %v1508, 16
      %v1790 = vrot.slane %v1788, 4
      %v1791 = vshll.u32 %v1508, 16
      %v1793 = vrot.slane %v1791, 5
      %v1794 = vor.u32 %v1790, %v1793
      %v1795 = vrot.slane %v1794, 4
      %v1797 = vshll.u32 %v1509, 16
      %v1799 = vrot.slane %v1797, 5
      %v1800 = vsel %vm472, %v1795, %v1799
      %v1801 = vshrl.u32 %v1509, 16
      %v1803 = vrot.slane %v1801, 4
      %v1804 = vor.u32 %v1803, %v1799
      %v1805 = vrot.slane %v1804, 4
      %v1807 = vshll.u32 %v1510, 16
      %v1809 = vrot.slane %v1807, 5
      %v1810 = vsel %vm472, %v1805, %v1809
      %v1812 = vshrl.u32 %v1511, 16
      %v1814 = vrot.slane %v1812, 4
      %v1815 = vshll.u32 %v1511, 16
      %v1817 = vrot.slane %v1815, 5
      %v1818 = vor.u32 %v1814, %v1817
      %v1819 = vrot.slane %v1818, 4
      %v1821 = vshll.u32 %v1512, 16
      %v1823 = vrot.slane %v1821, 5
      %v1824 = vsel %vm472, %v1819, %v1823
      %v1825 = vshrl.u32 %v1512, 16
      %v1827 = vrot.slane %v1825, 4
      %v1828 = vor.u32 %v1827, %v1823
      %v1829 = vrot.slane %v1828, 4
      %v1831 = vshll.u32 %v1513, 16
      %v1833 = vrot.slane %v1831, 5
      %v1834 = vsel %vm472, %v1829, %v1833
      %v1836 = vshrl.u32 %v1514, 16
      %v1838 = vrot.slane %v1836, 4
      %v1839 = vshll.u32 %v1514, 16
      %v1841 = vrot.slane %v1839, 5
      %v1842 = vor.u32 %v1838, %v1841
      %v1843 = vrot.slane %v1842, 4
      %v1845 = vshll.u32 %v1515, 16
      %v1847 = vrot.slane %v1845, 5
      %v1848 = vsel %vm472, %v1843, %v1847
      %v1849 = vshrl.u32 %v1515, 16
      %v1851 = vrot.slane %v1849, 4
      %v1852 = vor.u32 %v1851, %v1847
      %v1853 = vrot.slane %v1852, 4
      %v1855 = vshll.u32 %v1516, 16
      %v1857 = vrot.slane %v1855, 5
      %v1858 = vsel %vm472, %v1853, %v1857
      %v1860 = vshrl.u32 %v1517, 16
      %v1862 = vrot.slane %v1860, 4
      %v1863 = vshll.u32 %v1517, 16
      %v1865 = vrot.slane %v1863, 5
      %v1866 = vor.u32 %v1862, %v1865
      %v1867 = vrot.slane %v1866, 4
      %v1869 = vshll.u32 %v1518, 16
      %v1871 = vrot.slane %v1869, 5
      %v1872 = vsel %vm472, %v1867, %v1871
      %v1873 = vshrl.u32 %v1518, 16
      %v1875 = vrot.slane %v1873, 4
      %v1876 = vor.u32 %v1875, %v1871
      %v1877 = vrot.slane %v1876, 4
      %v1879 = vshll.u32 %v1519, 16
      %v1881 = vrot.slane %v1879, 5
      %v1882 = vsel %vm472, %v1877, %v1881
      %v1884 = vshrl.u32 %v1520, 16
      %v1886 = vrot.slane %v1884, 4
      %v1887 = vshll.u32 %v1520, 16
      %v1889 = vrot.slane %v1887, 5
      %v1890 = vor.u32 %v1886, %v1889
      %v1891 = vrot.slane %v1890, 4
      %v1893 = vshll.u32 %v1521, 16
      %v1895 = vrot.slane %v1893, 5
      %v1896 = vsel %vm472, %v1891, %v1895
      %v1897 = vshrl.u32 %v1521, 16
      %v1899 = vrot.slane %v1897, 4
      %v1900 = vor.u32 %v1899, %v1895
      %v1901 = vrot.slane %v1900, 4
      %v1903 = vshll.u32 %v1522, 16
      %v1905 = vrot.slane %v1903, 5
      %v1906 = vsel %vm472, %v1901, %v1905
      %v1907 = vunpack.c.l.b16 %v1536
      %v1908 = vunpack.c.l.b16 %v1546
      %v1909 = vunpack.c.l.b16 %v1560
      %v1910 = vunpack.c.l.b16 %v1570
      %v1911 = vunpack.c.l.b16 %v1584
      %v1912 = vunpack.c.l.b16 %v1594
      %v1913 = vunpack.c.l.b16 %v1608
      %v1914 = vunpack.c.l.b16 %v1618
      %v1915 = vunpack.c.l.b16 %v1632
      %v1916 = vunpack.c.l.b16 %v1642
      %v1917 = vunpack.c.l.b16 %v1656
      %v1918 = vunpack.c.l.b16 %v1666
      %v1919 = vunpack.c.l.b16 %v1680
      %v1920 = vunpack.c.l.b16 %v1690
      %v1921 = vunpack.c.l.b16 %v1704
      %v1922 = vunpack.c.l.b16 %v1714
      %v1923 = vunpack.c.l.b16 %v1728
      %v1924 = vunpack.c.l.b16 %v1738
      %v1925 = vunpack.c.l.b16 %v1752
      %v1926 = vunpack.c.l.b16 %v1762
      %v1927 = vunpack.c.l.b16 %v1776
      %v1928 = vunpack.c.l.b16 %v1786
      %v1929 = vunpack.c.l.b16 %v1800
      %v1930 = vunpack.c.l.b16 %v1810
      %v1931 = vunpack.c.l.b16 %v1824
      %v1932 = vunpack.c.l.b16 %v1834
      %v1933 = vunpack.c.l.b16 %v1848
      %v1934 = vunpack.c.l.b16 %v1858
      %v1935 = vunpack.c.l.b16 %v1872
      %v1936 = vunpack.c.l.b16 %v1882
      %v1937 = vunpack.c.l.b16 %v1896
      %v1938 = vunpack.c.l.b16 %v1906
      %v1939 = vpack.c.b16 %v1908, %v1907
      %v1940 = vpack.c.b16 %v1910, %v1909
      %v1941 = vpack.c.b16 %v1912, %v1911
      %v1942 = vpack.c.b16 %v1914, %v1913
      %v1943 = vpack.c.b16 %v1916, %v1915
      %v1944 = vpack.c.b16 %v1918, %v1917
      %v1945 = vpack.c.b16 %v1920, %v1919
      %v1946 = vpack.c.b16 %v1922, %v1921
      %v1947 = vpack.c.b16 %v1924, %v1923
      %v1948 = vpack.c.b16 %v1926, %v1925
      %v1949 = vpack.c.b16 %v1928, %v1927
      %v1950 = vpack.c.b16 %v1930, %v1929
      %v1951 = vpack.c.b16 %v1932, %v1931
      %v1952 = vpack.c.b16 %v1934, %v1933
      %v1953 = vpack.c.b16 %v1936, %v1935
      %v1954 = vpack.c.b16 %v1938, %v1937
      %1971 = vst.msk [vmem:[#allocation2 + $0x8] sm:$0xff] %vm405, %v1939
      %1972 = vst.msk [vmem:[#allocation2 + $0x20] sm:$0xff] %vm405, %v1940
      %1973 = vst.msk [vmem:[#allocation2 + $0x38] sm:$0xff] %vm405, %v1941
      %1974 = vst.msk [vmem:[#allocation2 + $0x50] sm:$0xff] %vm405, %v1942
      %1975 = vst.msk [vmem:[#allocation2 + $0x68] sm:$0xff] %vm405, %v1943
      %1976 = vst.msk [vmem:[#allocation2 + $0x80] sm:$0xff] %vm405, %v1944
      %1977 = vst.msk [vmem:[#allocation2 + $0x98] sm:$0xff] %vm405, %v1945
      %1978 = vst.msk [vmem:[#allocation2 + $0xb0] sm:$0xff] %vm405, %v1946
      %1979 = vst.msk [vmem:[#allocation2 + $0xc8] sm:$0xff] %vm405, %v1947
      %1980 = vst.msk [vmem:[#allocation2 + $0xe0] sm:$0xff] %vm405, %v1948
      %1981 = vst.msk [vmem:[#allocation2 + $0xf8] sm:$0xff] %vm405, %v1949
      %1982 = vst.msk [vmem:[#allocation2 + $0x110] sm:$0xff] %vm405, %v1950
      %1983 = vst.msk [vmem:[#allocation2 + $0x128] sm:$0xff] %vm405, %v1951
      %1984 = vst.msk [vmem:[#allocation2 + $0x140] sm:$0xff] %vm405, %v1952
      %1985 = vst.msk [vmem:[#allocation2 + $0x158] sm:$0xff] %vm405, %v1953
      %1986 = vst.msk [vmem:[#allocation2 + $0x170] sm:$0xff] %vm405, %v1954
      %v1987 = vld [vmem:[%s1297] sm:$0xe]
      %v1988 = vld [vmem:[%s1297 + $0x4] sm:$0xf]
      %v1989 = vld [vmem:[%s1297 + $0x8] sm:$0x1]
      %v1990 = vld [vmem:[%s1297 + $0xc] sm:$0xe]
      %v1991 = vld [vmem:[%s1297 + $0x10] sm:$0xf]
      %v1992 = vld [vmem:[%s1297 + $0x14] sm:$0x1]
      %v1993 = vld [vmem:[%s1297 + $0x18] sm:$0xe]
      %v1994 = vld [vmem:[%s1297 + $0x1c] sm:$0xf]
      %v1995 = vld [vmem:[%s1297 + $0x20] sm:$0x1]
      %v1996 = vld [vmem:[%s1297 + $0x24] sm:$0xe]
      %v1997 = vld [vmem:[%s1297 + $0x28] sm:$0xf]
      %v1998 = vld [vmem:[%s1297 + $0x2c] sm:$0x1]
      %v1999 = vld [vmem:[%s1297 + $0x30] sm:$0xe]
      %v2000 = vld [vmem:[%s1297 + $0x34] sm:$0xf]
      %v2001 = vld [vmem:[%s1297 + $0x38] sm:$0x1]
      %v2002 = vld [vmem:[%s1297 + $0x3c] sm:$0xe]
      %v2003 = vld [vmem:[%s1297 + $0x40] sm:$0xf]
      %v2004 = vld [vmem:[%s1297 + $0x44] sm:$0x1]
      %v2005 = vld [vmem:[%s1297 + $0x48] sm:$0xe]
      %v2006 = vld [vmem:[%s1297 + $0x4c] sm:$0xf]
      %v2007 = vld [vmem:[%s1297 + $0x50] sm:$0x1]
      %v2008 = vld [vmem:[%s1297 + $0x54] sm:$0xe]
      %v2009 = vld [vmem:[%s1297 + $0x58] sm:$0xf]
      %v2010 = vld [vmem:[%s1297 + $0x5c] sm:$0x1]
      %v2011 = vld [vmem:[%s1297 + $0x60] sm:$0xe]
      %v2012 = vld [vmem:[%s1297 + $0x64] sm:$0xf]
      %v2013 = vld [vmem:[%s1297 + $0x68] sm:$0x1]
      %v2014 = vld [vmem:[%s1297 + $0x6c] sm:$0xe]
      %v2015 = vld [vmem:[%s1297 + $0x70] sm:$0xf]
      %v2016 = vld [vmem:[%s1297 + $0x74] sm:$0x1]
      %v2017 = vld [vmem:[%s1297 + $0x78] sm:$0xe]
      %v2018 = vld [vmem:[%s1297 + $0x7c] sm:$0xf]
      %v2019 = vld [vmem:[%s1297 + $0x80] sm:$0x1]
      %v2020 = vld [vmem:[%s1297 + $0x84] sm:$0xe]
      %v2021 = vld [vmem:[%s1297 + $0x88] sm:$0xf]
      %v2022 = vld [vmem:[%s1297 + $0x8c] sm:$0x1]
      %v2023 = vld [vmem:[%s1297 + $0x90] sm:$0xe]
      %v2024 = vld [vmem:[%s1297 + $0x94] sm:$0xf]
      %v2025 = vld [vmem:[%s1297 + $0x98] sm:$0x1]
      %v2026 = vld [vmem:[%s1297 + $0x9c] sm:$0xe]
      %v2027 = vld [vmem:[%s1297 + $0xa0] sm:$0xf]
      %v2028 = vld [vmem:[%s1297 + $0xa4] sm:$0x1]
      %v2029 = vld [vmem:[%s1297 + $0xa8] sm:$0xe]
      %v2030 = vld [vmem:[%s1297 + $0xac] sm:$0xf]
      %v2031 = vld [vmem:[%s1297 + $0xb0] sm:$0x1]
      %v2032 = vld [vmem:[%s1297 + $0xb4] sm:$0xe]
      %v2033 = vld [vmem:[%s1297 + $0xb8] sm:$0xf]
      %v2034 = vld [vmem:[%s1297 + $0xbc] sm:$0x1]
      %v2083 = vrot.slane %v1987, 5
      %v2084 = vrot.slane %v2083, 4
      %v2085 = vrot.slane %v1988, 5
      %v2086 = vsel %vm1068, %v2084, %v2085
      %v2087 = vrot.slane %v2085, 4
      %v2088 = vrot.slane %v1989, 5
      %v2089 = vsel %vm1068, %v2087, %v2088
      %v2090 = vrot.slane %v1990, 5
      %v2091 = vrot.slane %v2090, 4
      %v2092 = vrot.slane %v1991, 5
      %v2093 = vsel %vm1068, %v2091, %v2092
      %v2094 = vrot.slane %v2092, 4
      %v2095 = vrot.slane %v1992, 5
      %v2096 = vsel %vm1068, %v2094, %v2095
      %v2097 = vrot.slane %v1993, 5
      %v2098 = vrot.slane %v2097, 4
      %v2099 = vrot.slane %v1994, 5
      %v2100 = vsel %vm1068, %v2098, %v2099
      %v2101 = vrot.slane %v2099, 4
      %v2102 = vrot.slane %v1995, 5
      %v2103 = vsel %vm1068, %v2101, %v2102
      %v2104 = vrot.slane %v1996, 5
      %v2105 = vrot.slane %v2104, 4
      %v2106 = vrot.slane %v1997, 5
      %v2107 = vsel %vm1068, %v2105, %v2106
      %v2108 = vrot.slane %v2106, 4
      %v2109 = vrot.slane %v1998, 5
      %v2110 = vsel %vm1068, %v2108, %v2109
      %v2111 = vrot.slane %v1999, 5
      %v2112 = vrot.slane %v2111, 4
      %v2113 = vrot.slane %v2000, 5
      %v2114 = vsel %vm1068, %v2112, %v2113
      %v2115 = vrot.slane %v2113, 4
      %v2116 = vrot.slane %v2001, 5
      %v2117 = vsel %vm1068, %v2115, %v2116
      %v2118 = vrot.slane %v2002, 5
      %v2119 = vrot.slane %v2118, 4
      %v2120 = vrot.slane %v2003, 5
      %v2121 = vsel %vm1068, %v2119, %v2120
      %v2122 = vrot.slane %v2120, 4
      %v2123 = vrot.slane %v2004, 5
      %v2124 = vsel %vm1068, %v2122, %v2123
      %v2125 = vrot.slane %v2005, 5
      %v2126 = vrot.slane %v2125, 4
      %v2127 = vrot.slane %v2006, 5
      %v2128 = vsel %vm1068, %v2126, %v2127
      %v2129 = vrot.slane %v2127, 4
      %v2130 = vrot.slane %v2007, 5
      %v2131 = vsel %vm1068, %v2129, %v2130
      %v2132 = vrot.slane %v2008, 5
      %v2133 = vrot.slane %v2132, 4
      %v2134 = vrot.slane %v2009, 5
      %v2135 = vsel %vm1068, %v2133, %v2134
      %v2136 = vrot.slane %v2134, 4
      %v2137 = vrot.slane %v2010, 5
      %v2138 = vsel %vm1068, %v2136, %v2137
      %v2139 = vrot.slane %v2011, 5
      %v2140 = vrot.slane %v2139, 4
      %v2141 = vrot.slane %v2012, 5
      %v2142 = vsel %vm1068, %v2140, %v2141
      %v2143 = vrot.slane %v2141, 4
      %v2144 = vrot.slane %v2013, 5
      %v2145 = vsel %vm1068, %v2143, %v2144
      %v2146 = vrot.slane %v2014, 5
      %v2147 = vrot.slane %v2146, 4
      %v2148 = vrot.slane %v2015, 5
      %v2149 = vsel %vm1068, %v2147, %v2148
      %v2150 = vrot.slane %v2148, 4
      %v2151 = vrot.slane %v2016, 5
      %v2152 = vsel %vm1068, %v2150, %v2151
      %v2153 = vrot.slane %v2017, 5
      %v2154 = vrot.slane %v2153, 4
      %v2155 = vrot.slane %v2018, 5
      %v2156 = vsel %vm1068, %v2154, %v2155
      %v2157 = vrot.slane %v2155, 4
      %v2158 = vrot.slane %v2019, 5
      %v2159 = vsel %vm1068, %v2157, %v2158
      %v2160 = vrot.slane %v2020, 5
      %v2161 = vrot.slane %v2160, 4
      %v2162 = vrot.slane %v2021, 5
      %v2163 = vsel %vm1068, %v2161, %v2162
      %v2164 = vrot.slane %v2162, 4
      %v2165 = vrot.slane %v2022, 5
      %v2166 = vsel %vm1068, %v2164, %v2165
      %v2167 = vrot.slane %v2023, 5
      %v2168 = vrot.slane %v2167, 4
      %v2169 = vrot.slane %v2024, 5
      %v2170 = vsel %vm1068, %v2168, %v2169
      %v2171 = vrot.slane %v2169, 4
      %v2172 = vrot.slane %v2025, 5
      %v2173 = vsel %vm1068, %v2171, %v2172
      %v2174 = vrot.slane %v2026, 5
      %v2175 = vrot.slane %v2174, 4
      %v2176 = vrot.slane %v2027, 5
      %v2177 = vsel %vm1068, %v2175, %v2176
      %v2178 = vrot.slane %v2176, 4
      %v2179 = vrot.slane %v2028, 5
      %v2180 = vsel %vm1068, %v2178, %v2179
      %v2181 = vrot.slane %v2029, 5
      %v2182 = vrot.slane %v2181, 4
      %v2183 = vrot.slane %v2030, 5
      %v2184 = vsel %vm1068, %v2182, %v2183
      %v2185 = vrot.slane %v2183, 4
      %v2186 = vrot.slane %v2031, 5
      %v2187 = vsel %vm1068, %v2185, %v2186
      %v2188 = vrot.slane %v2032, 5
      %v2189 = vrot.slane %v2188, 4
      %v2190 = vrot.slane %v2033, 5
      %v2191 = vsel %vm1068, %v2189, %v2190
      %v2192 = vrot.slane %v2190, 4
      %v2193 = vrot.slane %v2034, 5
      %v2194 = vsel %vm1068, %v2192, %v2193
      %v2195 = vunpack.c.l.b16 %v2086
      %v2196 = vunpack.c.l.b16 %v2089
      %v2197 = vunpack.c.l.b16 %v2093
      %v2198 = vunpack.c.l.b16 %v2096
      %v2199 = vunpack.c.l.b16 %v2100
      %v2200 = vunpack.c.l.b16 %v2103
      %v2201 = vunpack.c.l.b16 %v2107
      %v2202 = vunpack.c.l.b16 %v2110
      %v2203 = vunpack.c.l.b16 %v2114
      %v2204 = vunpack.c.l.b16 %v2117
      %v2205 = vunpack.c.l.b16 %v2121
      %v2206 = vunpack.c.l.b16 %v2124
      %v2207 = vunpack.c.l.b16 %v2128
      %v2208 = vunpack.c.l.b16 %v2131
      %v2209 = vunpack.c.l.b16 %v2135
      %v2210 = vunpack.c.l.b16 %v2138
      %v2211 = vunpack.c.l.b16 %v2142
      %v2212 = vunpack.c.l.b16 %v2145
      %v2213 = vunpack.c.l.b16 %v2149
      %v2214 = vunpack.c.l.b16 %v2152
      %v2215 = vunpack.c.l.b16 %v2156
      %v2216 = vunpack.c.l.b16 %v2159
      %v2217 = vunpack.c.l.b16 %v2163
      %v2218 = vunpack.c.l.b16 %v2166
      %v2219 = vunpack.c.l.b16 %v2170
      %v2220 = vunpack.c.l.b16 %v2173
      %v2221 = vunpack.c.l.b16 %v2177
      %v2222 = vunpack.c.l.b16 %v2180
      %v2223 = vunpack.c.l.b16 %v2184
      %v2224 = vunpack.c.l.b16 %v2187
      %v2225 = vunpack.c.l.b16 %v2191
      %v2226 = vunpack.c.l.b16 %v2194
      %v2227 = vpack.c.b16 %v2196, %v2195
      %v2228 = vpack.c.b16 %v2198, %v2197
      %v2229 = vpack.c.b16 %v2200, %v2199
      %v2230 = vpack.c.b16 %v2202, %v2201
      %v2231 = vpack.c.b16 %v2204, %v2203
      %v2232 = vpack.c.b16 %v2206, %v2205
      %v2233 = vpack.c.b16 %v2208, %v2207
      %v2234 = vpack.c.b16 %v2210, %v2209
      %v2235 = vpack.c.b16 %v2212, %v2211
      %v2236 = vpack.c.b16 %v2214, %v2213
      %v2237 = vpack.c.b16 %v2216, %v2215
      %v2238 = vpack.c.b16 %v2218, %v2217
      %v2239 = vpack.c.b16 %v2220, %v2219
      %v2240 = vpack.c.b16 %v2222, %v2221
      %v2241 = vpack.c.b16 %v2224, %v2223
      %v2242 = vpack.c.b16 %v2226, %v2225
      %2243 = vrot.lane.b32.xlu0 %v2227, 32
      %v2244 = vpop.permute.xlu0 %2243
      %2245 = vrot.lane.b32.xlu0 %v2228, 32
      %v2246 = vpop.permute.xlu0 %2245
      %2247 = vrot.lane.b32.xlu0 %v2229, 32
      %v2248 = vpop.permute.xlu0 %2247
      %2249 = vrot.lane.b32.xlu0 %v2230, 32
      %v2250 = vpop.permute.xlu0 %2249
      %2251 = vrot.lane.b32.xlu0 %v2231, 32
      %v2252 = vpop.permute.xlu0 %2251
      %2253 = vrot.lane.b32.xlu0 %v2232, 32
      %v2254 = vpop.permute.xlu0 %2253
      %2255 = vrot.lane.b32.xlu0 %v2233, 32
      %v2256 = vpop.permute.xlu0 %2255
      %2257 = vrot.lane.b32.xlu0 %v2234, 32
      %v2258 = vpop.permute.xlu0 %2257
      %2259 = vrot.lane.b32.xlu0 %v2235, 32
      %v2260 = vpop.permute.xlu0 %2259
      %2261 = vrot.lane.b32.xlu0 %v2236, 32
      %v2262 = vpop.permute.xlu0 %2261
      %2263 = vrot.lane.b32.xlu0 %v2237, 32
      %v2264 = vpop.permute.xlu0 %2263
      %2265 = vrot.lane.b32.xlu0 %v2238, 32
      %v2266 = vpop.permute.xlu0 %2265
      %2267 = vrot.lane.b32.xlu0 %v2239, 32
      %v2268 = vpop.permute.xlu0 %2267
      %2269 = vrot.lane.b32.xlu0 %v2240, 32
      %v2270 = vpop.permute.xlu0 %2269
      %2271 = vrot.lane.b32.xlu0 %v2241, 32
      %v2272 = vpop.permute.xlu0 %2271
      %2273 = vrot.lane.b32.xlu0 %v2242, 32
      %v2274 = vpop.permute.xlu0 %2273
      %2291 = vst.msk [vmem:[#allocation2 + $0x8] sm:$0xff] %vm953, %v2244
      %2292 = vst.msk [vmem:[#allocation2 + $0x20] sm:$0xff] %vm953, %v2246
      %2293 = vst.msk [vmem:[#allocation2 + $0x38] sm:$0xff] %vm953, %v2248
      %2294 = vst.msk [vmem:[#allocation2 + $0x50] sm:$0xff] %vm953, %v2250
      %2295 = vst.msk [vmem:[#allocation2 + $0x68] sm:$0xff] %vm953, %v2252
      %2296 = vst.msk [vmem:[#allocation2 + $0x80] sm:$0xff] %vm953, %v2254
      %2297 = vst.msk [vmem:[#allocation2 + $0x98] sm:$0xff] %vm953, %v2256
      %2298 = vst.msk [vmem:[#allocation2 + $0xb0] sm:$0xff] %vm953, %v2258
      %2299 = vst.msk [vmem:[#allocation2 + $0xc8] sm:$0xff] %vm953, %v2260
      %2300 = vst.msk [vmem:[#allocation2 + $0xe0] sm:$0xff] %vm953, %v2262
      %2301 = vst.msk [vmem:[#allocation2 + $0xf8] sm:$0xff] %vm953, %v2264
      %2302 = vst.msk [vmem:[#allocation2 + $0x110] sm:$0xff] %vm953, %v2266
      %2303 = vst.msk [vmem:[#allocation2 + $0x128] sm:$0xff] %vm953, %v2268
      %2304 = vst.msk [vmem:[#allocation2 + $0x140] sm:$0xff] %vm953, %v2270
      %2305 = vst.msk [vmem:[#allocation2 + $0x158] sm:$0xff] %vm953, %v2272
      %2306 = vst.msk [vmem:[#allocation2 + $0x170] sm:$0xff] %vm953, %v2274
      %s2307 = sadd.s32 %s273, 2
      %s2308 = smul.u32 %s2307, 3
      %s2309 = smul.addr %s2308, 4
      %s2310 = scalar_lea.vmem %s251, %s2309
      %v2311 = vld [vmem:[%s2310] sm:$0xf]
      %v2312 = vld [vmem:[%s2310 + $0x4] sm:$0xf]
      %v2313 = vld [vmem:[%s2310 + $0xc] sm:$0xf]
      %v2314 = vld [vmem:[%s2310 + $0x10] sm:$0xf]
      %v2315 = vld [vmem:[%s2310 + $0x18] sm:$0xf]
      %v2316 = vld [vmem:[%s2310 + $0x1c] sm:$0xf]
      %v2317 = vld [vmem:[%s2310 + $0x24] sm:$0xf]
      %v2318 = vld [vmem:[%s2310 + $0x28] sm:$0xf]
      %v2319 = vld [vmem:[%s2310 + $0x30] sm:$0xf]
      %v2320 = vld [vmem:[%s2310 + $0x34] sm:$0xf]
      %v2321 = vld [vmem:[%s2310 + $0x3c] sm:$0xf]
      %v2322 = vld [vmem:[%s2310 + $0x40] sm:$0xf]
      %v2323 = vld [vmem:[%s2310 + $0x48] sm:$0xf]
      %v2324 = vld [vmem:[%s2310 + $0x4c] sm:$0xf]
      %v2325 = vld [vmem:[%s2310 + $0x54] sm:$0xf]
      %v2326 = vld [vmem:[%s2310 + $0x58] sm:$0xf]
      %v2327 = vld [vmem:[%s2310 + $0x60] sm:$0xf]
      %v2328 = vld [vmem:[%s2310 + $0x64] sm:$0xf]
      %v2329 = vld [vmem:[%s2310 + $0x6c] sm:$0xf]
      %v2330 = vld [vmem:[%s2310 + $0x70] sm:$0xf]
      %v2331 = vld [vmem:[%s2310 + $0x78] sm:$0xf]
      %v2332 = vld [vmem:[%s2310 + $0x7c] sm:$0xf]
      %v2333 = vld [vmem:[%s2310 + $0x84] sm:$0xf]
      %v2334 = vld [vmem:[%s2310 + $0x88] sm:$0xf]
      %v2335 = vld [vmem:[%s2310 + $0x90] sm:$0xf]
      %v2336 = vld [vmem:[%s2310 + $0x94] sm:$0xf]
      %v2337 = vld [vmem:[%s2310 + $0x9c] sm:$0xf]
      %v2338 = vld [vmem:[%s2310 + $0xa0] sm:$0xf]
      %v2339 = vld [vmem:[%s2310 + $0xa8] sm:$0xf]
      %v2340 = vld [vmem:[%s2310 + $0xac] sm:$0xf]
      %v2341 = vld [vmem:[%s2310 + $0xb4] sm:$0xf]
      %v2342 = vld [vmem:[%s2310 + $0xb8] sm:$0xf]
      %v2375 = vunpack.c.l.b16 %v2311
      %v2376 = vunpack.c.l.b16 %v2312
      %v2377 = vunpack.c.l.b16 %v2313
      %v2378 = vunpack.c.l.b16 %v2314
      %v2379 = vunpack.c.l.b16 %v2315
      %v2380 = vunpack.c.l.b16 %v2316
      %v2381 = vunpack.c.l.b16 %v2317
      %v2382 = vunpack.c.l.b16 %v2318
      %v2383 = vunpack.c.l.b16 %v2319
      %v2384 = vunpack.c.l.b16 %v2320
      %v2385 = vunpack.c.l.b16 %v2321
      %v2386 = vunpack.c.l.b16 %v2322
      %v2387 = vunpack.c.l.b16 %v2323
      %v2388 = vunpack.c.l.b16 %v2324
      %v2389 = vunpack.c.l.b16 %v2325
      %v2390 = vunpack.c.l.b16 %v2326
      %v2391 = vunpack.c.l.b16 %v2327
      %v2392 = vunpack.c.l.b16 %v2328
      %v2393 = vunpack.c.l.b16 %v2329
      %v2394 = vunpack.c.l.b16 %v2330
      %v2395 = vunpack.c.l.b16 %v2331
      %v2396 = vunpack.c.l.b16 %v2332
      %v2397 = vunpack.c.l.b16 %v2333
      %v2398 = vunpack.c.l.b16 %v2334
      %v2399 = vunpack.c.l.b16 %v2335
      %v2400 = vunpack.c.l.b16 %v2336
      %v2401 = vunpack.c.l.b16 %v2337
      %v2402 = vunpack.c.l.b16 %v2338
      %v2403 = vunpack.c.l.b16 %v2339
      %v2404 = vunpack.c.l.b16 %v2340
      %v2405 = vunpack.c.l.b16 %v2341
      %v2406 = vunpack.c.l.b16 %v2342
      %v2407 = vpack.c.b16 %v2376, %v2375
      %v2408 = vpack.c.b16 %v2378, %v2377
      %v2409 = vpack.c.b16 %v2380, %v2379
      %v2410 = vpack.c.b16 %v2382, %v2381
      %v2411 = vpack.c.b16 %v2384, %v2383
      %v2412 = vpack.c.b16 %v2386, %v2385
      %v2413 = vpack.c.b16 %v2388, %v2387
      %v2414 = vpack.c.b16 %v2390, %v2389
      %v2415 = vpack.c.b16 %v2392, %v2391
      %v2416 = vpack.c.b16 %v2394, %v2393
      %v2417 = vpack.c.b16 %v2396, %v2395
      %v2418 = vpack.c.b16 %v2398, %v2397
      %v2419 = vpack.c.b16 %v2400, %v2399
      %v2420 = vpack.c.b16 %v2402, %v2401
      %v2421 = vpack.c.b16 %v2404, %v2403
      %v2422 = vpack.c.b16 %v2406, %v2405
      %2423 = vrot.lane.b32.xlu0 %v2407, 64
      %v2424 = vpop.permute.xlu0 %2423
      %2425 = vrot.lane.b32.xlu0 %v2408, 64
      %v2426 = vpop.permute.xlu0 %2425
      %2427 = vrot.lane.b32.xlu0 %v2409, 64
      %v2428 = vpop.permute.xlu0 %2427
      %2429 = vrot.lane.b32.xlu0 %v2410, 64
      %v2430 = vpop.permute.xlu0 %2429
      %2431 = vrot.lane.b32.xlu0 %v2411, 64
      %v2432 = vpop.permute.xlu0 %2431
      %2433 = vrot.lane.b32.xlu0 %v2412, 64
      %v2434 = vpop.permute.xlu0 %2433
      %2435 = vrot.lane.b32.xlu0 %v2413, 64
      %v2436 = vpop.permute.xlu0 %2435
      %2437 = vrot.lane.b32.xlu0 %v2414, 64
      %v2438 = vpop.permute.xlu0 %2437
      %2439 = vrot.lane.b32.xlu0 %v2415, 64
      %v2440 = vpop.permute.xlu0 %2439
      %2441 = vrot.lane.b32.xlu0 %v2416, 64
      %v2442 = vpop.permute.xlu0 %2441
      %2443 = vrot.lane.b32.xlu0 %v2417, 64
      %v2444 = vpop.permute.xlu0 %2443
      %2445 = vrot.lane.b32.xlu0 %v2418, 64
      %v2446 = vpop.permute.xlu0 %2445
      %2447 = vrot.lane.b32.xlu0 %v2419, 64
      %v2448 = vpop.permute.xlu0 %2447
      %2449 = vrot.lane.b32.xlu0 %v2420, 64
      %v2450 = vpop.permute.xlu0 %2449
      %2451 = vrot.lane.b32.xlu0 %v2421, 64
      %v2452 = vpop.permute.xlu0 %2451
      %2453 = vrot.lane.b32.xlu0 %v2422, 64
      %v2454 = vpop.permute.xlu0 %2453
      %2471 = vst.msk [vmem:[#allocation2 + $0x8] sm:$0xff] %vm1277, %v2424
      %2472 = vst.msk [vmem:[#allocation2 + $0x20] sm:$0xff] %vm1277, %v2426
      %2473 = vst.msk [vmem:[#allocation2 + $0x38] sm:$0xff] %vm1277, %v2428
      %2474 = vst.msk [vmem:[#allocation2 + $0x50] sm:$0xff] %vm1277, %v2430
      %2475 = vst.msk [vmem:[#allocation2 + $0x68] sm:$0xff] %vm1277, %v2432
      %2476 = vst.msk [vmem:[#allocation2 + $0x80] sm:$0xff] %vm1277, %v2434
      %2477 = vst.msk [vmem:[#allocation2 + $0x98] sm:$0xff] %vm1277, %v2436
      %2478 = vst.msk [vmem:[#allocation2 + $0xb0] sm:$0xff] %vm1277, %v2438
      %2479 = vst.msk [vmem:[#allocation2 + $0xc8] sm:$0xff] %vm1277, %v2440
      %2480 = vst.msk [vmem:[#allocation2 + $0xe0] sm:$0xff] %vm1277, %v2442
      %2481 = vst.msk [vmem:[#allocation2 + $0xf8] sm:$0xff] %vm1277, %v2444
      %2482 = vst.msk [vmem:[#allocation2 + $0x110] sm:$0xff] %vm1277, %v2446
      %2483 = vst.msk [vmem:[#allocation2 + $0x128] sm:$0xff] %vm1277, %v2448
      %2484 = vst.msk [vmem:[#allocation2 + $0x140] sm:$0xff] %vm1277, %v2450
      %2485 = vst.msk [vmem:[#allocation2 + $0x158] sm:$0xff] %vm1277, %v2452
      %2486 = vst.msk [vmem:[#allocation2 + $0x170] sm:$0xff] %vm1277, %v2454
      %v2487 = vld [vmem:[%s2310] sm:$0xf]
      %v2488 = vld [vmem:[%s2310 + $0x4] sm:$0xf]
      %v2489 = vld [vmem:[%s2310 + $0x8] sm:$0x1]
      %v2490 = vld [vmem:[%s2310 + $0xc] sm:$0xf]
      %v2491 = vld [vmem:[%s2310 + $0x10] sm:$0xf]
      %v2492 = vld [vmem:[%s2310 + $0x14] sm:$0x1]
      %v2493 = vld [vmem:[%s2310 + $0x18] sm:$0xf]
      %v2494 = vld [vmem:[%s2310 + $0x1c] sm:$0xf]
      %v2495 = vld [vmem:[%s2310 + $0x20] sm:$0x1]
      %v2496 = vld [vmem:[%s2310 + $0x24] sm:$0xf]
      %v2497 = vld [vmem:[%s2310 + $0x28] sm:$0xf]
      %v2498 = vld [vmem:[%s2310 + $0x2c] sm:$0x1]
      %v2499 = vld [vmem:[%s2310 + $0x30] sm:$0xf]
      %v2500 = vld [vmem:[%s2310 + $0x34] sm:$0xf]
      %v2501 = vld [vmem:[%s2310 + $0x38] sm:$0x1]
      %v2502 = vld [vmem:[%s2310 + $0x3c] sm:$0xf]
      %v2503 = vld [vmem:[%s2310 + $0x40] sm:$0xf]
      %v2504 = vld [vmem:[%s2310 + $0x44] sm:$0x1]
      %v2505 = vld [vmem:[%s2310 + $0x48] sm:$0xf]
      %v2506 = vld [vmem:[%s2310 + $0x4c] sm:$0xf]
      %v2507 = vld [vmem:[%s2310 + $0x50] sm:$0x1]
      %v2508 = vld [vmem:[%s2310 + $0x54] sm:$0xf]
      %v2509 = vld [vmem:[%s2310 + $0x58] sm:$0xf]
      %v2510 = vld [vmem:[%s2310 + $0x5c] sm:$0x1]
      %v2511 = vld [vmem:[%s2310 + $0x60] sm:$0xf]
      %v2512 = vld [vmem:[%s2310 + $0x64] sm:$0xf]
      %v2513 = vld [vmem:[%s2310 + $0x68] sm:$0x1]
      %v2514 = vld [vmem:[%s2310 + $0x6c] sm:$0xf]
      %v2515 = vld [vmem:[%s2310 + $0x70] sm:$0xf]
      %v2516 = vld [vmem:[%s2310 + $0x74] sm:$0x1]
      %v2517 = vld [vmem:[%s2310 + $0x78] sm:$0xf]
      %v2518 = vld [vmem:[%s2310 + $0x7c] sm:$0xf]
      %v2519 = vld [vmem:[%s2310 + $0x80] sm:$0x1]
      %v2520 = vld [vmem:[%s2310 + $0x84] sm:$0xf]
      %v2521 = vld [vmem:[%s2310 + $0x88] sm:$0xf]
      %v2522 = vld [vmem:[%s2310 + $0x8c] sm:$0x1]
      %v2523 = vld [vmem:[%s2310 + $0x90] sm:$0xf]
      %v2524 = vld [vmem:[%s2310 + $0x94] sm:$0xf]
      %v2525 = vld [vmem:[%s2310 + $0x98] sm:$0x1]
      %v2526 = vld [vmem:[%s2310 + $0x9c] sm:$0xf]
      %v2527 = vld [vmem:[%s2310 + $0xa0] sm:$0xf]
      %v2528 = vld [vmem:[%s2310 + $0xa4] sm:$0x1]
      %v2529 = vld [vmem:[%s2310 + $0xa8] sm:$0xf]
      %v2530 = vld [vmem:[%s2310 + $0xac] sm:$0xf]
      %v2531 = vld [vmem:[%s2310 + $0xb0] sm:$0x1]
      %v2532 = vld [vmem:[%s2310 + $0xb4] sm:$0xf]
      %v2533 = vld [vmem:[%s2310 + $0xb8] sm:$0xf]
      %v2534 = vld [vmem:[%s2310 + $0xbc] sm:$0x1]
      %v2536 = vshrl.u32 %v2487, 16
      %v2538 = vrot.slane %v2536, 4
      %v2539 = vshll.u32 %v2487, 16
      %v2541 = vrot.slane %v2539, 5
      %v2542 = vor.u32 %v2538, %v2541
      %v2543 = vrot.slane %v2542, 4
      %v2545 = vshll.u32 %v2488, 16
      %v2547 = vrot.slane %v2545, 5
      %v2548 = vsel %vm472, %v2543, %v2547
      %v2549 = vshrl.u32 %v2488, 16
      %v2551 = vrot.slane %v2549, 4
      %v2552 = vor.u32 %v2551, %v2547
      %v2553 = vrot.slane %v2552, 4
      %v2555 = vshll.u32 %v2489, 16
      %v2557 = vrot.slane %v2555, 5
      %v2558 = vsel %vm472, %v2553, %v2557
      %v2560 = vshrl.u32 %v2490, 16
      %v2562 = vrot.slane %v2560, 4
      %v2563 = vshll.u32 %v2490, 16
      %v2565 = vrot.slane %v2563, 5
      %v2566 = vor.u32 %v2562, %v2565
      %v2567 = vrot.slane %v2566, 4
      %v2569 = vshll.u32 %v2491, 16
      %v2571 = vrot.slane %v2569, 5
      %v2572 = vsel %vm472, %v2567, %v2571
      %v2573 = vshrl.u32 %v2491, 16
      %v2575 = vrot.slane %v2573, 4
      %v2576 = vor.u32 %v2575, %v2571
      %v2577 = vrot.slane %v2576, 4
      %v2579 = vshll.u32 %v2492, 16
      %v2581 = vrot.slane %v2579, 5
      %v2582 = vsel %vm472, %v2577, %v2581
      %v2584 = vshrl.u32 %v2493, 16
      %v2586 = vrot.slane %v2584, 4
      %v2587 = vshll.u32 %v2493, 16
      %v2589 = vrot.slane %v2587, 5
      %v2590 = vor.u32 %v2586, %v2589
      %v2591 = vrot.slane %v2590, 4
      %v2593 = vshll.u32 %v2494, 16
      %v2595 = vrot.slane %v2593, 5
      %v2596 = vsel %vm472, %v2591, %v2595
      %v2597 = vshrl.u32 %v2494, 16
      %v2599 = vrot.slane %v2597, 4
      %v2600 = vor.u32 %v2599, %v2595
      %v2601 = vrot.slane %v2600, 4
      %v2603 = vshll.u32 %v2495, 16
      %v2605 = vrot.slane %v2603, 5
      %v2606 = vsel %vm472, %v2601, %v2605
      %v2608 = vshrl.u32 %v2496, 16
      %v2610 = vrot.slane %v2608, 4
      %v2611 = vshll.u32 %v2496, 16
      %v2613 = vrot.slane %v2611, 5
      %v2614 = vor.u32 %v2610, %v2613
      %v2615 = vrot.slane %v2614, 4
      %v2617 = vshll.u32 %v2497, 16
      %v2619 = vrot.slane %v2617, 5
      %v2620 = vsel %vm472, %v2615, %v2619
      %v2621 = vshrl.u32 %v2497, 16
      %v2623 = vrot.slane %v2621, 4
      %v2624 = vor.u32 %v2623, %v2619
      %v2625 = vrot.slane %v2624, 4
      %v2627 = vshll.u32 %v2498, 16
      %v2629 = vrot.slane %v2627, 5
      %v2630 = vsel %vm472, %v2625, %v2629
      %v2632 = vshrl.u32 %v2499, 16
      %v2634 = vrot.slane %v2632, 4
      %v2635 = vshll.u32 %v2499, 16
      %v2637 = vrot.slane %v2635, 5
      %v2638 = vor.u32 %v2634, %v2637
      %v2639 = vrot.slane %v2638, 4
      %v2641 = vshll.u32 %v2500, 16
      %v2643 = vrot.slane %v2641, 5
      %v2644 = vsel %vm472, %v2639, %v2643
      %v2645 = vshrl.u32 %v2500, 16
      %v2647 = vrot.slane %v2645, 4
      %v2648 = vor.u32 %v2647, %v2643
      %v2649 = vrot.slane %v2648, 4
      %v2651 = vshll.u32 %v2501, 16
      %v2653 = vrot.slane %v2651, 5
      %v2654 = vsel %vm472, %v2649, %v2653
      %v2656 = vshrl.u32 %v2502, 16
      %v2658 = vrot.slane %v2656, 4
      %v2659 = vshll.u32 %v2502, 16
      %v2661 = vrot.slane %v2659, 5
      %v2662 = vor.u32 %v2658, %v2661
      %v2663 = vrot.slane %v2662, 4
      %v2665 = vshll.u32 %v2503, 16
      %v2667 = vrot.slane %v2665, 5
      %v2668 = vsel %vm472, %v2663, %v2667
      %v2669 = vshrl.u32 %v2503, 16
      %v2671 = vrot.slane %v2669, 4
      %v2672 = vor.u32 %v2671, %v2667
      %v2673 = vrot.slane %v2672, 4
      %v2675 = vshll.u32 %v2504, 16
      %v2677 = vrot.slane %v2675, 5
      %v2678 = vsel %vm472, %v2673, %v2677
      %v2680 = vshrl.u32 %v2505, 16
      %v2682 = vrot.slane %v2680, 4
      %v2683 = vshll.u32 %v2505, 16
      %v2685 = vrot.slane %v2683, 5
      %v2686 = vor.u32 %v2682, %v2685
      %v2687 = vrot.slane %v2686, 4
      %v2689 = vshll.u32 %v2506, 16
      %v2691 = vrot.slane %v2689, 5
      %v2692 = vsel %vm472, %v2687, %v2691
      %v2693 = vshrl.u32 %v2506, 16
      %v2695 = vrot.slane %v2693, 4
      %v2696 = vor.u32 %v2695, %v2691
      %v2697 = vrot.slane %v2696, 4
      %v2699 = vshll.u32 %v2507, 16
      %v2701 = vrot.slane %v2699, 5
      %v2702 = vsel %vm472, %v2697, %v2701
      %v2704 = vshrl.u32 %v2508, 16
      %v2706 = vrot.slane %v2704, 4
      %v2707 = vshll.u32 %v2508, 16
      %v2709 = vrot.slane %v2707, 5
      %v2710 = vor.u32 %v2706, %v2709
      %v2711 = vrot.slane %v2710, 4
      %v2713 = vshll.u32 %v2509, 16
      %v2715 = vrot.slane %v2713, 5
      %v2716 = vsel %vm472, %v2711, %v2715
      %v2717 = vshrl.u32 %v2509, 16
      %v2719 = vrot.slane %v2717, 4
      %v2720 = vor.u32 %v2719, %v2715
      %v2721 = vrot.slane %v2720, 4
      %v2723 = vshll.u32 %v2510, 16
      %v2725 = vrot.slane %v2723, 5
      %v2726 = vsel %vm472, %v2721, %v2725
      %v2728 = vshrl.u32 %v2511, 16
      %v2730 = vrot.slane %v2728, 4
      %v2731 = vshll.u32 %v2511, 16
      %v2733 = vrot.slane %v2731, 5
      %v2734 = vor.u32 %v2730, %v2733
      %v2735 = vrot.slane %v2734, 4
      %v2737 = vshll.u32 %v2512, 16
      %v2739 = vrot.slane %v2737, 5
      %v2740 = vsel %vm472, %v2735, %v2739
      %v2741 = vshrl.u32 %v2512, 16
      %v2743 = vrot.slane %v2741, 4
      %v2744 = vor.u32 %v2743, %v2739
      %v2745 = vrot.slane %v2744, 4
      %v2747 = vshll.u32 %v2513, 16
      %v2749 = vrot.slane %v2747, 5
      %v2750 = vsel %vm472, %v2745, %v2749
      %v2752 = vshrl.u32 %v2514, 16
      %v2754 = vrot.slane %v2752, 4
      %v2755 = vshll.u32 %v2514, 16
      %v2757 = vrot.slane %v2755, 5
      %v2758 = vor.u32 %v2754, %v2757
      %v2759 = vrot.slane %v2758, 4
      %v2761 = vshll.u32 %v2515, 16
      %v2763 = vrot.slane %v2761, 5
      %v2764 = vsel %vm472, %v2759, %v2763
      %v2765 = vshrl.u32 %v2515, 16
      %v2767 = vrot.slane %v2765, 4
      %v2768 = vor.u32 %v2767, %v2763
      %v2769 = vrot.slane %v2768, 4
      %v2771 = vshll.u32 %v2516, 16
      %v2773 = vrot.slane %v2771, 5
      %v2774 = vsel %vm472, %v2769, %v2773
      %v2776 = vshrl.u32 %v2517, 16
      %v2778 = vrot.slane %v2776, 4
      %v2779 = vshll.u32 %v2517, 16
      %v2781 = vrot.slane %v2779, 5
      %v2782 = vor.u32 %v2778, %v2781
      %v2783 = vrot.slane %v2782, 4
      %v2785 = vshll.u32 %v2518, 16
      %v2787 = vrot.slane %v2785, 5
      %v2788 = vsel %vm472, %v2783, %v2787
      %v2789 = vshrl.u32 %v2518, 16
      %v2791 = vrot.slane %v2789, 4
      %v2792 = vor.u32 %v2791, %v2787
      %v2793 = vrot.slane %v2792, 4
      %v2795 = vshll.u32 %v2519, 16
      %v2797 = vrot.slane %v2795, 5
      %v2798 = vsel %vm472, %v2793, %v2797
      %v2800 = vshrl.u32 %v2520, 16
      %v2802 = vrot.slane %v2800, 4
      %v2803 = vshll.u32 %v2520, 16
      %v2805 = vrot.slane %v2803, 5
      %v2806 = vor.u32 %v2802, %v2805
      %v2807 = vrot.slane %v2806, 4
      %v2809 = vshll.u32 %v2521, 16
      %v2811 = vrot.slane %v2809, 5
      %v2812 = vsel %vm472, %v2807, %v2811
      %v2813 = vshrl.u32 %v2521, 16
      %v2815 = vrot.slane %v2813, 4
      %v2816 = vor.u32 %v2815, %v2811
      %v2817 = vrot.slane %v2816, 4
      %v2819 = vshll.u32 %v2522, 16
      %v2821 = vrot.slane %v2819, 5
      %v2822 = vsel %vm472, %v2817, %v2821
      %v2824 = vshrl.u32 %v2523, 16
      %v2826 = vrot.slane %v2824, 4
      %v2827 = vshll.u32 %v2523, 16
      %v2829 = vrot.slane %v2827, 5
      %v2830 = vor.u32 %v2826, %v2829
      %v2831 = vrot.slane %v2830, 4
      %v2833 = vshll.u32 %v2524, 16
      %v2835 = vrot.slane %v2833, 5
      %v2836 = vsel %vm472, %v2831, %v2835
      %v2837 = vshrl.u32 %v2524, 16
      %v2839 = vrot.slane %v2837, 4
      %v2840 = vor.u32 %v2839, %v2835
      %v2841 = vrot.slane %v2840, 4
      %v2843 = vshll.u32 %v2525, 16
      %v2845 = vrot.slane %v2843, 5
      %v2846 = vsel %vm472, %v2841, %v2845
      %v2848 = vshrl.u32 %v2526, 16
      %v2850 = vrot.slane %v2848, 4
      %v2851 = vshll.u32 %v2526, 16
      %v2853 = vrot.slane %v2851, 5
      %v2854 = vor.u32 %v2850, %v2853
      %v2855 = vrot.slane %v2854, 4
      %v2857 = vshll.u32 %v2527, 16
      %v2859 = vrot.slane %v2857, 5
      %v2860 = vsel %vm472, %v2855, %v2859
      %v2861 = vshrl.u32 %v2527, 16
      %v2863 = vrot.slane %v2861, 4
      %v2864 = vor.u32 %v2863, %v2859
      %v2865 = vrot.slane %v2864, 4
      %v2867 = vshll.u32 %v2528, 16
      %v2869 = vrot.slane %v2867, 5
      %v2870 = vsel %vm472, %v2865, %v2869
      %v2872 = vshrl.u32 %v2529, 16
      %v2874 = vrot.slane %v2872, 4
      %v2875 = vshll.u32 %v2529, 16
      %v2877 = vrot.slane %v2875, 5
      %v2878 = vor.u32 %v2874, %v2877
      %v2879 = vrot.slane %v2878, 4
      %v2881 = vshll.u32 %v2530, 16
      %v2883 = vrot.slane %v2881, 5
      %v2884 = vsel %vm472, %v2879, %v2883
      %v2885 = vshrl.u32 %v2530, 16
      %v2887 = vrot.slane %v2885, 4
      %v2888 = vor.u32 %v2887, %v2883
      %v2889 = vrot.slane %v2888, 4
      %v2891 = vshll.u32 %v2531, 16
      %v2893 = vrot.slane %v2891, 5
      %v2894 = vsel %vm472, %v2889, %v2893
      %v2896 = vshrl.u32 %v2532, 16
      %v2898 = vrot.slane %v2896, 4
      %v2899 = vshll.u32 %v2532, 16
      %v2901 = vrot.slane %v2899, 5
      %v2902 = vor.u32 %v2898, %v2901
      %v2903 = vrot.slane %v2902, 4
      %v2905 = vshll.u32 %v2533, 16
      %v2907 = vrot.slane %v2905, 5
      %v2908 = vsel %vm472, %v2903, %v2907
      %v2909 = vshrl.u32 %v2533, 16
      %v2911 = vrot.slane %v2909, 4
      %v2912 = vor.u32 %v2911, %v2907
      %v2913 = vrot.slane %v2912, 4
      %v2915 = vshll.u32 %v2534, 16
      %v2917 = vrot.slane %v2915, 5
      %v2918 = vsel %vm472, %v2913, %v2917
      %v2919 = vunpack.c.l.b16 %v2548
      %v2920 = vunpack.c.l.b16 %v2558
      %v2921 = vunpack.c.l.b16 %v2572
      %v2922 = vunpack.c.l.b16 %v2582
      %v2923 = vunpack.c.l.b16 %v2596
      %v2924 = vunpack.c.l.b16 %v2606
      %v2925 = vunpack.c.l.b16 %v2620
      %v2926 = vunpack.c.l.b16 %v2630
      %v2927 = vunpack.c.l.b16 %v2644
      %v2928 = vunpack.c.l.b16 %v2654
      %v2929 = vunpack.c.l.b16 %v2668
      %v2930 = vunpack.c.l.b16 %v2678
      %v2931 = vunpack.c.l.b16 %v2692
      %v2932 = vunpack.c.l.b16 %v2702
      %v2933 = vunpack.c.l.b16 %v2716
      %v2934 = vunpack.c.l.b16 %v2726
      %v2935 = vunpack.c.l.b16 %v2740
      %v2936 = vunpack.c.l.b16 %v2750
      %v2937 = vunpack.c.l.b16 %v2764
      %v2938 = vunpack.c.l.b16 %v2774
      %v2939 = vunpack.c.l.b16 %v2788
      %v2940 = vunpack.c.l.b16 %v2798
      %v2941 = vunpack.c.l.b16 %v2812
      %v2942 = vunpack.c.l.b16 %v2822
      %v2943 = vunpack.c.l.b16 %v2836
      %v2944 = vunpack.c.l.b16 %v2846
      %v2945 = vunpack.c.l.b16 %v2860
      %v2946 = vunpack.c.l.b16 %v2870
      %v2947 = vunpack.c.l.b16 %v2884
      %v2948 = vunpack.c.l.b16 %v2894
      %v2949 = vunpack.c.l.b16 %v2908
      %v2950 = vunpack.c.l.b16 %v2918
      %v2951 = vpack.c.b16 %v2920, %v2919
      %v2952 = vpack.c.b16 %v2922, %v2921
      %v2953 = vpack.c.b16 %v2924, %v2923
      %v2954 = vpack.c.b16 %v2926, %v2925
      %v2955 = vpack.c.b16 %v2928, %v2927
      %v2956 = vpack.c.b16 %v2930, %v2929
      %v2957 = vpack.c.b16 %v2932, %v2931
      %v2958 = vpack.c.b16 %v2934, %v2933
      %v2959 = vpack.c.b16 %v2936, %v2935
      %v2960 = vpack.c.b16 %v2938, %v2937
      %v2961 = vpack.c.b16 %v2940, %v2939
      %v2962 = vpack.c.b16 %v2942, %v2941
      %v2963 = vpack.c.b16 %v2944, %v2943
      %v2964 = vpack.c.b16 %v2946, %v2945
      %v2965 = vpack.c.b16 %v2948, %v2947
      %v2966 = vpack.c.b16 %v2950, %v2949
      %2967 = vrot.lane.b32.xlu0 %v2951, 96
      %v2968 = vpop.permute.xlu0 %2967
      %2969 = vrot.lane.b32.xlu0 %v2952, 96
      %v2970 = vpop.permute.xlu0 %2969
      %2971 = vrot.lane.b32.xlu0 %v2953, 96
      %v2972 = vpop.permute.xlu0 %2971
      %2973 = vrot.lane.b32.xlu0 %v2954, 96
      %v2974 = vpop.permute.xlu0 %2973
      %2975 = vrot.lane.b32.xlu0 %v2955, 96
      %v2976 = vpop.permute.xlu0 %2975
      %2977 = vrot.lane.b32.xlu0 %v2956, 96
      %v2978 = vpop.permute.xlu0 %2977
      %2979 = vrot.lane.b32.xlu0 %v2957, 96
      %v2980 = vpop.permute.xlu0 %2979
      %2981 = vrot.lane.b32.xlu0 %v2958, 96
      %v2982 = vpop.permute.xlu0 %2981
      %2983 = vrot.lane.b32.xlu0 %v2959, 96
      %v2984 = vpop.permute.xlu0 %2983
      %2985 = vrot.lane.b32.xlu0 %v2960, 96
      %v2986 = vpop.permute.xlu0 %2985
      %2987 = vrot.lane.b32.xlu0 %v2961, 96
      %v2988 = vpop.permute.xlu0 %2987
      %2989 = vrot.lane.b32.xlu0 %v2962, 96
      %v2990 = vpop.permute.xlu0 %2989
      %2991 = vrot.lane.b32.xlu0 %v2963, 96
      %v2992 = vpop.permute.xlu0 %2991
      %2993 = vrot.lane.b32.xlu0 %v2964, 96
      %v2994 = vpop.permute.xlu0 %2993
      %2995 = vrot.lane.b32.xlu0 %v2965, 96
      %v2996 = vpop.permute.xlu0 %2995
      %2997 = vrot.lane.b32.xlu0 %v2966, 96
      %v2998 = vpop.permute.xlu0 %2997
      %3015 = vst.msk [vmem:[#allocation2 + $0x8] sm:$0xff] %vm1458, %v2968
      %3016 = vst.msk [vmem:[#allocation2 + $0x20] sm:$0xff] %vm1458, %v2970
      %3017 = vst.msk [vmem:[#allocation2 + $0x38] sm:$0xff] %vm1458, %v2972
      %3018 = vst.msk [vmem:[#allocation2 + $0x50] sm:$0xff] %vm1458, %v2974
      %3019 = vst.msk [vmem:[#allocation2 + $0x68] sm:$0xff] %vm1458, %v2976
      %3020 = vst.msk [vmem:[#allocation2 + $0x80] sm:$0xff] %vm1458, %v2978
      %3021 = vst.msk [vmem:[#allocation2 + $0x98] sm:$0xff] %vm1458, %v2980
      %3022 = vst.msk [vmem:[#allocation2 + $0xb0] sm:$0xff] %vm1458, %v2982
      %3023 = vst.msk [vmem:[#allocation2 + $0xc8] sm:$0xff] %vm1458, %v2984
      %3024 = vst.msk [vmem:[#allocation2 + $0xe0] sm:$0xff] %vm1458, %v2986
      %3025 = vst.msk [vmem:[#allocation2 + $0xf8] sm:$0xff] %vm1458, %v2988
      %3026 = vst.msk [vmem:[#allocation2 + $0x110] sm:$0xff] %vm1458, %v2990
      %3027 = vst.msk [vmem:[#allocation2 + $0x128] sm:$0xff] %vm1458, %v2992
      %3028 = vst.msk [vmem:[#allocation2 + $0x140] sm:$0xff] %vm1458, %v2994
      %3029 = vst.msk [vmem:[#allocation2 + $0x158] sm:$0xff] %vm1458, %v2996
      %3030 = vst.msk [vmem:[#allocation2 + $0x170] sm:$0xff] %vm1458, %v2998
      %v3031 = vld [vmem:[%s2310] sm:$0xe]
      %v3032 = vld [vmem:[%s2310 + $0x4] sm:$0xf]
      %v3033 = vld [vmem:[%s2310 + $0x8] sm:$0x1]
      %v3034 = vld [vmem:[%s2310 + $0xc] sm:$0xe]
      %v3035 = vld [vmem:[%s2310 + $0x10] sm:$0xf]
      %v3036 = vld [vmem:[%s2310 + $0x14] sm:$0x1]
      %v3037 = vld [vmem:[%s2310 + $0x18] sm:$0xe]
      %v3038 = vld [vmem:[%s2310 + $0x1c] sm:$0xf]
      %v3039 = vld [vmem:[%s2310 + $0x20] sm:$0x1]
      %v3040 = vld [vmem:[%s2310 + $0x24] sm:$0xe]
      %v3041 = vld [vmem:[%s2310 + $0x28] sm:$0xf]
      %v3042 = vld [vmem:[%s2310 + $0x2c] sm:$0x1]
      %v3043 = vld [vmem:[%s2310 + $0x30] sm:$0xe]
      %v3044 = vld [vmem:[%s2310 + $0x34] sm:$0xf]
      %v3045 = vld [vmem:[%s2310 + $0x38] sm:$0x1]
      %v3046 = vld [vmem:[%s2310 + $0x3c] sm:$0xe]
      %v3047 = vld [vmem:[%s2310 + $0x40] sm:$0xf]
      %v3048 = vld [vmem:[%s2310 + $0x44] sm:$0x1]
      %v3049 = vld [vmem:[%s2310 + $0x48] sm:$0xe]
      %v3050 = vld [vmem:[%s2310 + $0x4c] sm:$0xf]
      %v3051 = vld [vmem:[%s2310 + $0x50] sm:$0x1]
      %v3052 = vld [vmem:[%s2310 + $0x54] sm:$0xe]
      %v3053 = vld [vmem:[%s2310 + $0x58] sm:$0xf]
      %v3054 = vld [vmem:[%s2310 + $0x5c] sm:$0x1]
      %v3055 = vld [vmem:[%s2310 + $0x60] sm:$0xe]
      %v3056 = vld [vmem:[%s2310 + $0x64] sm:$0xf]
      %v3057 = vld [vmem:[%s2310 + $0x68] sm:$0x1]
      %v3058 = vld [vmem:[%s2310 + $0x6c] sm:$0xe]
      %v3059 = vld [vmem:[%s2310 + $0x70] sm:$0xf]
      %v3060 = vld [vmem:[%s2310 + $0x74] sm:$0x1]
      %v3061 = vld [vmem:[%s2310 + $0x78] sm:$0xe]
      %v3062 = vld [vmem:[%s2310 + $0x7c] sm:$0xf]
      %v3063 = vld [vmem:[%s2310 + $0x80] sm:$0x1]
      %v3064 = vld [vmem:[%s2310 + $0x84] sm:$0xe]
      %v3065 = vld [vmem:[%s2310 + $0x88] sm:$0xf]
      %v3066 = vld [vmem:[%s2310 + $0x8c] sm:$0x1]
      %v3067 = vld [vmem:[%s2310 + $0x90] sm:$0xe]
      %v3068 = vld [vmem:[%s2310 + $0x94] sm:$0xf]
      %v3069 = vld [vmem:[%s2310 + $0x98] sm:$0x1]
      %v3070 = vld [vmem:[%s2310 + $0x9c] sm:$0xe]
      %v3071 = vld [vmem:[%s2310 + $0xa0] sm:$0xf]
      %v3072 = vld [vmem:[%s2310 + $0xa4] sm:$0x1]
      %v3073 = vld [vmem:[%s2310 + $0xa8] sm:$0xe]
      %v3074 = vld [vmem:[%s2310 + $0xac] sm:$0xf]
      %v3075 = vld [vmem:[%s2310 + $0xb0] sm:$0x1]
      %v3076 = vld [vmem:[%s2310 + $0xb4] sm:$0xe]
      %v3077 = vld [vmem:[%s2310 + $0xb8] sm:$0xf]
      %v3078 = vld [vmem:[%s2310 + $0xbc] sm:$0x1]
      %v3127 = vrot.slane %v3031, 5
      %v3128 = vrot.slane %v3127, 4
      %v3129 = vrot.slane %v3032, 5
      %v3130 = vsel %vm1068, %v3128, %v3129
      %v3131 = vrot.slane %v3129, 4
      %v3132 = vrot.slane %v3033, 5
      %v3133 = vsel %vm1068, %v3131, %v3132
      %v3134 = vrot.slane %v3034, 5
      %v3135 = vrot.slane %v3134, 4
      %v3136 = vrot.slane %v3035, 5
      %v3137 = vsel %vm1068, %v3135, %v3136
      %v3138 = vrot.slane %v3136, 4
      %v3139 = vrot.slane %v3036, 5
      %v3140 = vsel %vm1068, %v3138, %v3139
      %v3141 = vrot.slane %v3037, 5
      %v3142 = vrot.slane %v3141, 4
      %v3143 = vrot.slane %v3038, 5
      %v3144 = vsel %vm1068, %v3142, %v3143
      %v3145 = vrot.slane %v3143, 4
      %v3146 = vrot.slane %v3039, 5
      %v3147 = vsel %vm1068, %v3145, %v3146
      %v3148 = vrot.slane %v3040, 5
      %v3149 = vrot.slane %v3148, 4
      %v3150 = vrot.slane %v3041, 5
      %v3151 = vsel %vm1068, %v3149, %v3150
      %v3152 = vrot.slane %v3150, 4
      %v3153 = vrot.slane %v3042, 5
      %v3154 = vsel %vm1068, %v3152, %v3153
      %v3155 = vrot.slane %v3043, 5
      %v3156 = vrot.slane %v3155, 4
      %v3157 = vrot.slane %v3044, 5
      %v3158 = vsel %vm1068, %v3156, %v3157
      %v3159 = vrot.slane %v3157, 4
      %v3160 = vrot.slane %v3045, 5
      %v3161 = vsel %vm1068, %v3159, %v3160
      %v3162 = vrot.slane %v3046, 5
      %v3163 = vrot.slane %v3162, 4
      %v3164 = vrot.slane %v3047, 5
      %v3165 = vsel %vm1068, %v3163, %v3164
      %v3166 = vrot.slane %v3164, 4
      %v3167 = vrot.slane %v3048, 5
      %v3168 = vsel %vm1068, %v3166, %v3167
      %v3169 = vrot.slane %v3049, 5
      %v3170 = vrot.slane %v3169, 4
      %v3171 = vrot.slane %v3050, 5
      %v3172 = vsel %vm1068, %v3170, %v3171
      %v3173 = vrot.slane %v3171, 4
      %v3174 = vrot.slane %v3051, 5
      %v3175 = vsel %vm1068, %v3173, %v3174
      %v3176 = vrot.slane %v3052, 5
      %v3177 = vrot.slane %v3176, 4
      %v3178 = vrot.slane %v3053, 5
      %v3179 = vsel %vm1068, %v3177, %v3178
      %v3180 = vrot.slane %v3178, 4
      %v3181 = vrot.slane %v3054, 5
      %v3182 = vsel %vm1068, %v3180, %v3181
      %v3183 = vrot.slane %v3055, 5
      %v3184 = vrot.slane %v3183, 4
      %v3185 = vrot.slane %v3056, 5
      %v3186 = vsel %vm1068, %v3184, %v3185
      %v3187 = vrot.slane %v3185, 4
      %v3188 = vrot.slane %v3057, 5
      %v3189 = vsel %vm1068, %v3187, %v3188
      %v3190 = vrot.slane %v3058, 5
      %v3191 = vrot.slane %v3190, 4
      %v3192 = vrot.slane %v3059, 5
      %v3193 = vsel %vm1068, %v3191, %v3192
      %v3194 = vrot.slane %v3192, 4
      %v3195 = vrot.slane %v3060, 5
      %v3196 = vsel %vm1068, %v3194, %v3195
      %v3197 = vrot.slane %v3061, 5
      %v3198 = vrot.slane %v3197, 4
      %v3199 = vrot.slane %v3062, 5
      %v3200 = vsel %vm1068, %v3198, %v3199
      %v3201 = vrot.slane %v3199, 4
      %v3202 = vrot.slane %v3063, 5
      %v3203 = vsel %vm1068, %v3201, %v3202
      %v3204 = vrot.slane %v3064, 5
      %v3205 = vrot.slane %v3204, 4
      %v3206 = vrot.slane %v3065, 5
      %v3207 = vsel %vm1068, %v3205, %v3206
      %v3208 = vrot.slane %v3206, 4
      %v3209 = vrot.slane %v3066, 5
      %v3210 = vsel %vm1068, %v3208, %v3209
      %v3211 = vrot.slane %v3067, 5
      %v3212 = vrot.slane %v3211, 4
      %v3213 = vrot.slane %v3068, 5
      %v3214 = vsel %vm1068, %v3212, %v3213
      %v3215 = vrot.slane %v3213, 4
      %v3216 = vrot.slane %v3069, 5
      %v3217 = vsel %vm1068, %v3215, %v3216
      %v3218 = vrot.slane %v3070, 5
      %v3219 = vrot.slane %v3218, 4
      %v3220 = vrot.slane %v3071, 5
      %v3221 = vsel %vm1068, %v3219, %v3220
      %v3222 = vrot.slane %v3220, 4
      %v3223 = vrot.slane %v3072, 5
      %v3224 = vsel %vm1068, %v3222, %v3223
      %v3225 = vrot.slane %v3073, 5
      %v3226 = vrot.slane %v3225, 4
      %v3227 = vrot.slane %v3074, 5
      %v3228 = vsel %vm1068, %v3226, %v3227
      %v3229 = vrot.slane %v3227, 4
      %v3230 = vrot.slane %v3075, 5
      %v3231 = vsel %vm1068, %v3229, %v3230
      %v3232 = vrot.slane %v3076, 5
      %v3233 = vrot.slane %v3232, 4
      %v3234 = vrot.slane %v3077, 5
      %v3235 = vsel %vm1068, %v3233, %v3234
      %v3236 = vrot.slane %v3234, 4
      %v3237 = vrot.slane %v3078, 5
      %v3238 = vsel %vm1068, %v3236, %v3237
      %v3239 = vunpack.c.l.b16 %v3130
      %v3240 = vunpack.c.l.b16 %v3133
      %v3241 = vunpack.c.l.b16 %v3137
      %v3242 = vunpack.c.l.b16 %v3140
      %v3243 = vunpack.c.l.b16 %v3144
      %v3244 = vunpack.c.l.b16 %v3147
      %v3245 = vunpack.c.l.b16 %v3151
      %v3246 = vunpack.c.l.b16 %v3154
      %v3247 = vunpack.c.l.b16 %v3158
      %v3248 = vunpack.c.l.b16 %v3161
      %v3249 = vunpack.c.l.b16 %v3165
      %v3250 = vunpack.c.l.b16 %v3168
      %v3251 = vunpack.c.l.b16 %v3172
      %v3252 = vunpack.c.l.b16 %v3175
      %v3253 = vunpack.c.l.b16 %v3179
      %v3254 = vunpack.c.l.b16 %v3182
      %v3255 = vunpack.c.l.b16 %v3186
      %v3256 = vunpack.c.l.b16 %v3189
      %v3257 = vunpack.c.l.b16 %v3193
      %v3258 = vunpack.c.l.b16 %v3196
      %v3259 = vunpack.c.l.b16 %v3200
      %v3260 = vunpack.c.l.b16 %v3203
      %v3261 = vunpack.c.l.b16 %v3207
      %v3262 = vunpack.c.l.b16 %v3210
      %v3263 = vunpack.c.l.b16 %v3214
      %v3264 = vunpack.c.l.b16 %v3217
      %v3265 = vunpack.c.l.b16 %v3221
      %v3266 = vunpack.c.l.b16 %v3224
      %v3267 = vunpack.c.l.b16 %v3228
      %v3268 = vunpack.c.l.b16 %v3231
      %v3269 = vunpack.c.l.b16 %v3235
      %v3270 = vunpack.c.l.b16 %v3238
      %v3271 = vpack.c.b16 %v3240, %v3239
      %v3272 = vpack.c.b16 %v3242, %v3241
      %v3273 = vpack.c.b16 %v3244, %v3243
      %v3274 = vpack.c.b16 %v3246, %v3245
      %v3275 = vpack.c.b16 %v3248, %v3247
      %v3276 = vpack.c.b16 %v3250, %v3249
      %v3277 = vpack.c.b16 %v3252, %v3251
      %v3278 = vpack.c.b16 %v3254, %v3253
      %v3279 = vpack.c.b16 %v3256, %v3255
      %v3280 = vpack.c.b16 %v3258, %v3257
      %v3281 = vpack.c.b16 %v3260, %v3259
      %v3282 = vpack.c.b16 %v3262, %v3261
      %v3283 = vpack.c.b16 %v3264, %v3263
      %v3284 = vpack.c.b16 %v3266, %v3265
      %v3285 = vpack.c.b16 %v3268, %v3267
      %v3286 = vpack.c.b16 %v3270, %v3269
      %3303 = vst.msk [vmem:[#allocation2 + $0x10] sm:$0xff] %vm405, %v3271
      %3304 = vst.msk [vmem:[#allocation2 + $0x28] sm:$0xff] %vm405, %v3272
      %3305 = vst.msk [vmem:[#allocation2 + $0x40] sm:$0xff] %vm405, %v3273
      %3306 = vst.msk [vmem:[#allocation2 + $0x58] sm:$0xff] %vm405, %v3274
      %3307 = vst.msk [vmem:[#allocation2 + $0x70] sm:$0xff] %vm405, %v3275
      %3308 = vst.msk [vmem:[#allocation2 + $0x88] sm:$0xff] %vm405, %v3276
      %3309 = vst.msk [vmem:[#allocation2 + $0xa0] sm:$0xff] %vm405, %v3277
      %3310 = vst.msk [vmem:[#allocation2 + $0xb8] sm:$0xff] %vm405, %v3278
      %3311 = vst.msk [vmem:[#allocation2 + $0xd0] sm:$0xff] %vm405, %v3279
      %3312 = vst.msk [vmem:[#allocation2 + $0xe8] sm:$0xff] %vm405, %v3280
      %3313 = vst.msk [vmem:[#allocation2 + $0x100] sm:$0xff] %vm405, %v3281
      %3314 = vst.msk [vmem:[#allocation2 + $0x118] sm:$0xff] %vm405, %v3282
      %3315 = vst.msk [vmem:[#allocation2 + $0x130] sm:$0xff] %vm405, %v3283
      %3316 = vst.msk [vmem:[#allocation2 + $0x148] sm:$0xff] %vm405, %v3284
      %3317 = vst.msk [vmem:[#allocation2 + $0x160] sm:$0xff] %vm405, %v3285
      %3318 = vst.msk [vmem:[#allocation2 + $0x178] sm:$0xff] %vm405, %v3286
      %v3319 = vld [vmem:[%s1] sm:$0xff]
      %v3320 = vld [vmem:[%s1 + $0x8] sm:$0xf]
      %v3321 = vld [vmem:[%s1 + $0xc] sm:$0xff]
      %v3322 = vld [vmem:[%s1 + $0x14] sm:$0xf]
      %v3323 = vld [vmem:[%s1 + $0x18] sm:$0xff]
      %v3324 = vld [vmem:[%s1 + $0x20] sm:$0xf]
      %v3325 = vld [vmem:[%s1 + $0x24] sm:$0xff]
      %v3326 = vld [vmem:[%s1 + $0x2c] sm:$0xf]
      %v3327 = vld [vmem:[%s1 + $0x30] sm:$0xff]
      %v3328 = vld [vmem:[%s1 + $0x38] sm:$0xf]
      %v3329 = vld [vmem:[%s1 + $0x3c] sm:$0xff]
      %v3330 = vld [vmem:[%s1 + $0x44] sm:$0xf]
      %v3331 = vld [vmem:[%s1 + $0x48] sm:$0xff]
      %v3332 = vld [vmem:[%s1 + $0x50] sm:$0xf]
      %v3333 = vld [vmem:[%s1 + $0x54] sm:$0xff]
      %v3334 = vld [vmem:[%s1 + $0x5c] sm:$0xf]
      %v3335 = vld [vmem:[#allocation2] sm:$0xff]
      %v3336 = vld [vmem:[#allocation2 + $0x8] sm:$0xff]
      %v3337 = vld [vmem:[#allocation2 + $0x10] sm:$0xff]
      %v3338 = vld [vmem:[#allocation2 + $0x18] sm:$0xff]
      %v3339 = vld [vmem:[#allocation2 + $0x20] sm:$0xff]
      %v3340 = vld [vmem:[#allocation2 + $0x28] sm:$0xff]
      %v3341 = vld [vmem:[#allocation2 + $0x30] sm:$0xff]
      %v3342 = vld [vmem:[#allocation2 + $0x38] sm:$0xff]
      %v3343 = vld [vmem:[#allocation2 + $0x40] sm:$0xff]
      %v3344 = vld [vmem:[#allocation2 + $0x48] sm:$0xff]
      %v3345 = vld [vmem:[#allocation2 + $0x50] sm:$0xff]
      %v3346 = vld [vmem:[#allocation2 + $0x58] sm:$0xff]
      %v3347 = vld [vmem:[#allocation2 + $0x60] sm:$0xff]
      %v3348 = vld [vmem:[#allocation2 + $0x68] sm:$0xff]
      %v3349 = vld [vmem:[#allocation2 + $0x70] sm:$0xff]
      %v3350 = vld [vmem:[#allocation2 + $0x78] sm:$0xff]
      %v3351 = vld [vmem:[#allocation2 + $0x80] sm:$0xff]
      %v3352 = vld [vmem:[#allocation2 + $0x88] sm:$0xff]
      %v3353 = vld [vmem:[#allocation2 + $0x90] sm:$0xff]
      %v3354 = vld [vmem:[#allocation2 + $0x98] sm:$0xff]
      %v3355 = vld [vmem:[#allocation2 + $0xa0] sm:$0xff]
      %v3356 = vld [vmem:[#allocation2 + $0xa8] sm:$0xff]
      %v3357 = vld [vmem:[#allocation2 + $0xb0] sm:$0xff]
      %v3358 = vld [vmem:[#allocation2 + $0xb8] sm:$0xff]
      %v3359 = vld [vmem:[#allocation2 + $0xc0] sm:$0xff]
      %v3360 = vld [vmem:[#allocation2 + $0xc8] sm:$0xff]
      %v3361 = vld [vmem:[#allocation2 + $0xd0] sm:$0xff]
      %v3362 = vld [vmem:[#allocation2 + $0xd8] sm:$0xff]
      %v3363 = vld [vmem:[#allocation2 + $0xe0] sm:$0xff]
      %v3364 = vld [vmem:[#allocation2 + $0xe8] sm:$0xff]
      %v3365 = vld [vmem:[#allocation2 + $0xf0] sm:$0xff]
      %v3366 = vld [vmem:[#allocation2 + $0xf8] sm:$0xff]
      %v3367 = vld [vmem:[#allocation2 + $0x100] sm:$0xff]
      %v3368 = vld [vmem:[#allocation2 + $0x108] sm:$0xff]
      %v3369 = vld [vmem:[#allocation2 + $0x110] sm:$0xff]
      %v3370 = vld [vmem:[#allocation2 + $0x118] sm:$0xff]
      %v3371 = vld [vmem:[#allocation2 + $0x120] sm:$0xff]
      %v3372 = vld [vmem:[#allocation2 + $0x128] sm:$0xff]
      %v3373 = vld [vmem:[#allocation2 + $0x130] sm:$0xff]
      %v3374 = vld [vmem:[#allocation2 + $0x138] sm:$0xff]
      %v3375 = vld [vmem:[#allocation2 + $0x140] sm:$0xff]
      %v3376 = vld [vmem:[#allocation2 + $0x148] sm:$0xff]
      %v3377 = vld [vmem:[#allocation2 + $0x150] sm:$0xff]
      %v3378 = vld [vmem:[#allocation2 + $0x158] sm:$0xff]
      %v3379 = vld [vmem:[#allocation2 + $0x160] sm:$0xff]
      %v3380 = vld [vmem:[#allocation2 + $0x168] sm:$0xff]
      %v3381 = vld [vmem:[#allocation2 + $0x170] sm:$0xff]
      %v3382 = vld [vmem:[#allocation2 + $0x178] sm:$0xff]
      %v3383 = vld [vmem:[%s2] sm:$0xff]
      %v3384 = vld [vmem:[%s2 + $0x8] sm:$0xff]
      %v3385 = vld [vmem:[%s2 + $0x10] sm:$0xff]
      %v3386 = vld [vmem:[%s2 + $0x18] sm:$0xff]
      %v3387 = vld [vmem:[%s2 + $0x20] sm:$0xff]
      %v3388 = vld [vmem:[%s2 + $0x28] sm:$0xff]
      %v3389 = vld [vmem:[%s2 + $0x30] sm:$0xff]
      %v3390 = vld [vmem:[%s2 + $0x38] sm:$0xff]
      %3392 = vset.pattern.permute.xlu0 0
      %3393 = vperm.xlu0 %3392, %v3383
      %v3394 = vpop.permute.xlu0 %3393
      %3397 = vset.pattern.permute.xlu0 0
      %3398 = vperm.xlu0 %3397, %v3384
      %v3399 = vpop.permute.xlu0 %3398
      %3402 = vset.pattern.permute.xlu0 0
      %3403 = vperm.xlu0 %3402, %v3385
      %v3404 = vpop.permute.xlu0 %3403
      %3407 = vset.pattern.permute.xlu0 0
      %3408 = vperm.xlu0 %3407, %v3386
      %v3409 = vpop.permute.xlu0 %3408
      %3412 = vset.pattern.permute.xlu0 0
      %3413 = vperm.xlu0 %3412, %v3387
      %v3414 = vpop.permute.xlu0 %3413
      %3417 = vset.pattern.permute.xlu0 0
      %3418 = vperm.xlu0 %3417, %v3388
      %v3419 = vpop.permute.xlu0 %3418
      %3422 = vset.pattern.permute.xlu0 0
      %3423 = vperm.xlu0 %3422, %v3389
      %v3424 = vpop.permute.xlu0 %3423
      %3427 = vset.pattern.permute.xlu0 0
      %3428 = vperm.xlu0 %3427, %v3390
      %v3429 = vpop.permute.xlu0 %3428
      %v3447 = vunpack.c.l.b16 %v3319
      %v3448 = vunpack.c.h.b16 %v3319
      %v3449 = vunpack.c.l.b16 %v3320
      %v3450 = vunpack.c.l.b16 %v3321
      %v3451 = vunpack.c.h.b16 %v3321
      %v3452 = vunpack.c.l.b16 %v3322
      %v3453 = vunpack.c.l.b16 %v3323
      %v3454 = vunpack.c.h.b16 %v3323
      %v3455 = vunpack.c.l.b16 %v3324
      %v3456 = vunpack.c.l.b16 %v3325
      %v3457 = vunpack.c.h.b16 %v3325
      %v3458 = vunpack.c.l.b16 %v3326
      %v3459 = vunpack.c.l.b16 %v3327
      %v3460 = vunpack.c.h.b16 %v3327
      %v3461 = vunpack.c.l.b16 %v3328
      %v3462 = vunpack.c.l.b16 %v3329
      %v3463 = vunpack.c.h.b16 %v3329
      %v3464 = vunpack.c.l.b16 %v3330
      %v3465 = vunpack.c.l.b16 %v3331
      %v3466 = vunpack.c.h.b16 %v3331
      %v3467 = vunpack.c.l.b16 %v3332
      %v3468 = vunpack.c.l.b16 %v3333
      %v3469 = vunpack.c.h.b16 %v3333
      %v3470 = vunpack.c.l.b16 %v3334
      %v3471 = vpack.c.b16 %v3450, %v3447
      %v3472 = vpack.c.b16 %v3451, %v3448
      %v3473 = vpack.c.b16 %v3452, %v3449
      %v3474 = vpack.c.b16 %v3456, %v3453
      %v3475 = vpack.c.b16 %v3457, %v3454
      %v3476 = vpack.c.b16 %v3458, %v3455
      %v3477 = vpack.c.b16 %v3462, %v3459
      %v3478 = vpack.c.b16 %v3463, %v3460
      %v3479 = vpack.c.b16 %v3464, %v3461
      %v3480 = vpack.c.b16 %v3468, %v3465
      %v3481 = vpack.c.b16 %v3469, %v3466
      %v3482 = vpack.c.b16 %v3470, %v3467
      %v3492 = vsel %vm405, %v3473, 0
      %v3495 = vsel %vm405, %v3476, 0
      %v3498 = vsel %vm405, %v3479, 0
      %v3501 = vsel %vm405, %v3482, 0
      %v3504 = vsel %vm405, %v3337, 0
      %v3507 = vsel %vm405, %v3340, 0
      %v3510 = vsel %vm405, %v3343, 0
      %v3513 = vsel %vm405, %v3346, 0
      %v3516 = vsel %vm405, %v3349, 0
      %v3519 = vsel %vm405, %v3352, 0
      %v3522 = vsel %vm405, %v3355, 0
      %v3525 = vsel %vm405, %v3358, 0
      %v3528 = vsel %vm405, %v3361, 0
      %v3531 = vsel %vm405, %v3364, 0
      %v3534 = vsel %vm405, %v3367, 0
      %v3537 = vsel %vm405, %v3370, 0
      %v3540 = vsel %vm405, %v3373, 0
      %v3543 = vsel %vm405, %v3376, 0
      %v3546 = vsel %vm405, %v3379, 0
      %v3549 = vsel %vm405, %v3382, 0
      %3551 = vmatprep.subr.bf16.mxu0 %v3336
      %3552 = vmatpush1.bf16.xpose.msra.mxu0 %v3335
      %3553 = vmatprep.subr.bf16.mxu0 %v3339
      %3554 = vmatpush1.bf16.xpose.msra.mxu0 %v3338
      %3555 = vmatprep.subr.bf16.mxu0 %v3342
      %3556 = vmatpush1.bf16.xpose.msra.mxu0 %v3341
      %3557 = vmatprep.subr.bf16.mxu0 %v3345
      %3558 = vmatpush1.bf16.xpose.msra.mxu0 %v3344
      %3559 = vmatprep.subr.bf16.mxu0 %v3348
      %3560 = vmatpush1.bf16.xpose.msra.mxu0 %v3347
      %3561 = vmatprep.subr.bf16.mxu0 %v3351
      %3562 = vmatpush1.bf16.xpose.msra.mxu0 %v3350
      %3563 = vmatprep.subr.bf16.mxu0 %v3354
      %3564 = vmatpush1.bf16.xpose.msra.mxu0 %v3353
      %3565 = vmatprep.subr.bf16.mxu0 %v3357
      %3566 = vmatpush1.bf16.xpose.msra.mxu0 %v3356
      %3567 = vmatprep.subr.bf16.mxu0 %v3360
      %3568 = vmatpush1.bf16.xpose.msra.mxu0 %v3359
      %3569 = vmatprep.subr.bf16.mxu0 %v3363
      %3570 = vmatpush1.bf16.xpose.msra.mxu0 %v3362
      %3571 = vmatprep.subr.bf16.mxu0 %v3366
      %3572 = vmatpush1.bf16.xpose.msra.mxu0 %v3365
      %3573 = vmatprep.subr.bf16.mxu0 %v3369
      %3574 = vmatpush1.bf16.xpose.msra.mxu0 %v3368
      %3575 = vmatprep.subr.bf16.mxu0 %v3372
      %3576 = vmatpush1.bf16.xpose.msra.mxu0 %v3371
      %3577 = vmatprep.subr.bf16.mxu0 %v3375
      %3578 = vmatpush1.bf16.xpose.msra.mxu0 %v3374
      %3579 = vmatprep.subr.bf16.mxu0 %v3378
      %3580 = vmatpush1.bf16.xpose.msra.mxu0 %v3377
      %3581 = vmatprep.subr.bf16.mxu0 %v3381
      %3582 = vmatpush1.bf16.xpose.msra.mxu0 %v3380
      %3583 = vmatprep.mubr.bf16.mxu0 %v3472
      %3584 = vmatmul.mubr.bf16.gmra.mrb[0].mxu0 %v3471
      %v3585 = vpop.f32.mrb[0].mxu0
      %v3586 = vadd.f32 %v3394, %v3585
      %v3587 = vpop.f32.mrb[0].mxu0
      %v3588 = vadd.f32 %v3394, %v3587
      %v3589 = vpop.f32.mrb[0].mxu0
      %v3590 = vadd.f32 %v3399, %v3589
      %v3591 = vpop.f32.mrb[0].mxu0
      %v3592 = vadd.f32 %v3399, %v3591
      %3593 = vmatprep.mubr.bf16.mxu0 %v3475
      %3594 = vmatmul.mubr.bf16.gmra.mrb[0].mxu0 %v3474
      %v3595 = vpop.f32.mrb[0].mxu0
      %v3596 = vadd.f32 %v3404, %v3595
      %v3597 = vpop.f32.mrb[0].mxu0
      %v3598 = vadd.f32 %v3404, %v3597
      %v3599 = vpop.f32.mrb[0].mxu0
      %v3600 = vadd.f32 %v3409, %v3599
      %v3601 = vpop.f32.mrb[0].mxu0
      %v3602 = vadd.f32 %v3409, %v3601
      %3603 = vmatprep.mubr.bf16.mxu0 %v3478
      %3604 = vmatmul.mubr.bf16.gmra.mrb[0].mxu0 %v3477
      %v3605 = vpop.f32.mrb[0].mxu0
      %v3606 = vadd.f32 %v3414, %v3605
      %v3607 = vpop.f32.mrb[0].mxu0
      %v3608 = vadd.f32 %v3414, %v3607
      %v3609 = vpop.f32.mrb[0].mxu0
      %v3610 = vadd.f32 %v3419, %v3609
      %v3611 = vpop.f32.mrb[0].mxu0
      %v3612 = vadd.f32 %v3419, %v3611
      %3613 = vmatprep.mubr.bf16.mxu0 %v3481
      %3614 = vmatmul.mubr.bf16.gmra.mrb[0].mxu0 %v3480
      %v3615 = vpop.f32.mrb[0].mxu0
      %v3616 = vadd.f32 %v3424, %v3615
      %v3617 = vpop.f32.mrb[0].mxu0
      %v3618 = vadd.f32 %v3424, %v3617
      %v3619 = vpop.f32.mrb[0].mxu0
      %v3620 = vadd.f32 %v3429, %v3619
      %v3621 = vpop.f32.mrb[0].mxu0
      %v3622 = vadd.f32 %v3429, %v3621
      %3623 = vdwg.mxu0
      %3624 = vmatprep.subr.bf16.mxu0 0
      %3625 = vmatpush1.bf16.xpose.msra.mxu0 %v3504
      %3626 = vmatprep.subr.bf16.mxu0 0
      %3627 = vmatpush1.bf16.xpose.msra.mxu0 %v3507
      %3628 = vmatprep.subr.bf16.mxu0 0
      %3629 = vmatpush1.bf16.xpose.msra.mxu0 %v3510
      %3630 = vmatprep.subr.bf16.mxu0 0
      %3631 = vmatpush1.bf16.xpose.msra.mxu0 %v3513
      %3632 = vmatprep.subr.bf16.mxu0 0
      %3633 = vmatpush1.bf16.xpose.msra.mxu0 %v3516
      %3634 = vmatprep.subr.bf16.mxu0 0
      %3635 = vmatpush1.bf16.xpose.msra.mxu0 %v3519
      %3636 = vmatprep.subr.bf16.mxu0 0
      %3637 = vmatpush1.bf16.xpose.msra.mxu0 %v3522
      %3638 = vmatprep.subr.bf16.mxu0 0
      %3639 = vmatpush1.bf16.xpose.msra.mxu0 %v3525
      %3640 = vmatprep.subr.bf16.mxu0 0
      %3641 = vmatpush1.bf16.xpose.msra.mxu0 %v3528
      %3642 = vmatprep.subr.bf16.mxu0 0
      %3643 = vmatpush1.bf16.xpose.msra.mxu0 %v3531
      %3644 = vmatprep.subr.bf16.mxu0 0
      %3645 = vmatpush1.bf16.xpose.msra.mxu0 %v3534
      %3646 = vmatprep.subr.bf16.mxu0 0
      %3647 = vmatpush1.bf16.xpose.msra.mxu0 %v3537
      %3648 = vmatprep.subr.bf16.mxu0 0
      %3649 = vmatpush1.bf16.xpose.msra.mxu0 %v3540
      %3650 = vmatprep.subr.bf16.mxu0 0
      %3651 = vmatpush1.bf16.xpose.msra.mxu0 %v3543
      %3652 = vmatprep.subr.bf16.mxu0 0
      %3653 = vmatpush1.bf16.xpose.msra.mxu0 %v3546
      %3654 = vmatprep.subr.bf16.mxu0 0
      %3655 = vmatpush1.bf16.xpose.msra.mxu0 %v3549
      %3656 = vmatprep.mubr.bf16.mxu0 0
      %3657 = vmatmul.mubr.bf16.gmra.mrb[0].mxu0 %v3492
      %v3658 = vpop.f32.mrb[0].mxu0
      %v3659 = vadd.f32 %v3586, %v3658
      %v3660 = vpop.f32.mrb[0].mxu0
      %v3661 = vadd.f32 %v3588, %v3660
      %v3662 = vpop.f32.mrb[0].mxu0
      %v3663 = vadd.f32 %v3590, %v3662
      %v3664 = vpop.f32.mrb[0].mxu0
      %v3665 = vadd.f32 %v3592, %v3664
      %3666 = vmatprep.mubr.bf16.mxu0 0
      %3667 = vmatmul.mubr.bf16.gmra.mrb[0].mxu0 %v3495
      %v3668 = vpop.f32.mrb[0].mxu0
      %v3669 = vadd.f32 %v3596, %v3668
      %v3670 = vpop.f32.mrb[0].mxu0
      %v3671 = vadd.f32 %v3598, %v3670
      %v3672 = vpop.f32.mrb[0].mxu0
      %v3673 = vadd.f32 %v3600, %v3672
      %v3674 = vpop.f32.mrb[0].mxu0
      %v3675 = vadd.f32 %v3602, %v3674
      %3676 = vmatprep.mubr.bf16.mxu0 0
      %3677 = vmatmul.mubr.bf16.gmra.mrb[0].mxu0 %v3498
      %v3678 = vpop.f32.mrb[0].mxu0
      %v3679 = vadd.f32 %v3606, %v3678
      %v3680 = vpop.f32.mrb[0].mxu0
      %v3681 = vadd.f32 %v3608, %v3680
      %v3682 = vpop.f32.mrb[0].mxu0
      %v3683 = vadd.f32 %v3610, %v3682
      %v3684 = vpop.f32.mrb[0].mxu0
      %v3685 = vadd.f32 %v3612, %v3684
      %3686 = vmatprep.mubr.bf16.mxu0 0
      %3687 = vmatmul.mubr.bf16.gmra.mrb[0].mxu0 %v3501
      %v3688 = vpop.f32.mrb[0].mxu0
      %v3689 = vadd.f32 %v3616, %v3688
      %v3690 = vpop.f32.mrb[0].mxu0
      %v3691 = vadd.f32 %v3618, %v3690
      %v3692 = vpop.f32.mrb[0].mxu0
      %v3693 = vadd.f32 %v3620, %v3692
      %v3694 = vpop.f32.mrb[0].mxu0
      %v3695 = vadd.f32 %v3622, %v3694
      %3696 = vdwg.mxu0
      %v3697 = vmax.f32 %v3659, 0.0
      %v3698 = vmax.f32 %v3661, 0.0
      %v3699 = vmax.f32 %v3663, 0.0
      %v3700 = vmax.f32 %v3665, 0.0
      %v3701 = vmax.f32 %v3669, 0.0
      %v3702 = vmax.f32 %v3671, 0.0
      %v3703 = vmax.f32 %v3673, 0.0
      %v3704 = vmax.f32 %v3675, 0.0
      %v3705 = vmax.f32 %v3679, 0.0
      %v3706 = vmax.f32 %v3681, 0.0
      %v3707 = vmax.f32 %v3683, 0.0
      %v3708 = vmax.f32 %v3685, 0.0
      %v3709 = vmax.f32 %v3689, 0.0
      %v3710 = vmax.f32 %v3691, 0.0
      %v3711 = vmax.f32 %v3693, 0.0
      %v3712 = vmax.f32 %v3695, 0.0
      %v3713 = vpack.c.bf16 %v3699, %v3697
      %v3714 = vpack.c.bf16 %v3700, %v3698
      %v3715 = vpack.c.bf16 %v3703, %v3701
      %v3716 = vpack.c.bf16 %v3704, %v3702
      %v3717 = vpack.c.bf16 %v3707, %v3705
      %v3718 = vpack.c.bf16 %v3708, %v3706
      %v3719 = vpack.c.bf16 %v3711, %v3709
      %v3720 = vpack.c.bf16 %v3712, %v3710
      %v3729 = vunpack.c.l.b16 %v3713
      %v3730 = vunpack.c.l.b16 %v3714
      %v3731 = vunpack.c.h.b16 %v3713
      %v3732 = vunpack.c.h.b16 %v3714
      %v3733 = vunpack.c.l.b16 %v3715
      %v3734 = vunpack.c.l.b16 %v3716
      %v3735 = vunpack.c.h.b16 %v3715
      %v3736 = vunpack.c.h.b16 %v3716
      %v3737 = vunpack.c.l.b16 %v3717
      %v3738 = vunpack.c.l.b16 %v3718
      %v3739 = vunpack.c.h.b16 %v3717
      %v3740 = vunpack.c.h.b16 %v3718
      %v3741 = vunpack.c.l.b16 %v3719
      %v3742 = vunpack.c.l.b16 %v3720
      %v3743 = vunpack.c.h.b16 %v3719
      %v3744 = vunpack.c.h.b16 %v3720
      %v3745 = vpack.c.b16 %v3730, %v3729
      %v3746 = vpack.c.b16 %v3732, %v3731
      %v3747 = vpack.c.b16 %v3734, %v3733
      %v3748 = vpack.c.b16 %v3736, %v3735
      %v3749 = vpack.c.b16 %v3738, %v3737
      %v3750 = vpack.c.b16 %v3740, %v3739
      %v3751 = vpack.c.b16 %v3742, %v3741
      %v3752 = vpack.c.b16 %v3744, %v3743
      %3761 = vst [vmem:[%s260] sm:$0xff] %v3745
      %3762 = vst [vmem:[%s260 + $0x8] sm:$0xff] %v3746
      %3763 = vst [vmem:[%s260 + $0x10] sm:$0xff] %v3747
      %3764 = vst [vmem:[%s260 + $0x18] sm:$0xff] %v3748
      %3765 = vst [vmem:[%s260 + $0x20] sm:$0xff] %v3749
      %3766 = vst [vmem:[%s260 + $0x28] sm:$0xff] %v3750
      %3767 = vst [vmem:[%s260 + $0x30] sm:$0xff] %v3751
      %3768 = vst [vmem:[%s260 + $0x38] sm:$0xff] %v3752
      %v3769 = vld [vmem:[%s3] sm:$0xf]
      %v3770 = vld [vmem:[%s3 + $0x4] sm:$0xf]
      %v3771 = vld [vmem:[%s3 + $0x8] sm:$0x3]
      %v3775 = vunpack.c.l.b16 %v3769
      %v3776 = vunpack.c.l.b16 %v3770
      %v3777 = vunpack.c.l.b16 %v3771
      %v3778 = vpack.c.b16 %v3776, %v3775
      %v3779 = vpack.c.b16 %v3777, %v3777
      %vm3780 = vcmask 523264
      %v3782 = vsel %vm3780, %v3778, 0
      %v3785 = vsel %vm3780, %v3779, 0
      %3787 = vmatprep.subr.bf16.mxu0 %v3714
      %3788 = vmatpush1.bf16.msra.mxu0 %v3713
      %3789 = vmatprep.subr.bf16.mxu0 %v3716
      %3790 = vmatpush1.bf16.msra.mxu0 %v3715
      %3791 = vmatprep.subr.bf16.mxu0 %v3718
      %3792 = vmatpush1.bf16.msra.mxu0 %v3717
      %3793 = vmatprep.subr.bf16.mxu0 %v3720
      %3794 = vmatpush1.bf16.msra.mxu0 %v3719
      %3795 = vmatprep.subr.bf16.mxu0 0
      %3796 = vmatpush1.bf16.msra.mxu0 0
      %3797 = vmatprep.subr.bf16.mxu0 0
      %3798 = vmatpush1.bf16.msra.mxu0 0
      %3799 = vmatprep.subr.bf16.mxu0 0
      %3800 = vmatpush1.bf16.msra.mxu0 0
      %3801 = vmatprep.subr.bf16.mxu0 0
      %3802 = vmatpush1.bf16.msra.mxu0 0
      %3803 = vmatprep.subr.bf16.mxu0 0
      %3804 = vmatpush1.bf16.msra.mxu0 0
      %3805 = vmatprep.subr.bf16.mxu0 0
      %3806 = vmatpush1.bf16.msra.mxu0 0
      %3807 = vmatprep.subr.bf16.mxu0 0
      %3808 = vmatpush1.bf16.msra.mxu0 0
      %3809 = vmatprep.subr.bf16.mxu0 0
      %3810 = vmatpush1.bf16.msra.mxu0 0
      %3811 = vmatprep.subr.bf16.mxu0 0
      %3812 = vmatpush1.bf16.msra.mxu0 0
      %3813 = vmatprep.subr.bf16.mxu0 0
      %3814 = vmatpush1.bf16.msra.mxu0 0
      %3815 = vmatprep.subr.bf16.mxu0 0
      %3816 = vmatpush1.bf16.msra.mxu0 0
      %3817 = vmatprep.subr.bf16.mxu0 0
      %3818 = vmatpush1.bf16.msra.mxu0 0
      %3819 = vmatprep.mubr.bf16.mxu0 0
      %3820 = vmatmul.mubr.bf16.gmra.mrb[0].mxu0 %v3782
      %v3821 = vpop.f32.mrb[0].mxu0
      %v3822 = vadd.f32 0.0, %v3821
      %v3823 = vpop.f32.mrb[0].mxu0
      %v3824 = vadd.f32 0.0, %v3823
      %v3825 = vpop.f32.mrb[0].mxu0
      %v3826 = vadd.f32 0.0, %v3825
      %v3827 = vpop.f32.mrb[0].mxu0
      %v3828 = vadd.f32 0.0, %v3827
      %3829 = vmatprep.mubr.bf16.mxu0 0
      %3830 = vmatmul.mubr.bf16.gmra.mrb[0].mxu0 %v3785
      %v3831 = vpop.f32.mrb[0].mxu0
      %v3832 = vadd.f32 0.0, %v3831
      %v3833 = vpop.f32.mrb[0].mxu0
      %v3834 = vadd.f32 0.0, %v3833
      %v3835 = vpop.f32.mrb[0].mxu0
      %v3836 = vpop.f32.mrb[0].mxu0
      %3837 = vdwg.mxu0
      %3838 = vst [vmem:[%s270] sm:$0xff] %v3822
      %3839 = vst [vmem:[%s270 + $0x8] sm:$0xff] %v3824
      %3840 = vst [vmem:[%s270 + $0x10] sm:$0xff] %v3826
      %3841 = vst [vmem:[%s270 + $0x18] sm:$0xff] %v3828
      %3842 = vst [vmem:[%s270 + $0x20] sm:$0x7] %v3832
      %3843 = vst [vmem:[%s270 + $0x28] sm:$0x7] %v3834
      %s3844 = smul.u32 2, %s22
      %p3845 = scmp.lt.s32.totalorder %s21, 1
      %s3846 = scalar_select %p3845, %s21, 1
      %p3847 = scmp.lt.s32.totalorder %s3844, 1
      %s3848 = scalar_select %p3847, %s3844, 1
      %s3849 = smul.addr %s3846, 16
      %s3850 = sadd.s32 %s3848, %s3849
      %s3851 = smul.addr %s3850, 4
      %s3852 = scalar_lea.vmem %s4, %s3851
      %s3853 = smul.u32 2, %s22
      %p3854 = scmp.lt.s32.totalorder %s21, 1
      %s3855 = scalar_select %p3854, %s21, 1
      %p3856 = scmp.lt.s32.totalorder %s3853, 1
      %s3857 = scalar_select %p3856, %s3853, 1
      %s3858 = smul.addr %s3855, 6
      %s3859 = sadd.s32 %s3857, %s3858
      %s3860 = smul.addr %s3859, 8
      %s3861 = scalar_lea.vmem %s5, %s3860
      // Predicated region
      $region37: #{bisenet_output_forward.1} parent=35 // pred_check
        %p3862 = pneg %p138
      $region38: #{bisenet_output_forward.1} parent=35 // pred_check_branch
        %3864 = sbr.rel (%p3862) target = $region40
      $region39: #{bisenet_output_forward.1} parent=35 // pred_region
        %s3865 = smul.u32 2, %s22
      $region40: #{bisenet_output_forward.1} parent=35 // pred_fallthru
        _
      // Predicated region
      $region41: #{bisenet_output_forward.1} parent=35 // pred_check
        %p3866 = pneg %p166
      $region42: #{bisenet_output_forward.1} parent=35 // pred_check_branch
        %3868 = sbr.rel (%p3866) target = $region44
      $region43: #{bisenet_output_forward.1} parent=35 // pred_region
        %s3869 = smul.u32 2, %s22
      $region44: #{bisenet_output_forward.1} parent=35 // pred_fallthru
        _
    $region36: #{bisenet_output_forward.1} parent=5 // pred_fallthru
      _
    %p3870 = scmp.le.s32.totalorder 2, %s12
    // Predicated region
    $region45: #{bisenet_output_forward.1} parent=5 // pred_check
      %p3871 = pneg %p3870
    $region46: #{bisenet_output_forward.1} parent=5 // pred_check_branch
      %3873 = sbr.rel (%p3871) target = $region48
    $region47: #{bisenet_output_forward.1} parent=5 // pred_region
      %s3874 = ssub.s32 %s12, 2
      // Predicated region
      $region49: #{bisenet_output_forward.1} parent=47 // pred_check
        %p3875 = pneg %p144
      $region50: #{bisenet_output_forward.1} parent=47 // pred_check_branch
        %3877 = sbr.rel (%p3875) target = $region52
      $region51: #{bisenet_output_forward.1} parent=47 // pred_region
        %s3878 = smul.u32 2, %s24
        %p3879 = scmp.lt.s32.totalorder %s23, 1
        %s3880 = scalar_select %p3879, %s23, 1
        %p3881 = scmp.lt.s32.totalorder %s3878, 1
        %s3882 = scalar_select %p3881, %s3878, 1
        %s3883 = smul.addr %s3880, 16
        %s3884 = sadd.s32 %s3882, %s3883
        %s3885 = smul.addr %s3884, 4
        %s3886 = scalar_lea.vmem %s4, %s3885
      $region52: #{bisenet_output_forward.1} parent=47 // pred_fallthru
        _
      // Predicated region
      $region53: #{bisenet_output_forward.1} parent=47 // pred_check
        %p3887 = pneg %p172
      $region54: #{bisenet_output_forward.1} parent=47 // pred_check_branch
        %3889 = sbr.rel (%p3887) target = $region56
      $region55: #{bisenet_output_forward.1} parent=47 // pred_region
        %s3890 = smul.u32 2, %s24
        %p3891 = scmp.lt.s32.totalorder %s23, 1
        %s3892 = scalar_select %p3891, %s23, 1
        %p3893 = scmp.lt.s32.totalorder %s3890, 1
        %s3894 = scalar_select %p3893, %s3890, 1
        %s3895 = smul.addr %s3892, 6
        %s3896 = sadd.s32 %s3894, %s3895
        %s3897 = smul.addr %s3896, 8
        %s3898 = scalar_lea.vmem %s5, %s3897
      $region56: #{bisenet_output_forward.1} parent=47 // pred_fallthru
        _
    $region48: #{bisenet_output_forward.1} parent=5 // pred_fallthru
      _
  $region6: #{bisenet_output_forward.1} parent=0 // loop_footer
    %s16 = sadd.s32 1, %s12
  $region7: #{bisenet_output_forward.1} parent=0 // loop_footer_branch
    %11 = sbr.rel target = $region3
  $region8: #{bisenet_output_forward.1} parent=0 // loop_exit
    _

</llo_original>
